<compile_context>
chip_gen: v6e
topology: v6e:2x2x1
jax: 0.10.0
libtpu: 0.0.40
codegen_flags: <defaults>
</compile_context>

<pallas_src>
import jax
import jax.numpy as jnp
from jax.experimental import pallas as pl
from jax.experimental.pallas import tpu as pltpu

# ----------------------------- model hyper-params -----------------------------
# (scaled-down stand-ins for bert-base-cased: hidden 768 -> 32, seq 186 -> 8)
VOCAB = 100
MAX_POS = 16
SEQ = 8
HIDDEN = 32
N_HEADS = 4
HEAD_DIM = HIDDEN // N_HEADS
FFN = 64
N_LAYERS = 2
N_CLASSES = 3
LN_EPS = 1e-12
OUT_PAD = 128           # lane-dense classifier output width (sliced back to N_CLASSES)
TILE_B = 1              # samples per grid step ("parallel" batch-tile axis)


def _layernorm(x, gamma, beta):
    mu = jnp.mean(x, axis=-1, keepdims=True)
    var = jnp.mean((x - mu) ** 2, axis=-1, keepdims=True)
    return (x - mu) * jax.lax.rsqrt(var + LN_EPS) * gamma + beta


# ------------------------------ the fused kernel -------------------------------
def fused_forward_kernel(x_ref, valid_ref, embln_ref,
                         wqkv_ref, bqkv_ref, wo_ref,
                         w1_ref, b1_ref, w2_ref, vecs_ref,
                         poolw_ref, poolb_ref, outw_ref, outb_ref,
                         o_ref):
    """Whole RateClassifier forward for one batch tile (TILE_B samples).

    x_ref:     (TILE_B*S, H) f32   token embeddings (pre-LayerNorm), batch-flattened
    valid_ref: (TILE_B, 1, S) f32  0/1 attention mask (additive mask built in-kernel)
    embln_ref: (2, H) f32          embedding LayerNorm [gamma; beta]
    wqkv_ref:  (L, H, 3H) bf16     fused QKV weights (columns: [q | k | v])
    bqkv_ref:  (L, 1, 3H) f32
    wo_ref:    (L, H, H)  bf16     attention output projection
    w1_ref:    (L, H, FFN) bf16    b1_ref: (L, 1, FFN) f32    w2_ref: (L, FFN, H) bf16
    vecs_ref:  (L, 6, H) f32       [bo, ln1_g, ln1_b, b2, ln2_g, ln2_b]
    poolw_ref: (H, H) bf16         poolb_ref: (1, H) f32
    outw_ref:  (H, OUT_PAD) bf16   outb_ref: (1, OUT_PAD) f32  (zero-padded past N_CLASSES)
    o_ref:     (TILE_B, 1, OUT_PAD) f32   [CLS] logits, lane-dense (first 3 lanes real)
    """
    rows, H = x_ref.shape
    TB = rows // SEQ
    NH, dh = N_HEADS, HEAD_DIM
    scale = 1.0 / (dh ** 0.5)
    f32, bf16 = jnp.float32, jnp.bfloat16

    # --- embedding LayerNorm (prologue, f32) ---
    x = _layernorm(x_ref[...], embln_ref[0:1, :], embln_ref[1:2, :])        # (rows, H)

    # --- additive key mask built in-kernel from the tiny 0/1 validity vector ---
    add_mask = (valid_ref[...] - 1.0) * 10000.0                             # (TB, 1, S)

    # --- N_LAYERS encoder layers, statically unrolled; weights stay VMEM-resident ---
    for l in range(N_LAYERS):
        vec = vecs_ref[l]                                                   # (6, H)
        bo, ln1g, ln1b = vec[0:1], vec[1:2], vec[2:3]
        b2, ln2g, ln2b = vec[3:4], vec[4:5], vec[5:6]

        # Fused, lane-dense QKV projection: ONE GEMM for the whole batch tile.
        qkv = jnp.dot(x.astype(bf16), wqkv_ref[l],
                      preferred_element_type=f32) + bqkv_ref[l]             # (rows, 3H)

        # Per-sample attention; head-major layout only for the score/context step.
        ctx_rows = []
        for b in range(TB):                                                 # static unroll
            r0 = b * SEQ
            qkv_b = qkv[r0:r0 + SEQ, :]                                     # (S, 3H)
            qh = jnp.stack([qkv_b[:, h * dh:(h + 1) * dh]
                            for h in range(NH)], axis=0).astype(bf16)       # (NH, S, dh)
            kh = jnp.stack([qkv_b[:, H + h * dh:H + (h + 1) * dh]
                            for h in range(NH)], axis=0).astype(bf16)
            vh = jnp.stack([qkv_b[:, 2 * H + h * dh:2 * H + (h + 1) * dh]
                            for h in range(NH)], axis=0).astype(bf16)

            # scores / softmax / context: one batched dot_general each (all heads)
            s = jnp.einsum('hqd,hkd->hqk', qh, kh,
                           preferred_element_type=f32) * scale              # (NH, S, S)
            s = s + add_mask[b]                                             # (1, S) -> keys
            m = jnp.max(s, axis=-1, keepdims=True)
            e = jnp.exp(s - m)
            p = e * pl.reciprocal(jnp.sum(e, axis=-1, keepdims=True), approx=True)
            c = jnp.einsum('hqk,hkd->hqd', p.astype(bf16), vh,
                           preferred_element_type=f32)                      # (NH, S, dh)
            # back to lane-dense (S, H): concat heads along the lane axis
            ctx_rows.append(jnp.concatenate([c[h] for h in range(NH)], axis=1))
        ctx = ctx_rows[0] if TB == 1 else jnp.concatenate(ctx_rows, axis=0)  # (rows, H)

        # Attention output projection: ONE lane-dense GEMM (head reduction on the MXU).
        attn = jnp.dot(ctx.astype(bf16), wo_ref[l],
                       preferred_element_type=f32) + bo

        # add & norm (f32)
        h1 = _layernorm(x + attn, ln1g, ln1b)

        # feed-forward (GELU) + add & norm, batch-flattened
        ff = jnp.dot(h1.astype(bf16), w1_ref[l], preferred_element_type=f32) + b1_ref[l]
        ff = jax.nn.gelu(ff, approximate=True)
        ff = jnp.dot(ff.astype(bf16), w2_ref[l], preferred_element_type=f32) + b2
        x = _layernorm(h1 + ff, ln2g, ln2b)

    # --- pooler -> dropout(eval == identity) -> classifier, [CLS] rows only ---
    if TB == 1:
        cls = x[0:1, :]                                                     # (1, H)
    else:
        cls = jnp.concatenate([x[b * SEQ:b * SEQ + 1, :] for b in range(TB)], axis=0)
    pooled = jnp.tanh(jnp.dot(cls.astype(bf16), poolw_ref[...],
                              preferred_element_type=f32) + poolb_ref[...])
    logits = jnp.dot(pooled.astype(bf16), outw_ref[...],
                     preferred_element_type=f32) + outb_ref[...]            # (TB, OUT_PAD)
    o_ref[...] = logits.reshape(TB, 1, OUT_PAD).astype(o_ref.dtype)


# ------------------------------- wrappers --------------------------------------
def _full_spec(arr):
    """Whole-array VMEM-resident block (constant block index across the grid)."""
    zeros = (0,) * arr.ndim
    return pl.BlockSpec(arr.shape, lambda i: zeros)


def fused_forward(x2, valid3, kp):
    B = valid3.shape[0]
    assert B % TILE_B == 0
    weights = (kp["embln"], kp["wqkv"], kp["bqkv"], kp["wo"],
               kp["w1"], kp["b1"], kp["w2"], kp["vecs"],
               kp["poolw"], kp["poolb"], kp["outw"], kp["outb"])
    return pl.pallas_call(
        fused_forward_kernel,
        out_shape=jax.ShapeDtypeStruct((B, 1, OUT_PAD), jnp.float32),
        grid=(B // TILE_B,),
        in_specs=[pl.BlockSpec((TILE_B * SEQ, HIDDEN), lambda i: (i, 0)),
                  pl.BlockSpec((TILE_B, 1, SEQ), lambda i: (i, 0, 0)),
                  *[_full_spec(w) for w in weights]],
        out_specs=pl.BlockSpec((TILE_B, 1, OUT_PAD), lambda i: (i, 0, 0)),
        compiler_params=pltpu.CompilerParams(
            dimension_semantics=("parallel",)),
    )(x2, valid3, *weights)


@jax.jit
def rate_classifier_forward(kp, input_ids, attention_mask):
    B, S = input_ids.shape
    # --- embedding lookup (data-dependent gather): plain-JAX glue ---
    emb = (jnp.take(kp["word_emb"], input_ids, axis=0)
           + kp["pos_emb"][:S][None, :, :]
           + kp["type_emb"][0][None, None, :])
    x2 = emb.reshape(B * S, HIDDEN).astype(jnp.float32)
    # tiny per-token 0/1 validity vector; the additive mask is built in-kernel
    valid3 = attention_mask.astype(jnp.float32).reshape(B, 1, S)
    logits_pad = fused_forward(x2, valid3, kp)                    # (B, 1, OUT_PAD)
    return logits_pad.reshape(B, OUT_PAD)[:, :N_CLASSES]


# ------------------------------ param init / pack ------------------------------
def init_params(key):
    """Standard (BERT-like) weight shapes; packed for the kernel by pack_params."""
    def nrm(k, shape, scale=0.02):
        return (scale * jax.random.normal(k, shape)).astype(jnp.float32)

    keys = jax.random.split(key, 7 + N_LAYERS)
    params = {
        "word_emb": nrm(keys[0], (VOCAB, HIDDEN)),
        "pos_emb": nrm(keys[1], (MAX_POS, HIDDEN)),
        "type_emb": nrm(keys[2], (2, HIDDEN)),
        "emb_ln_g": jnp.ones((HIDDEN,), jnp.float32),
        "emb_ln_b": jnp.zeros((HIDDEN,), jnp.float32),
        "pool_w": nrm(keys[3], (HIDDEN, HIDDEN)),
        "pool_b": nrm(keys[4], (HIDDEN,)),
        "out_w": nrm(keys[5], (HIDDEN, N_CLASSES)),
        "out_b": nrm(keys[6], (N_CLASSES,)),
        "layers": [],
    }
    for i in range(N_LAYERS):
        lk = jax.random.split(keys[7 + i], 12)
        params["layers"].append({
            "wq": nrm(lk[0], (HIDDEN, HIDDEN)), "bq": nrm(lk[1], (HIDDEN,)),
            "wk": nrm(lk[2], (HIDDEN, HIDDEN)), "bk": nrm(lk[3], (HIDDEN,)),
            "wv": nrm(lk[4], (HIDDEN, HIDDEN)), "bv": nrm(lk[5], (HIDDEN,)),
            "wo": nrm(lk[6], (HIDDEN, HIDDEN)), "bo": nrm(lk[7], (HIDDEN,)),
            "ln1_g": jnp.ones((HIDDEN,), jnp.float32),
            "ln1_b": jnp.zeros((HIDDEN,), jnp.float32),
            "w1": nrm(lk[8], (HIDDEN, FFN)), "b1": nrm(lk[9], (FFN,)),
            "w2": nrm(lk[10], (FFN, HIDDEN)), "b2": nrm(lk[11], (HIDDEN,)),
            "ln2_g": jnp.ones((HIDDEN,), jnp.float32),
            "ln2_b": jnp.zeros((HIDDEN,), jnp.float32),
        })
    return params


def pack_params(p):
    """Repack standard-shaped weights into the stacked, lane-dense kernel layout.

    Matmul weights are stored bf16 (MXU-native); biases / LayerNorm vectors stay f32.
    """
    H = HIDDEN
    bf16, f32 = jnp.bfloat16, jnp.float32

    wqkv, bqkv, wo, w1, b1, w2, vecs = [], [], [], [], [], [], []
    for lp in p["layers"]:
        wqkv.append(jnp.concatenate([lp["wq"], lp["wk"], lp["wv"]], axis=1))   # (H, 3H)
        bqkv.append(jnp.concatenate([lp["bq"], lp["bk"], lp["bv"]]).reshape(1, 3 * H))
        wo.append(lp["wo"])
        w1.append(lp["w1"])
        b1.append(lp["b1"].reshape(1, FFN))
        w2.append(lp["w2"])
        vecs.append(jnp.stack([lp["bo"], lp["ln1_g"], lp["ln1_b"],
                               lp["b2"], lp["ln2_g"], lp["ln2_b"]], axis=0))
    outw = jnp.zeros((H, OUT_PAD), f32).at[:, :N_CLASSES].set(p["out_w"])
    outb = jnp.zeros((1, OUT_PAD), f32).at[0, :N_CLASSES].set(p["out_b"])
    return {
        "word_emb": p["word_emb"], "pos_emb": p["pos_emb"], "type_emb": p["type_emb"],
        "embln": jnp.stack([p["emb_ln_g"], p["emb_ln_b"]], axis=0).astype(f32),
        "wqkv": jnp.stack(wqkv).astype(bf16), "bqkv": jnp.stack(bqkv).astype(f32),
        "wo": jnp.stack(wo).astype(bf16),
        "w1": jnp.stack(w1).astype(bf16), "b1": jnp.stack(b1).astype(f32),
        "w2": jnp.stack(w2).astype(bf16),
        "vecs": jnp.stack(vecs).astype(f32),
        "poolw": p["pool_w"].astype(bf16), "poolb": p["pool_b"].reshape(1, H).astype(f32),
        "outw": outw.astype(bf16), "outb": outb,
    }


# --------------------------- pure-JAX reference forward -------------------------
def reference_forward(p, input_ids, attention_mask):
    B, S = input_ids.shape
    H, NH, dh = HIDDEN, N_HEADS, HEAD_DIM
    emb = (jnp.take(p["word_emb"], input_ids, axis=0)
           + p["pos_emb"][:S][None, :, :]
           + p["type_emb"][0][None, None, :])
    x = _layernorm(emb, p["emb_ln_g"], p["emb_ln_b"])
    add_mask = ((1.0 - attention_mask.astype(jnp.float32)) * -10000.0)[:, None, None, :]
    for lp in p["layers"]:
        q = x @ lp["wq"] + lp["bq"]
        k = x @ lp["wk"] + lp["bk"]
        v = x @ lp["wv"] + lp["bv"]
        split = lambda t: t.reshape(B, S, NH, dh).transpose(0, 2, 1, 3)   # (B,NH,S,dh)
        qh, kh, vh = split(q), split(k), split(v)
        s = jnp.einsum('bhqd,bhkd->bhqk', qh, kh) / (dh ** 0.5) + add_mask
        pa = jax.nn.softmax(s, axis=-1)
        ctx = jnp.einsum('bhqk,bhkd->bhqd', pa, vh)
        ctx = ctx.transpose(0, 2, 1, 3).reshape(B, S, H)
        attn = ctx @ lp["wo"] + lp["bo"]
        h1 = _layernorm(x + attn, lp["ln1_g"], lp["ln1_b"])
        ff = jax.nn.gelu(h1 @ lp["w1"] + lp["b1"], approximate=True)
        ff = ff @ lp["w2"] + lp["b2"]
        x = _layernorm(h1 + ff, lp["ln2_g"], lp["ln2_b"])
    cls = x[:, 0, :]
    pooled = jnp.tanh(cls @ p["pool_w"] + p["pool_b"])
    return pooled @ p["out_w"] + p["out_b"]


# --------------------------------- main -----------------------------------------
if __name__ == "__main__":
    key = jax.random.PRNGKey(0)
    pkey, ikey = jax.random.split(key)
    params = init_params(pkey)
    packed = pack_params(params)

    B = 2
    input_ids = jax.random.randint(ikey, (B, SEQ), 0, VOCAB, dtype=jnp.int32)
    attention_mask = jnp.array(
        [[1] * SEQ, [1] * (SEQ - 2) + [0, 0]], dtype=jnp.int32)

    logits = rate_classifier_forward(packed, input_ids, attention_mask)
    logits = jax.block_until_ready(logits)
    assert logits.shape == (B, N_CLASSES) and logits.dtype == jnp.float32
    assert bool(jnp.all(jnp.isfinite(logits)))

    ref = reference_forward(params, input_ids, attention_mask)
    max_diff = float(jnp.max(jnp.abs(logits - ref)))
    # bf16 matmul operands (f32 accumulation) + approx softmax reciprocal => loose tolerance
    assert bool(jnp.allclose(logits, ref, rtol=2e-2, atol=5e-3)), \
        f"kernel/reference mismatch, max abs diff = {max_diff}"

    print("KERNEL_OK")
</pallas_src>

<mosaic_0001>
module attributes {stable_mosaic.version = 11 : i64} {
  func.func @fused_forward_kernel(%arg0: i32, %arg1: memref<8x32xf32, #tpu.memory_space<vmem>>, %arg2: memref<1x1x8xf32, #tpu.memory_space<vmem>>, %arg3: memref<2x32xf32, #tpu.memory_space<vmem>>, %arg4: memref<2x32x96xbf16, #tpu.memory_space<vmem>>, %arg5: memref<2x1x96xf32, #tpu.memory_space<vmem>>, %arg6: memref<2x32x32xbf16, #tpu.memory_space<vmem>>, %arg7: memref<2x32x64xbf16, #tpu.memory_space<vmem>>, %arg8: memref<2x1x64xf32, #tpu.memory_space<vmem>>, %arg9: memref<2x64x32xbf16, #tpu.memory_space<vmem>>, %arg10: memref<2x6x32xf32, #tpu.memory_space<vmem>>, %arg11: memref<32x32xbf16, #tpu.memory_space<vmem>>, %arg12: memref<1x32xf32, #tpu.memory_space<vmem>>, %arg13: memref<32x128xbf16, #tpu.memory_space<vmem>>, %arg14: memref<1x128xf32, #tpu.memory_space<vmem>>, %arg15: memref<1x1x128xf32, #tpu.memory_space<vmem>>) attributes {dimension_semantics = [#tpu.dimension_semantics<parallel>], iteration_bounds = array<i64: 2>, scalar_prefetch = 0 : i64, scratch_operands = 0 : i64, tpu.core_type = #tpu.core_type<tc>, window_params = [{transform_indices = @transform_0, window_bounds = array<i64: 8, 32>}, {transform_indices = @transform_1, window_bounds = array<i64: 1, 1, 8>}, {pipeline_mode = #tpu.pipeline_mode<synchronous>, transform_indices = @transform_2, window_bounds = array<i64: 2, 32>}, {pipeline_mode = #tpu.pipeline_mode<synchronous>, transform_indices = @transform_3, window_bounds = array<i64: 2, 32, 96>}, {pipeline_mode = #tpu.pipeline_mode<synchronous>, transform_indices = @transform_4, window_bounds = array<i64: 2, 1, 96>}, {pipeline_mode = #tpu.pipeline_mode<synchronous>, transform_indices = @transform_5, window_bounds = array<i64: 2, 32, 32>}, {pipeline_mode = #tpu.pipeline_mode<synchronous>, transform_indices = @transform_6, window_bounds = array<i64: 2, 32, 64>}, {pipeline_mode = #tpu.pipeline_mode<synchronous>, transform_indices = @transform_7, window_bounds = array<i64: 2, 1, 64>}, {pipeline_mode = #tpu.pipeline_mode<synchronous>, transform_indices = @transform_8, window_bounds = array<i64: 2, 64, 32>}, {pipeline_mode = #tpu.pipeline_mode<synchronous>, transform_indices = @transform_9, window_bounds = array<i64: 2, 6, 32>}, {pipeline_mode = #tpu.pipeline_mode<synchronous>, transform_indices = @transform_10, window_bounds = array<i64: 32, 32>}, {pipeline_mode = #tpu.pipeline_mode<synchronous>, transform_indices = @transform_11, window_bounds = array<i64: 1, 32>}, {pipeline_mode = #tpu.pipeline_mode<synchronous>, transform_indices = @transform_12, window_bounds = array<i64: 32, 128>}, {pipeline_mode = #tpu.pipeline_mode<synchronous>, transform_indices = @transform_13, window_bounds = array<i64: 1, 128>}, {transform_indices = @transform_14, window_bounds = array<i64: 1, 1, 128>}]} {
    %c0 = arith.constant 0 : index
    %c0_0 = arith.constant 0 : index
    %0 = vector.load %arg1[%c0, %c0_0] : memref<8x32xf32, #tpu.memory_space<vmem>>, vector<8x32xf32>
    %c0_1 = arith.constant 0 : index
    %c0_2 = arith.constant 0 : index
    %1 = vector.load %arg3[%c0_1, %c0_2] : memref<2x32xf32, #tpu.memory_space<vmem>>, vector<1x32xf32>
    %c1 = arith.constant 1 : index
    %c0_3 = arith.constant 0 : index
    %2 = vector.load %arg3[%c1, %c0_3] : memref<2x32xf32, #tpu.memory_space<vmem>>, vector<1x32xf32>
    %cst = arith.constant dense<0.000000e+00> : vector<8xf32>
    %3 = vector.multi_reduction <add>, %0, %cst [1] : vector<8x32xf32> to vector<8xf32>
    %4 = vector.shape_cast %3 : vector<8xf32> to vector<8x1xf32>
    %cst_4 = arith.constant 3.200000e+01 : f32
    %5 = vector.broadcast %cst_4 : f32 to vector<8x1xf32>
    %6 = arith.divf %4, %5 : vector<8x1xf32>
    %7 = vector.broadcast %6 : vector<8x1xf32> to vector<8x32xf32>
    %8 = arith.subf %0, %7 : vector<8x32xf32>
    %9 = arith.mulf %8, %8 : vector<8x32xf32>
    %cst_5 = arith.constant dense<0.000000e+00> : vector<8xf32>
    %10 = vector.multi_reduction <add>, %9, %cst_5 [1] : vector<8x32xf32> to vector<8xf32>
    %11 = vector.shape_cast %10 : vector<8xf32> to vector<8x1xf32>
    %cst_6 = arith.constant 3.200000e+01 : f32
    %12 = vector.broadcast %cst_6 : f32 to vector<8x1xf32>
    %13 = arith.divf %11, %12 : vector<8x1xf32>
    %14 = vector.broadcast %6 : vector<8x1xf32> to vector<8x32xf32>
    %15 = arith.subf %0, %14 : vector<8x32xf32>
    %cst_7 = arith.constant 9.99999996E-13 : f32
    %16 = vector.broadcast %cst_7 : f32 to vector<8x1xf32>
    %17 = arith.addf %13, %16 : vector<8x1xf32>
    %18 = math.rsqrt %17 : vector<8x1xf32>
    %19 = vector.broadcast %18 : vector<8x1xf32> to vector<8x32xf32>
    %20 = arith.mulf %15, %19 : vector<8x32xf32>
    %21 = vector.broadcast %1 : vector<1x32xf32> to vector<8x32xf32>
    %22 = arith.mulf %20, %21 : vector<8x32xf32>
    %23 = vector.broadcast %2 : vector<1x32xf32> to vector<8x32xf32>
    %24 = arith.addf %22, %23 : vector<8x32xf32>
    %c0_8 = arith.constant 0 : index
    %c0_9 = arith.constant 0 : index
    %c0_10 = arith.constant 0 : index
    %25 = vector.load %arg2[%c0_8, %c0_9, %c0_10] : memref<1x1x8xf32, #tpu.memory_space<vmem>>, vector<1x1x8xf32>
    %cst_11 = arith.constant 1.000000e+00 : f32
    %26 = vector.broadcast %cst_11 : f32 to vector<1x1x8xf32>
    %27 = arith.subf %25, %26 : vector<1x1x8xf32>
    %cst_12 = arith.constant 1.000000e+04 : f32
    %28 = vector.broadcast %cst_12 : f32 to vector<1x1x8xf32>
    %29 = arith.mulf %27, %28 : vector<1x1x8xf32>
    %c0_13 = arith.constant 0 : index
    %c0_14 = arith.constant 0 : index
    %c0_15 = arith.constant 0 : index
    %30 = vector.load %arg10[%c0_13, %c0_14, %c0_15] : memref<2x6x32xf32, #tpu.memory_space<vmem>>, vector<1x6x32xf32>
    %31 = vector.shape_cast %30 : vector<1x6x32xf32> to vector<6x32xf32>
    %32 = vector.extract_strided_slice %31 {offsets = [0, 0], sizes = [1, 32], strides = [1, 1]} : vector<6x32xf32> to vector<1x32xf32>
    %33 = vector.extract_strided_slice %31 {offsets = [1, 0], sizes = [1, 32], strides = [1, 1]} : vector<6x32xf32> to vector<1x32xf32>
    %34 = vector.extract_strided_slice %31 {offsets = [2, 0], sizes = [1, 32], strides = [1, 1]} : vector<6x32xf32> to vector<1x32xf32>
    %35 = vector.extract_strided_slice %31 {offsets = [3, 0], sizes = [1, 32], strides = [1, 1]} : vector<6x32xf32> to vector<1x32xf32>
    %36 = vector.extract_strided_slice %31 {offsets = [4, 0], sizes = [1, 32], strides = [1, 1]} : vector<6x32xf32> to vector<1x32xf32>
    %37 = vector.extract_strided_slice %31 {offsets = [5, 0], sizes = [1, 32], strides = [1, 1]} : vector<6x32xf32> to vector<1x32xf32>
    %38 = arith.truncf %24 : vector<8x32xf32> to vector<8x32xbf16>
    %c0_16 = arith.constant 0 : index
    %c0_17 = arith.constant 0 : index
    %c0_18 = arith.constant 0 : index
    %39 = vector.load %arg4[%c0_16, %c0_17, %c0_18] : memref<2x32x96xbf16, #tpu.memory_space<vmem>>, vector<1x32x96xbf16>
    %40 = vector.shape_cast %39 : vector<1x32x96xbf16> to vector<32x96xbf16>
    %cst_19 = arith.constant dense<0.000000e+00> : vector<8x96xf32>
    %41 = tpu.matmul %38, %40, %cst_19 {dimension_numbers = #tpu.dot_dimension_numbers<[1], [0], [0], [1], [0, 0, 1, 1], [], []>} : vector<8x32xbf16>, vector<32x96xbf16>, vector<8x96xf32> -> vector<8x96xf32>
    %c0_20 = arith.constant 0 : index
    %c0_21 = arith.constant 0 : index
    %c0_22 = arith.constant 0 : index
    %42 = vector.load %arg5[%c0_20, %c0_21, %c0_22] : memref<2x1x96xf32, #tpu.memory_space<vmem>>, vector<1x1x96xf32>
    %43 = vector.shape_cast %42 : vector<1x1x96xf32> to vector<1x96xf32>
    %44 = vector.broadcast %43 : vector<1x96xf32> to vector<8x96xf32>
    %45 = arith.addf %41, %44 : vector<8x96xf32>
    %46 = vector.extract_strided_slice %45 {offsets = [0, 0], sizes = [8, 8], strides = [1, 1]} : vector<8x96xf32> to vector<8x8xf32>
    %47 = vector.extract_strided_slice %45 {offsets = [0, 8], sizes = [8, 8], strides = [1, 1]} : vector<8x96xf32> to vector<8x8xf32>
    %48 = vector.extract_strided_slice %45 {offsets = [0, 16], sizes = [8, 8], strides = [1, 1]} : vector<8x96xf32> to vector<8x8xf32>
    %49 = vector.extract_strided_slice %45 {offsets = [0, 24], sizes = [8, 8], strides = [1, 1]} : vector<8x96xf32> to vector<8x8xf32>
    %50 = vector.shape_cast %46 : vector<8x8xf32> to vector<1x8x8xf32>
    %51 = vector.shape_cast %47 : vector<8x8xf32> to vector<1x8x8xf32>
    %52 = vector.shape_cast %48 : vector<8x8xf32> to vector<1x8x8xf32>
    %53 = vector.shape_cast %49 : vector<8x8xf32> to vector<1x8x8xf32>
    %54 = tpu.concatenate %50, %51, %52, %53 in 0 : vector<1x8x8xf32>, vector<1x8x8xf32>, vector<1x8x8xf32>, vector<1x8x8xf32> -> vector<4x8x8xf32>
    %55 = arith.truncf %54 : vector<4x8x8xf32> to vector<4x8x8xbf16>
    %56 = vector.extract_strided_slice %45 {offsets = [0, 32], sizes = [8, 8], strides = [1, 1]} : vector<8x96xf32> to vector<8x8xf32>
    %57 = vector.extract_strided_slice %45 {offsets = [0, 40], sizes = [8, 8], strides = [1, 1]} : vector<8x96xf32> to vector<8x8xf32>
    %58 = vector.extract_strided_slice %45 {offsets = [0, 48], sizes = [8, 8], strides = [1, 1]} : vector<8x96xf32> to vector<8x8xf32>
    %59 = vector.extract_strided_slice %45 {offsets = [0, 56], sizes = [8, 8], strides = [1, 1]} : vector<8x96xf32> to vector<8x8xf32>
    %60 = vector.shape_cast %56 : vector<8x8xf32> to vector<1x8x8xf32>
    %61 = vector.shape_cast %57 : vector<8x8xf32> to vector<1x8x8xf32>
    %62 = vector.shape_cast %58 : vector<8x8xf32> to vector<1x8x8xf32>
    %63 = vector.shape_cast %59 : vector<8x8xf32> to vector<1x8x8xf32>
    %64 = tpu.concatenate %60, %61, %62, %63 in 0 : vector<1x8x8xf32>, vector<1x8x8xf32>, vector<1x8x8xf32>, vector<1x8x8xf32> -> vector<4x8x8xf32>
    %65 = arith.truncf %64 : vector<4x8x8xf32> to vector<4x8x8xbf16>
    %66 = vector.extract_strided_slice %45 {offsets = [0, 64], sizes = [8, 8], strides = [1, 1]} : vector<8x96xf32> to vector<8x8xf32>
    %67 = vector.extract_strided_slice %45 {offsets = [0, 72], sizes = [8, 8], strides = [1, 1]} : vector<8x96xf32> to vector<8x8xf32>
    %68 = vector.extract_strided_slice %45 {offsets = [0, 80], sizes = [8, 8], strides = [1, 1]} : vector<8x96xf32> to vector<8x8xf32>
    %69 = vector.extract_strided_slice %45 {offsets = [0, 88], sizes = [8, 8], strides = [1, 1]} : vector<8x96xf32> to vector<8x8xf32>
    %70 = vector.shape_cast %66 : vector<8x8xf32> to vector<1x8x8xf32>
    %71 = vector.shape_cast %67 : vector<8x8xf32> to vector<1x8x8xf32>
    %72 = vector.shape_cast %68 : vector<8x8xf32> to vector<1x8x8xf32>
    %73 = vector.shape_cast %69 : vector<8x8xf32> to vector<1x8x8xf32>
    %74 = tpu.concatenate %70, %71, %72, %73 in 0 : vector<1x8x8xf32>, vector<1x8x8xf32>, vector<1x8x8xf32>, vector<1x8x8xf32> -> vector<4x8x8xf32>
    %75 = arith.truncf %74 : vector<4x8x8xf32> to vector<4x8x8xbf16>
    "tpu.trace_start"() <{level = 10 : i32, message = "hqd,hkd->hqk"}> : () -> ()
    %cst_23 = arith.constant dense<0.000000e+00> : vector<4x8x8xf32>
    %76 = tpu.matmul %55, %65, %cst_23 {dimension_numbers = #tpu.dot_dimension_numbers<[2], [2], [1], [1], [0, 0, 0, 1, 1, 1], [0], [0]>} : vector<4x8x8xbf16>, vector<4x8x8xbf16>, vector<4x8x8xf32> -> vector<4x8x8xf32>
    "tpu.trace_stop"() : () -> ()
    %cst_24 = arith.constant 0.353553385 : f32
    %77 = vector.broadcast %cst_24 : f32 to vector<4x8x8xf32>
    %78 = arith.mulf %76, %77 : vector<4x8x8xf32>
    %79 = vector.shape_cast %29 : vector<1x1x8xf32> to vector<1x8xf32>
    %80 = vector.shape_cast %79 : vector<1x8xf32> to vector<1x1x8xf32>
    %81 = vector.broadcast %80 : vector<1x1x8xf32> to vector<4x8x8xf32>
    %82 = arith.addf %78, %81 : vector<4x8x8xf32>
    %cst_25 = arith.constant dense<0xFF800000> : vector<4x8xf32>
    %83 = vector.multi_reduction <maximumf>, %82, %cst_25 [2] : vector<4x8x8xf32> to vector<4x8xf32>
    %84 = vector.shape_cast %83 : vector<4x8xf32> to vector<4x8x1xf32>
    %85 = vector.broadcast %84 : vector<4x8x1xf32> to vector<4x8x8xf32>
    %86 = arith.subf %82, %85 : vector<4x8x8xf32>
    %87 = math.exp %86 : vector<4x8x8xf32>
    %cst_26 = arith.constant dense<0.000000e+00> : vector<4x8xf32>
    %88 = vector.multi_reduction <add>, %87, %cst_26 [2] : vector<4x8x8xf32> to vector<4x8xf32>
    %89 = vector.shape_cast %88 : vector<4x8xf32> to vector<4x8x1xf32>
    %90 = tpu.reciprocal %89 {approx = true} : vector<4x8x1xf32> -> vector<4x8x1xf32>
    %91 = vector.broadcast %90 : vector<4x8x1xf32> to vector<4x8x8xf32>
    %92 = arith.mulf %87, %91 : vector<4x8x8xf32>
    %93 = arith.truncf %92 : vector<4x8x8xf32> to vector<4x8x8xbf16>
    "tpu.trace_start"() <{level = 10 : i32, message = "hqk,hkd->hqd"}> : () -> ()
    %cst_27 = arith.constant dense<0.000000e+00> : vector<4x8x8xf32>
    %94 = tpu.matmul %93, %75, %cst_27 {dimension_numbers = #tpu.dot_dimension_numbers<[2], [1], [1], [2], [0, 0, 0, 1, 1, 2], [0], [0]>} : vector<4x8x8xbf16>, vector<4x8x8xbf16>, vector<4x8x8xf32> -> vector<4x8x8xf32>
    "tpu.trace_stop"() : () -> ()
    %95 = vector.extract_strided_slice %94 {offsets = [0, 0, 0], sizes = [1, 8, 8], strides = [1, 1, 1]} : vector<4x8x8xf32> to vector<1x8x8xf32>
    %96 = vector.shape_cast %95 : vector<1x8x8xf32> to vector<8x8xf32>
    %97 = vector.extract_strided_slice %94 {offsets = [1, 0, 0], sizes = [1, 8, 8], strides = [1, 1, 1]} : vector<4x8x8xf32> to vector<1x8x8xf32>
    %98 = vector.shape_cast %97 : vector<1x8x8xf32> to vector<8x8xf32>
    %99 = vector.extract_strided_slice %94 {offsets = [2, 0, 0], sizes = [1, 8, 8], strides = [1, 1, 1]} : vector<4x8x8xf32> to vector<1x8x8xf32>
    %100 = vector.shape_cast %99 : vector<1x8x8xf32> to vector<8x8xf32>
    %101 = vector.extract_strided_slice %94 {offsets = [3, 0, 0], sizes = [1, 8, 8], strides = [1, 1, 1]} : vector<4x8x8xf32> to vector<1x8x8xf32>
    %102 = vector.shape_cast %101 : vector<1x8x8xf32> to vector<8x8xf32>
    %103 = tpu.concatenate %96, %98, %100, %102 in 1 : vector<8x8xf32>, vector<8x8xf32>, vector<8x8xf32>, vector<8x8xf32> -> vector<8x32xf32>
    %104 = arith.truncf %103 : vector<8x32xf32> to vector<8x32xbf16>
    %c0_28 = arith.constant 0 : index
    %c0_29 = arith.constant 0 : index
    %c0_30 = arith.constant 0 : index
    %105 = vector.load %arg6[%c0_28, %c0_29, %c0_30] : memref<2x32x32xbf16, #tpu.memory_space<vmem>>, vector<1x32x32xbf16>
    %106 = vector.shape_cast %105 : vector<1x32x32xbf16> to vector<32x32xbf16>
    %cst_31 = arith.constant dense<0.000000e+00> : vector<8x32xf32>
    %107 = tpu.matmul %104, %106, %cst_31 {dimension_numbers = #tpu.dot_dimension_numbers<[1], [0], [0], [1], [0, 0, 1, 1], [], []>} : vector<8x32xbf16>, vector<32x32xbf16>, vector<8x32xf32> -> vector<8x32xf32>
    %108 = vector.broadcast %32 : vector<1x32xf32> to vector<8x32xf32>
    %109 = arith.addf %107, %108 : vector<8x32xf32>
    %110 = arith.addf %24, %109 : vector<8x32xf32>
    %cst_32 = arith.constant dense<0.000000e+00> : vector<8xf32>
    %111 = vector.multi_reduction <add>, %110, %cst_32 [1] : vector<8x32xf32> to vector<8xf32>
    %112 = vector.shape_cast %111 : vector<8xf32> to vector<8x1xf32>
    %cst_33 = arith.constant 3.200000e+01 : f32
    %113 = vector.broadcast %cst_33 : f32 to vector<8x1xf32>
    %114 = arith.divf %112, %113 : vector<8x1xf32>
    %115 = vector.broadcast %114 : vector<8x1xf32> to vector<8x32xf32>
    %116 = arith.subf %110, %115 : vector<8x32xf32>
    %117 = arith.mulf %116, %116 : vector<8x32xf32>
    %cst_34 = arith.constant dense<0.000000e+00> : vector<8xf32>
    %118 = vector.multi_reduction <add>, %117, %cst_34 [1] : vector<8x32xf32> to vector<8xf32>
    %119 = vector.shape_cast %118 : vector<8xf32> to vector<8x1xf32>
    %cst_35 = arith.constant 3.200000e+01 : f32
    %120 = vector.broadcast %cst_35 : f32 to vector<8x1xf32>
    %121 = arith.divf %119, %120 : vector<8x1xf32>
    %122 = vector.broadcast %114 : vector<8x1xf32> to vector<8x32xf32>
    %123 = arith.subf %110, %122 : vector<8x32xf32>
    %cst_36 = arith.constant 9.99999996E-13 : f32
    %124 = vector.broadcast %cst_36 : f32 to vector<8x1xf32>
    %125 = arith.addf %121, %124 : vector<8x1xf32>
    %126 = math.rsqrt %125 : vector<8x1xf32>
    %127 = vector.broadcast %126 : vector<8x1xf32> to vector<8x32xf32>
    %128 = arith.mulf %123, %127 : vector<8x32xf32>
    %129 = vector.broadcast %33 : vector<1x32xf32> to vector<8x32xf32>
    %130 = arith.mulf %128, %129 : vector<8x32xf32>
    %131 = vector.broadcast %34 : vector<1x32xf32> to vector<8x32xf32>
    %132 = arith.addf %130, %131 : vector<8x32xf32>
    %133 = arith.truncf %132 : vector<8x32xf32> to vector<8x32xbf16>
    %c0_37 = arith.constant 0 : index
    %c0_38 = arith.constant 0 : index
    %c0_39 = arith.constant 0 : index
    %134 = vector.load %arg7[%c0_37, %c0_38, %c0_39] : memref<2x32x64xbf16, #tpu.memory_space<vmem>>, vector<1x32x64xbf16>
    %135 = vector.shape_cast %134 : vector<1x32x64xbf16> to vector<32x64xbf16>
    %cst_40 = arith.constant dense<0.000000e+00> : vector<8x64xf32>
    %136 = tpu.matmul %133, %135, %cst_40 {dimension_numbers = #tpu.dot_dimension_numbers<[1], [0], [0], [1], [0, 0, 1, 1], [], []>} : vector<8x32xbf16>, vector<32x64xbf16>, vector<8x64xf32> -> vector<8x64xf32>
    %c0_41 = arith.constant 0 : index
    %c0_42 = arith.constant 0 : index
    %c0_43 = arith.constant 0 : index
    %137 = vector.load %arg8[%c0_41, %c0_42, %c0_43] : memref<2x1x64xf32, #tpu.memory_space<vmem>>, vector<1x1x64xf32>
    %138 = vector.shape_cast %137 : vector<1x1x64xf32> to vector<1x64xf32>
    %139 = vector.broadcast %138 : vector<1x64xf32> to vector<8x64xf32>
    %140 = arith.addf %136, %139 : vector<8x64xf32>
    %141 = arith.mulf %140, %140 : vector<8x64xf32>
    %142 = arith.mulf %140, %141 : vector<8x64xf32>
    %cst_44 = arith.constant 4.471500e-02 : f32
    %143 = vector.broadcast %cst_44 : f32 to vector<8x64xf32>
    %144 = arith.mulf %143, %142 : vector<8x64xf32>
    %145 = arith.addf %140, %144 : vector<8x64xf32>
    %cst_45 = arith.constant 0.797884583 : f32
    %146 = vector.broadcast %cst_45 : f32 to vector<8x64xf32>
    %147 = arith.mulf %146, %145 : vector<8x64xf32>
    %148 = math.tanh %147 : vector<8x64xf32>
    %cst_46 = arith.constant 1.000000e+00 : f32
    %149 = vector.broadcast %cst_46 : f32 to vector<8x64xf32>
    %150 = arith.addf %149, %148 : vector<8x64xf32>
    %cst_47 = arith.constant 5.000000e-01 : f32
    %151 = vector.broadcast %cst_47 : f32 to vector<8x64xf32>
    %152 = arith.mulf %151, %150 : vector<8x64xf32>
    %153 = arith.mulf %140, %152 : vector<8x64xf32>
    %154 = arith.truncf %153 : vector<8x64xf32> to vector<8x64xbf16>
    %c0_48 = arith.constant 0 : index
    %c0_49 = arith.constant 0 : index
    %c0_50 = arith.constant 0 : index
    %155 = vector.load %arg9[%c0_48, %c0_49, %c0_50] : memref<2x64x32xbf16, #tpu.memory_space<vmem>>, vector<1x64x32xbf16>
    %156 = vector.shape_cast %155 : vector<1x64x32xbf16> to vector<64x32xbf16>
    %cst_51 = arith.constant dense<0.000000e+00> : vector<8x32xf32>
    %157 = tpu.matmul %154, %156, %cst_51 {dimension_numbers = #tpu.dot_dimension_numbers<[1], [0], [0], [1], [0, 0, 1, 1], [], []>} : vector<8x64xbf16>, vector<64x32xbf16>, vector<8x32xf32> -> vector<8x32xf32>
    %158 = vector.broadcast %35 : vector<1x32xf32> to vector<8x32xf32>
    %159 = arith.addf %157, %158 : vector<8x32xf32>
    %160 = arith.addf %132, %159 : vector<8x32xf32>
    %cst_52 = arith.constant dense<0.000000e+00> : vector<8xf32>
    %161 = vector.multi_reduction <add>, %160, %cst_52 [1] : vector<8x32xf32> to vector<8xf32>
    %162 = vector.shape_cast %161 : vector<8xf32> to vector<8x1xf32>
    %cst_53 = arith.constant 3.200000e+01 : f32
    %163 = vector.broadcast %cst_53 : f32 to vector<8x1xf32>
    %164 = arith.divf %162, %163 : vector<8x1xf32>
    %165 = vector.broadcast %164 : vector<8x1xf32> to vector<8x32xf32>
    %166 = arith.subf %160, %165 : vector<8x32xf32>
    %167 = arith.mulf %166, %166 : vector<8x32xf32>
    %cst_54 = arith.constant dense<0.000000e+00> : vector<8xf32>
    %168 = vector.multi_reduction <add>, %167, %cst_54 [1] : vector<8x32xf32> to vector<8xf32>
    %169 = vector.shape_cast %168 : vector<8xf32> to vector<8x1xf32>
    %cst_55 = arith.constant 3.200000e+01 : f32
    %170 = vector.broadcast %cst_55 : f32 to vector<8x1xf32>
    %171 = arith.divf %169, %170 : vector<8x1xf32>
    %172 = vector.broadcast %164 : vector<8x1xf32> to vector<8x32xf32>
    %173 = arith.subf %160, %172 : vector<8x32xf32>
    %cst_56 = arith.constant 9.99999996E-13 : f32
    %174 = vector.broadcast %cst_56 : f32 to vector<8x1xf32>
    %175 = arith.addf %171, %174 : vector<8x1xf32>
    %176 = math.rsqrt %175 : vector<8x1xf32>
    %177 = vector.broadcast %176 : vector<8x1xf32> to vector<8x32xf32>
    %178 = arith.mulf %173, %177 : vector<8x32xf32>
    %179 = vector.broadcast %36 : vector<1x32xf32> to vector<8x32xf32>
    %180 = arith.mulf %178, %179 : vector<8x32xf32>
    %181 = vector.broadcast %37 : vector<1x32xf32> to vector<8x32xf32>
    %182 = arith.addf %180, %181 : vector<8x32xf32>
    %c1_57 = arith.constant 1 : index
    %c0_58 = arith.constant 0 : index
    %c0_59 = arith.constant 0 : index
    %183 = vector.load %arg10[%c1_57, %c0_58, %c0_59] : memref<2x6x32xf32, #tpu.memory_space<vmem>>, vector<1x6x32xf32>
    %184 = vector.shape_cast %183 : vector<1x6x32xf32> to vector<6x32xf32>
    %185 = vector.extract_strided_slice %184 {offsets = [0, 0], sizes = [1, 32], strides = [1, 1]} : vector<6x32xf32> to vector<1x32xf32>
    %186 = vector.extract_strided_slice %184 {offsets = [1, 0], sizes = [1, 32], strides = [1, 1]} : vector<6x32xf32> to vector<1x32xf32>
    %187 = vector.extract_strided_slice %184 {offsets = [2, 0], sizes = [1, 32], strides = [1, 1]} : vector<6x32xf32> to vector<1x32xf32>
    %188 = vector.extract_strided_slice %184 {offsets = [3, 0], sizes = [1, 32], strides = [1, 1]} : vector<6x32xf32> to vector<1x32xf32>
    %189 = vector.extract_strided_slice %184 {offsets = [4, 0], sizes = [1, 32], strides = [1, 1]} : vector<6x32xf32> to vector<1x32xf32>
    %190 = vector.extract_strided_slice %184 {offsets = [5, 0], sizes = [1, 32], strides = [1, 1]} : vector<6x32xf32> to vector<1x32xf32>
    %191 = arith.truncf %182 : vector<8x32xf32> to vector<8x32xbf16>
    %c1_60 = arith.constant 1 : index
    %c0_61 = arith.constant 0 : index
    %c0_62 = arith.constant 0 : index
    %192 = vector.load %arg4[%c1_60, %c0_61, %c0_62] : memref<2x32x96xbf16, #tpu.memory_space<vmem>>, vector<1x32x96xbf16>
    %193 = vector.shape_cast %192 : vector<1x32x96xbf16> to vector<32x96xbf16>
    %cst_63 = arith.constant dense<0.000000e+00> : vector<8x96xf32>
    %194 = tpu.matmul %191, %193, %cst_63 {dimension_numbers = #tpu.dot_dimension_numbers<[1], [0], [0], [1], [0, 0, 1, 1], [], []>} : vector<8x32xbf16>, vector<32x96xbf16>, vector<8x96xf32> -> vector<8x96xf32>
    %c1_64 = arith.constant 1 : index
    %c0_65 = arith.constant 0 : index
    %c0_66 = arith.constant 0 : index
    %195 = vector.load %arg5[%c1_64, %c0_65, %c0_66] : memref<2x1x96xf32, #tpu.memory_space<vmem>>, vector<1x1x96xf32>
    %196 = vector.shape_cast %195 : vector<1x1x96xf32> to vector<1x96xf32>
    %197 = vector.broadcast %196 : vector<1x96xf32> to vector<8x96xf32>
    %198 = arith.addf %194, %197 : vector<8x96xf32>
    %199 = vector.extract_strided_slice %198 {offsets = [0, 0], sizes = [8, 8], strides = [1, 1]} : vector<8x96xf32> to vector<8x8xf32>
    %200 = vector.extract_strided_slice %198 {offsets = [0, 8], sizes = [8, 8], strides = [1, 1]} : vector<8x96xf32> to vector<8x8xf32>
    %201 = vector.extract_strided_slice %198 {offsets = [0, 16], sizes = [8, 8], strides = [1, 1]} : vector<8x96xf32> to vector<8x8xf32>
    %202 = vector.extract_strided_slice %198 {offsets = [0, 24], sizes = [8, 8], strides = [1, 1]} : vector<8x96xf32> to vector<8x8xf32>
    %203 = vector.shape_cast %199 : vector<8x8xf32> to vector<1x8x8xf32>
    %204 = vector.shape_cast %200 : vector<8x8xf32> to vector<1x8x8xf32>
    %205 = vector.shape_cast %201 : vector<8x8xf32> to vector<1x8x8xf32>
    %206 = vector.shape_cast %202 : vector<8x8xf32> to vector<1x8x8xf32>
    %207 = tpu.concatenate %203, %204, %205, %206 in 0 : vector<1x8x8xf32>, vector<1x8x8xf32>, vector<1x8x8xf32>, vector<1x8x8xf32> -> vector<4x8x8xf32>
    %208 = arith.truncf %207 : vector<4x8x8xf32> to vector<4x8x8xbf16>
    %209 = vector.extract_strided_slice %198 {offsets = [0, 32], sizes = [8, 8], strides = [1, 1]} : vector<8x96xf32> to vector<8x8xf32>
    %210 = vector.extract_strided_slice %198 {offsets = [0, 40], sizes = [8, 8], strides = [1, 1]} : vector<8x96xf32> to vector<8x8xf32>
    %211 = vector.extract_strided_slice %198 {offsets = [0, 48], sizes = [8, 8], strides = [1, 1]} : vector<8x96xf32> to vector<8x8xf32>
    %212 = vector.extract_strided_slice %198 {offsets = [0, 56], sizes = [8, 8], strides = [1, 1]} : vector<8x96xf32> to vector<8x8xf32>
    %213 = vector.shape_cast %209 : vector<8x8xf32> to vector<1x8x8xf32>
    %214 = vector.shape_cast %210 : vector<8x8xf32> to vector<1x8x8xf32>
    %215 = vector.shape_cast %211 : vector<8x8xf32> to vector<1x8x8xf32>
    %216 = vector.shape_cast %212 : vector<8x8xf32> to vector<1x8x8xf32>
    %217 = tpu.concatenate %213, %214, %215, %216 in 0 : vector<1x8x8xf32>, vector<1x8x8xf32>, vector<1x8x8xf32>, vector<1x8x8xf32> -> vector<4x8x8xf32>
    %218 = arith.truncf %217 : vector<4x8x8xf32> to vector<4x8x8xbf16>
    %219 = vector.extract_strided_slice %198 {offsets = [0, 64], sizes = [8, 8], strides = [1, 1]} : vector<8x96xf32> to vector<8x8xf32>
    %220 = vector.extract_strided_slice %198 {offsets = [0, 72], sizes = [8, 8], strides = [1, 1]} : vector<8x96xf32> to vector<8x8xf32>
    %221 = vector.extract_strided_slice %198 {offsets = [0, 80], sizes = [8, 8], strides = [1, 1]} : vector<8x96xf32> to vector<8x8xf32>
    %222 = vector.extract_strided_slice %198 {offsets = [0, 88], sizes = [8, 8], strides = [1, 1]} : vector<8x96xf32> to vector<8x8xf32>
    %223 = vector.shape_cast %219 : vector<8x8xf32> to vector<1x8x8xf32>
    %224 = vector.shape_cast %220 : vector<8x8xf32> to vector<1x8x8xf32>
    %225 = vector.shape_cast %221 : vector<8x8xf32> to vector<1x8x8xf32>
    %226 = vector.shape_cast %222 : vector<8x8xf32> to vector<1x8x8xf32>
    %227 = tpu.concatenate %223, %224, %225, %226 in 0 : vector<1x8x8xf32>, vector<1x8x8xf32>, vector<1x8x8xf32>, vector<1x8x8xf32> -> vector<4x8x8xf32>
    %228 = arith.truncf %227 : vector<4x8x8xf32> to vector<4x8x8xbf16>
    "tpu.trace_start"() <{level = 10 : i32, message = "hqd,hkd->hqk"}> : () -> ()
    %cst_67 = arith.constant dense<0.000000e+00> : vector<4x8x8xf32>
    %229 = tpu.matmul %208, %218, %cst_67 {dimension_numbers = #tpu.dot_dimension_numbers<[2], [2], [1], [1], [0, 0, 0, 1, 1, 1], [0], [0]>} : vector<4x8x8xbf16>, vector<4x8x8xbf16>, vector<4x8x8xf32> -> vector<4x8x8xf32>
    "tpu.trace_stop"() : () -> ()
    %cst_68 = arith.constant 0.353553385 : f32
    %230 = vector.broadcast %cst_68 : f32 to vector<4x8x8xf32>
    %231 = arith.mulf %229, %230 : vector<4x8x8xf32>
    %232 = vector.shape_cast %29 : vector<1x1x8xf32> to vector<1x8xf32>
    %233 = vector.shape_cast %232 : vector<1x8xf32> to vector<1x1x8xf32>
    %234 = vector.broadcast %233 : vector<1x1x8xf32> to vector<4x8x8xf32>
    %235 = arith.addf %231, %234 : vector<4x8x8xf32>
    %cst_69 = arith.constant dense<0xFF800000> : vector<4x8xf32>
    %236 = vector.multi_reduction <maximumf>, %235, %cst_69 [2] : vector<4x8x8xf32> to vector<4x8xf32>
    %237 = vector.shape_cast %236 : vector<4x8xf32> to vector<4x8x1xf32>
    %238 = vector.broadcast %237 : vector<4x8x1xf32> to vector<4x8x8xf32>
    %239 = arith.subf %235, %238 : vector<4x8x8xf32>
    %240 = math.exp %239 : vector<4x8x8xf32>
    %cst_70 = arith.constant dense<0.000000e+00> : vector<4x8xf32>
    %241 = vector.multi_reduction <add>, %240, %cst_70 [2] : vector<4x8x8xf32> to vector<4x8xf32>
    %242 = vector.shape_cast %241 : vector<4x8xf32> to vector<4x8x1xf32>
    %243 = tpu.reciprocal %242 {approx = true} : vector<4x8x1xf32> -> vector<4x8x1xf32>
    %244 = vector.broadcast %243 : vector<4x8x1xf32> to vector<4x8x8xf32>
    %245 = arith.mulf %240, %244 : vector<4x8x8xf32>
    %246 = arith.truncf %245 : vector<4x8x8xf32> to vector<4x8x8xbf16>
    "tpu.trace_start"() <{level = 10 : i32, message = "hqk,hkd->hqd"}> : () -> ()
    %cst_71 = arith.constant dense<0.000000e+00> : vector<4x8x8xf32>
    %247 = tpu.matmul %246, %228, %cst_71 {dimension_numbers = #tpu.dot_dimension_numbers<[2], [1], [1], [2], [0, 0, 0, 1, 1, 2], [0], [0]>} : vector<4x8x8xbf16>, vector<4x8x8xbf16>, vector<4x8x8xf32> -> vector<4x8x8xf32>
    "tpu.trace_stop"() : () -> ()
    %248 = vector.extract_strided_slice %247 {offsets = [0, 0, 0], sizes = [1, 8, 8], strides = [1, 1, 1]} : vector<4x8x8xf32> to vector<1x8x8xf32>
    %249 = vector.shape_cast %248 : vector<1x8x8xf32> to vector<8x8xf32>
    %250 = vector.extract_strided_slice %247 {offsets = [1, 0, 0], sizes = [1, 8, 8], strides = [1, 1, 1]} : vector<4x8x8xf32> to vector<1x8x8xf32>
    %251 = vector.shape_cast %250 : vector<1x8x8xf32> to vector<8x8xf32>
    %252 = vector.extract_strided_slice %247 {offsets = [2, 0, 0], sizes = [1, 8, 8], strides = [1, 1, 1]} : vector<4x8x8xf32> to vector<1x8x8xf32>
    %253 = vector.shape_cast %252 : vector<1x8x8xf32> to vector<8x8xf32>
    %254 = vector.extract_strided_slice %247 {offsets = [3, 0, 0], sizes = [1, 8, 8], strides = [1, 1, 1]} : vector<4x8x8xf32> to vector<1x8x8xf32>
    %255 = vector.shape_cast %254 : vector<1x8x8xf32> to vector<8x8xf32>
    %256 = tpu.concatenate %249, %251, %253, %255 in 1 : vector<8x8xf32>, vector<8x8xf32>, vector<8x8xf32>, vector<8x8xf32> -> vector<8x32xf32>
    %257 = arith.truncf %256 : vector<8x32xf32> to vector<8x32xbf16>
    %c1_72 = arith.constant 1 : index
    %c0_73 = arith.constant 0 : index
    %c0_74 = arith.constant 0 : index
    %258 = vector.load %arg6[%c1_72, %c0_73, %c0_74] : memref<2x32x32xbf16, #tpu.memory_space<vmem>>, vector<1x32x32xbf16>
    %259 = vector.shape_cast %258 : vector<1x32x32xbf16> to vector<32x32xbf16>
    %cst_75 = arith.constant dense<0.000000e+00> : vector<8x32xf32>
    %260 = tpu.matmul %257, %259, %cst_75 {dimension_numbers = #tpu.dot_dimension_numbers<[1], [0], [0], [1], [0, 0, 1, 1], [], []>} : vector<8x32xbf16>, vector<32x32xbf16>, vector<8x32xf32> -> vector<8x32xf32>
    %261 = vector.broadcast %185 : vector<1x32xf32> to vector<8x32xf32>
    %262 = arith.addf %260, %261 : vector<8x32xf32>
    %263 = arith.addf %182, %262 : vector<8x32xf32>
    %cst_76 = arith.constant dense<0.000000e+00> : vector<8xf32>
    %264 = vector.multi_reduction <add>, %263, %cst_76 [1] : vector<8x32xf32> to vector<8xf32>
    %265 = vector.shape_cast %264 : vector<8xf32> to vector<8x1xf32>
    %cst_77 = arith.constant 3.200000e+01 : f32
    %266 = vector.broadcast %cst_77 : f32 to vector<8x1xf32>
    %267 = arith.divf %265, %266 : vector<8x1xf32>
    %268 = vector.broadcast %267 : vector<8x1xf32> to vector<8x32xf32>
    %269 = arith.subf %263, %268 : vector<8x32xf32>
    %270 = arith.mulf %269, %269 : vector<8x32xf32>
    %cst_78 = arith.constant dense<0.000000e+00> : vector<8xf32>
    %271 = vector.multi_reduction <add>, %270, %cst_78 [1] : vector<8x32xf32> to vector<8xf32>
    %272 = vector.shape_cast %271 : vector<8xf32> to vector<8x1xf32>
    %cst_79 = arith.constant 3.200000e+01 : f32
    %273 = vector.broadcast %cst_79 : f32 to vector<8x1xf32>
    %274 = arith.divf %272, %273 : vector<8x1xf32>
    %275 = vector.broadcast %267 : vector<8x1xf32> to vector<8x32xf32>
    %276 = arith.subf %263, %275 : vector<8x32xf32>
    %cst_80 = arith.constant 9.99999996E-13 : f32
    %277 = vector.broadcast %cst_80 : f32 to vector<8x1xf32>
    %278 = arith.addf %274, %277 : vector<8x1xf32>
    %279 = math.rsqrt %278 : vector<8x1xf32>
    %280 = vector.broadcast %279 : vector<8x1xf32> to vector<8x32xf32>
    %281 = arith.mulf %276, %280 : vector<8x32xf32>
    %282 = vector.broadcast %186 : vector<1x32xf32> to vector<8x32xf32>
    %283 = arith.mulf %281, %282 : vector<8x32xf32>
    %284 = vector.broadcast %187 : vector<1x32xf32> to vector<8x32xf32>
    %285 = arith.addf %283, %284 : vector<8x32xf32>
    %286 = arith.truncf %285 : vector<8x32xf32> to vector<8x32xbf16>
    %c1_81 = arith.constant 1 : index
    %c0_82 = arith.constant 0 : index
    %c0_83 = arith.constant 0 : index
    %287 = vector.load %arg7[%c1_81, %c0_82, %c0_83] : memref<2x32x64xbf16, #tpu.memory_space<vmem>>, vector<1x32x64xbf16>
    %288 = vector.shape_cast %287 : vector<1x32x64xbf16> to vector<32x64xbf16>
    %cst_84 = arith.constant dense<0.000000e+00> : vector<8x64xf32>
    %289 = tpu.matmul %286, %288, %cst_84 {dimension_numbers = #tpu.dot_dimension_numbers<[1], [0], [0], [1], [0, 0, 1, 1], [], []>} : vector<8x32xbf16>, vector<32x64xbf16>, vector<8x64xf32> -> vector<8x64xf32>
    %c1_85 = arith.constant 1 : index
    %c0_86 = arith.constant 0 : index
    %c0_87 = arith.constant 0 : index
    %290 = vector.load %arg8[%c1_85, %c0_86, %c0_87] : memref<2x1x64xf32, #tpu.memory_space<vmem>>, vector<1x1x64xf32>
    %291 = vector.shape_cast %290 : vector<1x1x64xf32> to vector<1x64xf32>
    %292 = vector.broadcast %291 : vector<1x64xf32> to vector<8x64xf32>
    %293 = arith.addf %289, %292 : vector<8x64xf32>
    %294 = arith.mulf %293, %293 : vector<8x64xf32>
    %295 = arith.mulf %293, %294 : vector<8x64xf32>
    %cst_88 = arith.constant 4.471500e-02 : f32
    %296 = vector.broadcast %cst_88 : f32 to vector<8x64xf32>
    %297 = arith.mulf %296, %295 : vector<8x64xf32>
    %298 = arith.addf %293, %297 : vector<8x64xf32>
    %cst_89 = arith.constant 0.797884583 : f32
    %299 = vector.broadcast %cst_89 : f32 to vector<8x64xf32>
    %300 = arith.mulf %299, %298 : vector<8x64xf32>
    %301 = math.tanh %300 : vector<8x64xf32>
    %cst_90 = arith.constant 1.000000e+00 : f32
    %302 = vector.broadcast %cst_90 : f32 to vector<8x64xf32>
    %303 = arith.addf %302, %301 : vector<8x64xf32>
    %cst_91 = arith.constant 5.000000e-01 : f32
    %304 = vector.broadcast %cst_91 : f32 to vector<8x64xf32>
    %305 = arith.mulf %304, %303 : vector<8x64xf32>
    %306 = arith.mulf %293, %305 : vector<8x64xf32>
    %307 = arith.truncf %306 : vector<8x64xf32> to vector<8x64xbf16>
    %c1_92 = arith.constant 1 : index
    %c0_93 = arith.constant 0 : index
    %c0_94 = arith.constant 0 : index
    %308 = vector.load %arg9[%c1_92, %c0_93, %c0_94] : memref<2x64x32xbf16, #tpu.memory_space<vmem>>, vector<1x64x32xbf16>
    %309 = vector.shape_cast %308 : vector<1x64x32xbf16> to vector<64x32xbf16>
    %cst_95 = arith.constant dense<0.000000e+00> : vector<8x32xf32>
    %310 = tpu.matmul %307, %309, %cst_95 {dimension_numbers = #tpu.dot_dimension_numbers<[1], [0], [0], [1], [0, 0, 1, 1], [], []>} : vector<8x64xbf16>, vector<64x32xbf16>, vector<8x32xf32> -> vector<8x32xf32>
    %311 = vector.broadcast %188 : vector<1x32xf32> to vector<8x32xf32>
    %312 = arith.addf %310, %311 : vector<8x32xf32>
    %313 = arith.addf %285, %312 : vector<8x32xf32>
    %cst_96 = arith.constant dense<0.000000e+00> : vector<8xf32>
    %314 = vector.multi_reduction <add>, %313, %cst_96 [1] : vector<8x32xf32> to vector<8xf32>
    %315 = vector.shape_cast %314 : vector<8xf32> to vector<8x1xf32>
    %cst_97 = arith.constant 3.200000e+01 : f32
    %316 = vector.broadcast %cst_97 : f32 to vector<8x1xf32>
    %317 = arith.divf %315, %316 : vector<8x1xf32>
    %318 = vector.broadcast %317 : vector<8x1xf32> to vector<8x32xf32>
    %319 = arith.subf %313, %318 : vector<8x32xf32>
    %320 = arith.mulf %319, %319 : vector<8x32xf32>
    %cst_98 = arith.constant dense<0.000000e+00> : vector<8xf32>
    %321 = vector.multi_reduction <add>, %320, %cst_98 [1] : vector<8x32xf32> to vector<8xf32>
    %322 = vector.shape_cast %321 : vector<8xf32> to vector<8x1xf32>
    %cst_99 = arith.constant 3.200000e+01 : f32
    %323 = vector.broadcast %cst_99 : f32 to vector<8x1xf32>
    %324 = arith.divf %322, %323 : vector<8x1xf32>
    %325 = vector.broadcast %317 : vector<8x1xf32> to vector<8x32xf32>
    %326 = arith.subf %313, %325 : vector<8x32xf32>
    %cst_100 = arith.constant 9.99999996E-13 : f32
    %327 = vector.broadcast %cst_100 : f32 to vector<8x1xf32>
    %328 = arith.addf %324, %327 : vector<8x1xf32>
    %329 = math.rsqrt %328 : vector<8x1xf32>
    %330 = vector.broadcast %329 : vector<8x1xf32> to vector<8x32xf32>
    %331 = arith.mulf %326, %330 : vector<8x32xf32>
    %332 = vector.broadcast %189 : vector<1x32xf32> to vector<8x32xf32>
    %333 = arith.mulf %331, %332 : vector<8x32xf32>
    %334 = vector.broadcast %190 : vector<1x32xf32> to vector<8x32xf32>
    %335 = arith.addf %333, %334 : vector<8x32xf32>
    %336 = vector.extract_strided_slice %335 {offsets = [0, 0], sizes = [1, 32], strides = [1, 1]} : vector<8x32xf32> to vector<1x32xf32>
    %337 = arith.truncf %336 : vector<1x32xf32> to vector<1x32xbf16>
    %c0_101 = arith.constant 0 : index
    %c0_102 = arith.constant 0 : index
    %338 = vector.load %arg11[%c0_101, %c0_102] : memref<32x32xbf16, #tpu.memory_space<vmem>>, vector<32x32xbf16>
    %cst_103 = arith.constant dense<0.000000e+00> : vector<1x32xf32>
    %339 = tpu.matmul %337, %338, %cst_103 {dimension_numbers = #tpu.dot_dimension_numbers<[1], [0], [0], [1], [0, 0, 1, 1], [], []>} : vector<1x32xbf16>, vector<32x32xbf16>, vector<1x32xf32> -> vector<1x32xf32>
    %c0_104 = arith.constant 0 : index
    %c0_105 = arith.constant 0 : index
    %340 = vector.load %arg12[%c0_104, %c0_105] : memref<1x32xf32, #tpu.memory_space<vmem>>, vector<1x32xf32>
    %341 = arith.addf %339, %340 : vector<1x32xf32>
    %342 = math.tanh %341 : vector<1x32xf32>
    %343 = arith.truncf %342 : vector<1x32xf32> to vector<1x32xbf16>
    %c0_106 = arith.constant 0 : index
    %c0_107 = arith.constant 0 : index
    %344 = vector.load %arg13[%c0_106, %c0_107] : memref<32x128xbf16, #tpu.memory_space<vmem>>, vector<32x128xbf16>
    %cst_108 = arith.constant dense<0.000000e+00> : vector<1x128xf32>
    %345 = tpu.matmul %343, %344, %cst_108 {dimension_numbers = #tpu.dot_dimension_numbers<[1], [0], [0], [1], [0, 0, 1, 1], [], []>} : vector<1x32xbf16>, vector<32x128xbf16>, vector<1x128xf32> -> vector<1x128xf32>
    %c0_109 = arith.constant 0 : index
    %c0_110 = arith.constant 0 : index
    %346 = vector.load %arg14[%c0_109, %c0_110] : memref<1x128xf32, #tpu.memory_space<vmem>>, vector<1x128xf32>
    %347 = arith.addf %345, %346 : vector<1x128xf32>
    %348 = vector.shape_cast %347 : vector<1x128xf32> to vector<1x1x128xf32>
    %c0_111 = arith.constant 0 : index
    %c0_112 = arith.constant 0 : index
    %c0_113 = arith.constant 0 : index
    %349 = vector.load %arg15[%c0_111, %c0_112, %c0_113] : memref<1x1x128xf32, #tpu.memory_space<vmem>>, vector<1x1x128xf32>
    tpu.vector_store %arg15[%c0_111, %c0_112, %c0_113], %348 {strides = array<i32>} : memref<1x1x128xf32, #tpu.memory_space<vmem>>, vector<1x1x128xf32>,
    return
  }
  func.func @transform_0(%arg0: i32) -> (i32, i32) {
    %c0_i32 = arith.constant 0 : i32
    %c0_i32_0 = arith.constant 0 : i32
    return %arg0, %c0_i32 : i32, i32
  }
  func.func @transform_1(%arg0: i32) -> (i32, i32, i32) {
    %c0_i32 = arith.constant 0 : i32
    %c0_i32_0 = arith.constant 0 : i32
    %c0_i32_1 = arith.constant 0 : i32
    return %arg0, %c0_i32, %c0_i32_0 : i32, i32, i32
  }
  func.func @transform_2(%arg0: i32) -> (i32, i32) {
    %c0_i32 = arith.constant 0 : i32
    %c0_i32_0 = arith.constant 0 : i32
    %c0_i32_1 = arith.constant 0 : i32
    return %c0_i32, %c0_i32_0 : i32, i32
  }
  func.func @transform_3(%arg0: i32) -> (i32, i32, i32) {
    %c0_i32 = arith.constant 0 : i32
    %c0_i32_0 = arith.constant 0 : i32
    %c0_i32_1 = arith.constant 0 : i32
    %c0_i32_2 = arith.constant 0 : i32
    return %c0_i32, %c0_i32_0, %c0_i32_1 : i32, i32, i32
  }
  func.func @transform_4(%arg0: i32) -> (i32, i32, i32) {
    %c0_i32 = arith.constant 0 : i32
    %c0_i32_0 = arith.constant 0 : i32
    %c0_i32_1 = arith.constant 0 : i32
    %c0_i32_2 = arith.constant 0 : i32
    return %c0_i32, %c0_i32_0, %c0_i32_1 : i32, i32, i32
  }
  func.func @transform_5(%arg0: i32) -> (i32, i32, i32) {
    %c0_i32 = arith.constant 0 : i32
    %c0_i32_0 = arith.constant 0 : i32
    %c0_i32_1 = arith.constant 0 : i32
    %c0_i32_2 = arith.constant 0 : i32
    return %c0_i32, %c0_i32_0, %c0_i32_1 : i32, i32, i32
  }
  func.func @transform_6(%arg0: i32) -> (i32, i32, i32) {
    %c0_i32 = arith.constant 0 : i32
    %c0_i32_0 = arith.constant 0 : i32
    %c0_i32_1 = arith.constant 0 : i32
    %c0_i32_2 = arith.constant 0 : i32
    return %c0_i32, %c0_i32_0, %c0_i32_1 : i32, i32, i32
  }
  func.func @transform_7(%arg0: i32) -> (i32, i32, i32) {
    %c0_i32 = arith.constant 0 : i32
    %c0_i32_0 = arith.constant 0 : i32
    %c0_i32_1 = arith.constant 0 : i32
    %c0_i32_2 = arith.constant 0 : i32
    return %c0_i32, %c0_i32_0, %c0_i32_1 : i32, i32, i32
  }
  func.func @transform_8(%arg0: i32) -> (i32, i32, i32) {
    %c0_i32 = arith.constant 0 : i32
    %c0_i32_0 = arith.constant 0 : i32
    %c0_i32_1 = arith.constant 0 : i32
    %c0_i32_2 = arith.constant 0 : i32
    return %c0_i32, %c0_i32_0, %c0_i32_1 : i32, i32, i32
  }
  func.func @transform_9(%arg0: i32) -> (i32, i32, i32) {
    %c0_i32 = arith.constant 0 : i32
    %c0_i32_0 = arith.constant 0 : i32
    %c0_i32_1 = arith.constant 0 : i32
    %c0_i32_2 = arith.constant 0 : i32
    return %c0_i32, %c0_i32_0, %c0_i32_1 : i32, i32, i32
  }
  func.func @transform_10(%arg0: i32) -> (i32, i32) {
    %c0_i32 = arith.constant 0 : i32
    %c0_i32_0 = arith.constant 0 : i32
    %c0_i32_1 = arith.constant 0 : i32
    return %c0_i32, %c0_i32_0 : i32, i32
  }
  func.func @transform_11(%arg0: i32) -> (i32, i32) {
    %c0_i32 = arith.constant 0 : i32
    %c0_i32_0 = arith.constant 0 : i32
    %c0_i32_1 = arith.constant 0 : i32
    return %c0_i32, %c0_i32_0 : i32, i32
  }
  func.func @transform_12(%arg0: i32) -> (i32, i32) {
    %c0_i32 = arith.constant 0 : i32
    %c0_i32_0 = arith.constant 0 : i32
    %c0_i32_1 = arith.constant 0 : i32
    return %c0_i32, %c0_i32_0 : i32, i32
  }
  func.func @transform_13(%arg0: i32) -> (i32, i32) {
    %c0_i32 = arith.constant 0 : i32
    %c0_i32_0 = arith.constant 0 : i32
    %c0_i32_1 = arith.constant 0 : i32
    return %c0_i32, %c0_i32_0 : i32, i32
  }
  func.func @transform_14(%arg0: i32) -> (i32, i32, i32) {
    %c0_i32 = arith.constant 0 : i32
    %c0_i32_0 = arith.constant 0 : i32
    %c0_i32_1 = arith.constant 0 : i32
    return %arg0, %c0_i32, %c0_i32_0 : i32, i32, i32
  }
}

</mosaic_0001>

<llo_original>
// kernel: rate_classifier_forward.1
$region0: #{rate_classifier_forward.1}
  #allocation0 [shape = 'u32[]', space=smem, size = 0x4, offset = 0x4, fixed_abs, tag = 'smem constant byte address 0x4 - core index']
  #allocation1 [shape = 'u32[144,128]{1,0:T(1,128)}', space=vmem, size = 0x12000, scoped, tag = 'internal scratch']
  %s0 = inlined_call_operand.vmem [shape: f32[16,32], index: 0, kind: input, shape index: {}]
  %s1 = inlined_call_operand.vmem [shape: f32[2,1,8], index: 1, kind: input, shape index: {}]
  %s2 = inlined_call_operand.vmem [shape: f32[2,32], index: 2, kind: input, shape index: {}]
  %s3 = inlined_call_operand.vmem [shape: bf16[2,32,96], index: 3, kind: input, shape index: {}]
  %s4 = inlined_call_operand.vmem [shape: f32[2,1,96], index: 4, kind: input, shape index: {}]
  %s5 = inlined_call_operand.vmem [shape: bf16[2,32,32], index: 5, kind: input, shape index: {}]
  %s6 = inlined_call_operand.vmem [shape: bf16[2,32,64], index: 6, kind: input, shape index: {}]
  %s7 = inlined_call_operand.vmem [shape: f32[2,1,64], index: 7, kind: input, shape index: {}]
  %s8 = inlined_call_operand.vmem [shape: bf16[2,64,32], index: 8, kind: input, shape index: {}]
  %s9 = inlined_call_operand.vmem [shape: f32[2,6,32], index: 9, kind: input, shape index: {}]
  %s10 = inlined_call_operand.vmem [shape: bf16[32,32], index: 10, kind: input, shape index: {}]
  %s11 = inlined_call_operand.vmem [shape: f32[1,32], index: 11, kind: input, shape index: {}]
  %s12 = inlined_call_operand.vmem [shape: bf16[32,128], index: 12, kind: input, shape index: {}]
  %s13 = inlined_call_operand.vmem [shape: f32[1,128], index: 13, kind: input, shape index: {}]
  %s14 = inlined_call_operand.hbm [shape: f32[2,1,128], index: 14, kind: output, shape index: {}]
  %s15 = sld [smem:[#allocation0]]
  $region89: #{rate_classifier_forward.1} parent=0
    _
  %s17 = ssub.s32 1, %s15
  %s18 = scalar_select 0, %s17, %s15
  $region1: #{rate_classifier_forward.1} parent=0
    #allocation2 [shape = 'u8[1024]{0}', space=vmem, size = 0x400, scoped, tag = 'output window, operand 0']
    #allocation3 [shape = 's32[2]{0}', space=sflag, size = 0x8, scoped, tag = 'scoped memory for rate_classifier_forward.1']
    %19 = vsyncpa [#allocation3], 0
    %s20 = scalar_lea.sflag [#allocation3], 1
    %21 = vsyncpa %s20, 0
    loop: start=0, step=1, limit=4
    $region2: #{rate_classifier_forward.1} parent=1 // loop_pre_header
      _
    $region3: #{rate_classifier_forward.1} parent=1 // loop_header
      %s23 = sphi 0, %s27
      %p24 = scmp.ge.s32.totalorder %s23, 4
      %s33 = sphi 0, %s35
      %s36 = sphi 0, %s33
      %s37 = sphi 0, %s36
      %s53 = sphi 0, %s37
      %s59 = sphi 0, %s61
      %s62 = sphi 0, %s59
      %s63 = sphi 0, %s62
      %s79 = sphi 0, %s63
      %s83 = sphi 0, %s83
      %s85 = sphi 0, %s83
      %s86 = sphi 0, %s85
      %s100 = sphi 0, %s86
      %s104 = sphi 0, %s104
      %s106 = sphi 0, %s104
      %s107 = sphi 0, %s106
      %s121 = sphi 0, %s107
      %s125 = sphi 0, %s125
      %s127 = sphi 0, %s125
      %s128 = sphi 0, %s127
      %s142 = sphi 0, %s128
      %s146 = sphi 0, %s146
      %s148 = sphi 0, %s146
      %s149 = sphi 0, %s148
      %s163 = sphi 0, %s149
      %s167 = sphi 0, %s167
      %s169 = sphi 0, %s167
      %s170 = sphi 0, %s169
      %s184 = sphi 0, %s170
      %s188 = sphi 0, %s188
      %s190 = sphi 0, %s188
      %s191 = sphi 0, %s190
      %s205 = sphi 0, %s191
      %s209 = sphi 0, %s209
      %s211 = sphi 0, %s209
      %s212 = sphi 0, %s211
      %s226 = sphi 0, %s212
      %s230 = sphi 0, %s230
      %s232 = sphi 0, %s230
      %s233 = sphi 0, %s232
      %s247 = sphi 0, %s233
      %s251 = sphi 0, %s251
      %s253 = sphi 0, %s251
      %s254 = sphi 0, %s253
      %s268 = sphi 0, %s254
      %s272 = sphi 0, %s272
      %s274 = sphi 0, %s272
      %s275 = sphi 0, %s274
      %s289 = sphi 0, %s275
      %s293 = sphi 0, %s293
      %s295 = sphi 0, %s293
      %s296 = sphi 0, %s295
      %s310 = sphi 0, %s296
      %s314 = sphi 0, %s314
      %s316 = sphi 0, %s314
      %s317 = sphi 0, %s316
      %s331 = sphi 0, %s317
      %s337 = sphi 0, %s339
      %s340 = sphi 0, %s337
      %s341 = sphi 0, %s340
      %s357 = sphi 0, %s341
    $region4: #{rate_classifier_forward.1} parent=1 // loop_header_branch
      %26 = sbr.rel (%p24) target = $region8
    $region5: #{rate_classifier_forward.1} parent=1 // loop_body
      %s28 = ssub.s32 %s23, 1
      %s29 = ssub.s32 %s23, 2
      %s30 = sadd.s32 %s23, 1
      %s31 = ssub.s32 %s23, %s30
      %p32 = scmp.eq.s32.totalorder %s31, 0
      %s34 = sadd.s32 %s33, 1
      %s35 = scalar_select %p32, %s33, %s34
      %p38 = pneg %p32
      %p39 = scmp.eq.s32.totalorder %s23, 1
      %p40 = por %p38, %p39
      %p41 = scmp.ne.s32.totalorder %s33, %s36
      %p42 = scmp.eq.s32.totalorder %s23, 0
      %p43 = por %p41, %p42
      %p44 = scmp.ne.s32.totalorder %s33, %s36
      %p45 = scmp.eq.s32.totalorder %s28, 1
      %p46 = por %p44, %p45
      %p47 = scmp.ne.s32.totalorder %s36, %s37
      %p48 = scmp.eq.s32.totalorder %s28, 0
      %p49 = por %p47, %p48
      %p50 = scmp.ne.s32.totalorder %s36, %s37
      %p51 = scmp.eq.s32.totalorder %s29, 1
      %p52 = por %p50, %p51
      %p54 = scmp.ne.s32.totalorder %s37, %s53
      %p55 = scmp.eq.s32.totalorder %s29, 0
      %p56 = por %p54, %p55
      %s57 = ssub.s32 %s23, %s30
      %p58 = scmp.eq.s32.totalorder %s57, 0
      %s60 = sadd.s32 %s59, 1
      %s61 = scalar_select %p58, %s59, %s60
      %p64 = pneg %p58
      %p65 = scmp.eq.s32.totalorder %s23, 1
      %p66 = por %p64, %p65
      %p67 = scmp.ne.s32.totalorder %s59, %s62
      %p68 = scmp.eq.s32.totalorder %s23, 0
      %p69 = por %p67, %p68
      %p70 = scmp.ne.s32.totalorder %s59, %s62
      %p71 = scmp.eq.s32.totalorder %s28, 1
      %p72 = por %p70, %p71
      %p73 = scmp.ne.s32.totalorder %s62, %s63
      %p74 = scmp.eq.s32.totalorder %s28, 0
      %p75 = por %p73, %p74
      %p76 = scmp.ne.s32.totalorder %s62, %s63
      %p77 = scmp.eq.s32.totalorder %s29, 1
      %p78 = por %p76, %p77
      %p80 = scmp.ne.s32.totalorder %s63, %s79
      %p81 = scmp.eq.s32.totalorder %s29, 0
      %p82 = por %p80, %p81
      %s84 = sadd.s32 %s83, 1
      %p87 = scmp.eq.s32.totalorder %s23, 1
      %p88 = scmp.ne.s32.totalorder %s83, %s85
      %p89 = scmp.eq.s32.totalorder %s23, 0
      %p90 = por %p88, %p89
      %p91 = scmp.ne.s32.totalorder %s83, %s85
      %p92 = scmp.eq.s32.totalorder %s28, 1
      %p93 = por %p91, %p92
      %p94 = scmp.ne.s32.totalorder %s85, %s86
      %p95 = scmp.eq.s32.totalorder %s28, 0
      %p96 = por %p94, %p95
      %p97 = scmp.ne.s32.totalorder %s85, %s86
      %p98 = scmp.eq.s32.totalorder %s29, 1
      %p99 = por %p97, %p98
      %p101 = scmp.ne.s32.totalorder %s86, %s100
      %p102 = scmp.eq.s32.totalorder %s29, 0
      %p103 = por %p101, %p102
      %s105 = sadd.s32 %s104, 1
      %p108 = scmp.eq.s32.totalorder %s23, 1
      %p109 = scmp.ne.s32.totalorder %s104, %s106
      %p110 = scmp.eq.s32.totalorder %s23, 0
      %p111 = por %p109, %p110
      %p112 = scmp.ne.s32.totalorder %s104, %s106
      %p113 = scmp.eq.s32.totalorder %s28, 1
      %p114 = por %p112, %p113
      %p115 = scmp.ne.s32.totalorder %s106, %s107
      %p116 = scmp.eq.s32.totalorder %s28, 0
      %p117 = por %p115, %p116
      %p118 = scmp.ne.s32.totalorder %s106, %s107
      %p119 = scmp.eq.s32.totalorder %s29, 1
      %p120 = por %p118, %p119
      %p122 = scmp.ne.s32.totalorder %s107, %s121
      %p123 = scmp.eq.s32.totalorder %s29, 0
      %p124 = por %p122, %p123
      %s126 = sadd.s32 %s125, 1
      %p129 = scmp.eq.s32.totalorder %s23, 1
      %p130 = scmp.ne.s32.totalorder %s125, %s127
      %p131 = scmp.eq.s32.totalorder %s23, 0
      %p132 = por %p130, %p131
      %p133 = scmp.ne.s32.totalorder %s125, %s127
      %p134 = scmp.eq.s32.totalorder %s28, 1
      %p135 = por %p133, %p134
      %p136 = scmp.ne.s32.totalorder %s127, %s128
      %p137 = scmp.eq.s32.totalorder %s28, 0
      %p138 = por %p136, %p137
      %p139 = scmp.ne.s32.totalorder %s127, %s128
      %p140 = scmp.eq.s32.totalorder %s29, 1
      %p141 = por %p139, %p140
      %p143 = scmp.ne.s32.totalorder %s128, %s142
      %p144 = scmp.eq.s32.totalorder %s29, 0
      %p145 = por %p143, %p144
      %s147 = sadd.s32 %s146, 1
      %p150 = scmp.eq.s32.totalorder %s23, 1
      %p151 = scmp.ne.s32.totalorder %s146, %s148
      %p152 = scmp.eq.s32.totalorder %s23, 0
      %p153 = por %p151, %p152
      %p154 = scmp.ne.s32.totalorder %s146, %s148
      %p155 = scmp.eq.s32.totalorder %s28, 1
      %p156 = por %p154, %p155
      %p157 = scmp.ne.s32.totalorder %s148, %s149
      %p158 = scmp.eq.s32.totalorder %s28, 0
      %p159 = por %p157, %p158
      %p160 = scmp.ne.s32.totalorder %s148, %s149
      %p161 = scmp.eq.s32.totalorder %s29, 1
      %p162 = por %p160, %p161
      %p164 = scmp.ne.s32.totalorder %s149, %s163
      %p165 = scmp.eq.s32.totalorder %s29, 0
      %p166 = por %p164, %p165
      %s168 = sadd.s32 %s167, 1
      %p171 = scmp.eq.s32.totalorder %s23, 1
      %p172 = scmp.ne.s32.totalorder %s167, %s169
      %p173 = scmp.eq.s32.totalorder %s23, 0
      %p174 = por %p172, %p173
      %p175 = scmp.ne.s32.totalorder %s167, %s169
      %p176 = scmp.eq.s32.totalorder %s28, 1
      %p177 = por %p175, %p176
      %p178 = scmp.ne.s32.totalorder %s169, %s170
      %p179 = scmp.eq.s32.totalorder %s28, 0
      %p180 = por %p178, %p179
      %p181 = scmp.ne.s32.totalorder %s169, %s170
      %p182 = scmp.eq.s32.totalorder %s29, 1
      %p183 = por %p181, %p182
      %p185 = scmp.ne.s32.totalorder %s170, %s184
      %p186 = scmp.eq.s32.totalorder %s29, 0
      %p187 = por %p185, %p186
      %s189 = sadd.s32 %s188, 1
      %p192 = scmp.eq.s32.totalorder %s23, 1
      %p193 = scmp.ne.s32.totalorder %s188, %s190
      %p194 = scmp.eq.s32.totalorder %s23, 0
      %p195 = por %p193, %p194
      %p196 = scmp.ne.s32.totalorder %s188, %s190
      %p197 = scmp.eq.s32.totalorder %s28, 1
      %p198 = por %p196, %p197
      %p199 = scmp.ne.s32.totalorder %s190, %s191
      %p200 = scmp.eq.s32.totalorder %s28, 0
      %p201 = por %p199, %p200
      %p202 = scmp.ne.s32.totalorder %s190, %s191
      %p203 = scmp.eq.s32.totalorder %s29, 1
      %p204 = por %p202, %p203
      %p206 = scmp.ne.s32.totalorder %s191, %s205
      %p207 = scmp.eq.s32.totalorder %s29, 0
      %p208 = por %p206, %p207
      %s210 = sadd.s32 %s209, 1
      %p213 = scmp.eq.s32.totalorder %s23, 1
      %p214 = scmp.ne.s32.totalorder %s209, %s211
      %p215 = scmp.eq.s32.totalorder %s23, 0
      %p216 = por %p214, %p215
      %p217 = scmp.ne.s32.totalorder %s209, %s211
      %p218 = scmp.eq.s32.totalorder %s28, 1
      %p219 = por %p217, %p218
      %p220 = scmp.ne.s32.totalorder %s211, %s212
      %p221 = scmp.eq.s32.totalorder %s28, 0
      %p222 = por %p220, %p221
      %p223 = scmp.ne.s32.totalorder %s211, %s212
      %p224 = scmp.eq.s32.totalorder %s29, 1
      %p225 = por %p223, %p224
      %p227 = scmp.ne.s32.totalorder %s212, %s226
      %p228 = scmp.eq.s32.totalorder %s29, 0
      %p229 = por %p227, %p228
      %s231 = sadd.s32 %s230, 1
      %p234 = scmp.eq.s32.totalorder %s23, 1
      %p235 = scmp.ne.s32.totalorder %s230, %s232
      %p236 = scmp.eq.s32.totalorder %s23, 0
      %p237 = por %p235, %p236
      %p238 = scmp.ne.s32.totalorder %s230, %s232
      %p239 = scmp.eq.s32.totalorder %s28, 1
      %p240 = por %p238, %p239
      %p241 = scmp.ne.s32.totalorder %s232, %s233
      %p242 = scmp.eq.s32.totalorder %s28, 0
      %p243 = por %p241, %p242
      %p244 = scmp.ne.s32.totalorder %s232, %s233
      %p245 = scmp.eq.s32.totalorder %s29, 1
      %p246 = por %p244, %p245
      %p248 = scmp.ne.s32.totalorder %s233, %s247
      %p249 = scmp.eq.s32.totalorder %s29, 0
      %p250 = por %p248, %p249
      %s252 = sadd.s32 %s251, 1
      %p255 = scmp.eq.s32.totalorder %s23, 1
      %p256 = scmp.ne.s32.totalorder %s251, %s253
      %p257 = scmp.eq.s32.totalorder %s23, 0
      %p258 = por %p256, %p257
      %p259 = scmp.ne.s32.totalorder %s251, %s253
      %p260 = scmp.eq.s32.totalorder %s28, 1
      %p261 = por %p259, %p260
      %p262 = scmp.ne.s32.totalorder %s253, %s254
      %p263 = scmp.eq.s32.totalorder %s28, 0
      %p264 = por %p262, %p263
      %p265 = scmp.ne.s32.totalorder %s253, %s254
      %p266 = scmp.eq.s32.totalorder %s29, 1
      %p267 = por %p265, %p266
      %p269 = scmp.ne.s32.totalorder %s254, %s268
      %p270 = scmp.eq.s32.totalorder %s29, 0
      %p271 = por %p269, %p270
      %s273 = sadd.s32 %s272, 1
      %p276 = scmp.eq.s32.totalorder %s23, 1
      %p277 = scmp.ne.s32.totalorder %s272, %s274
      %p278 = scmp.eq.s32.totalorder %s23, 0
      %p279 = por %p277, %p278
      %p280 = scmp.ne.s32.totalorder %s272, %s274
      %p281 = scmp.eq.s32.totalorder %s28, 1
      %p282 = por %p280, %p281
      %p283 = scmp.ne.s32.totalorder %s274, %s275
      %p284 = scmp.eq.s32.totalorder %s28, 0
      %p285 = por %p283, %p284
      %p286 = scmp.ne.s32.totalorder %s274, %s275
      %p287 = scmp.eq.s32.totalorder %s29, 1
      %p288 = por %p286, %p287
      %p290 = scmp.ne.s32.totalorder %s275, %s289
      %p291 = scmp.eq.s32.totalorder %s29, 0
      %p292 = por %p290, %p291
      %s294 = sadd.s32 %s293, 1
      %p297 = scmp.eq.s32.totalorder %s23, 1
      %p298 = scmp.ne.s32.totalorder %s293, %s295
      %p299 = scmp.eq.s32.totalorder %s23, 0
      %p300 = por %p298, %p299
      %p301 = scmp.ne.s32.totalorder %s293, %s295
      %p302 = scmp.eq.s32.totalorder %s28, 1
      %p303 = por %p301, %p302
      %p304 = scmp.ne.s32.totalorder %s295, %s296
      %p305 = scmp.eq.s32.totalorder %s28, 0
      %p306 = por %p304, %p305
      %p307 = scmp.ne.s32.totalorder %s295, %s296
      %p308 = scmp.eq.s32.totalorder %s29, 1
      %p309 = por %p307, %p308
      %p311 = scmp.ne.s32.totalorder %s296, %s310
      %p312 = scmp.eq.s32.totalorder %s29, 0
      %p313 = por %p311, %p312
      %s315 = sadd.s32 %s314, 1
      %p318 = scmp.eq.s32.totalorder %s23, 1
      %p319 = scmp.ne.s32.totalorder %s314, %s316
      %p320 = scmp.eq.s32.totalorder %s23, 0
      %p321 = por %p319, %p320
      %p322 = scmp.ne.s32.totalorder %s314, %s316
      %p323 = scmp.eq.s32.totalorder %s28, 1
      %p324 = por %p322, %p323
      %p325 = scmp.ne.s32.totalorder %s316, %s317
      %p326 = scmp.eq.s32.totalorder %s28, 0
      %p327 = por %p325, %p326
      %p328 = scmp.ne.s32.totalorder %s316, %s317
      %p329 = scmp.eq.s32.totalorder %s29, 1
      %p330 = por %p328, %p329
      %p332 = scmp.ne.s32.totalorder %s317, %s331
      %p333 = scmp.eq.s32.totalorder %s29, 0
      %p334 = por %p332, %p333
      %s335 = ssub.s32 %s23, %s30
      %p336 = scmp.eq.s32.totalorder %s335, 0
      %s338 = sadd.s32 %s337, 1
      %s339 = scalar_select %p336, %s337, %s338
      %p342 = pneg %p336
      %p343 = scmp.eq.s32.totalorder %s23, 1
      %p344 = por %p342, %p343
      %p345 = scmp.ne.s32.totalorder %s337, %s340
      %p346 = scmp.eq.s32.totalorder %s23, 0
      %p347 = por %p345, %p346
      %p348 = scmp.ne.s32.totalorder %s337, %s340
      %p349 = scmp.eq.s32.totalorder %s28, 1
      %p350 = por %p348, %p349
      %p351 = scmp.ne.s32.totalorder %s340, %s341
      %p352 = scmp.eq.s32.totalorder %s28, 0
      %p353 = por %p351, %p352
      %p354 = scmp.ne.s32.totalorder %s340, %s341
      %p355 = scmp.eq.s32.totalorder %s29, 1
      %p356 = por %p354, %p355
      %p358 = scmp.ne.s32.totalorder %s341, %s357
      %p359 = scmp.eq.s32.totalorder %s29, 0
      %p360 = por %p358, %p359
      %p361 = scmp.le.s32.totalorder 1, %s23
      %p362 = scmp.lt.s32.totalorder %s23, 3
      %p363 = pnand %p361, %p362
      %p364 = pneg %p363
      // Predicated region
      $region9: #{rate_classifier_forward.1} parent=5 // pred_check
        _
      $region10: #{rate_classifier_forward.1} parent=5 // pred_check_branch
        %366 = sbr.rel (%p363) target = $region12
      $region11: #{rate_classifier_forward.1} parent=5 // pred_region
        %s367 = ssub.s32 %s23, 1
        // Predicated region
        $region13: #{rate_classifier_forward.1} parent=11 // pred_check
          %p368 = pneg %p96
        $region14: #{rate_classifier_forward.1} parent=11 // pred_check_branch
          %370 = sbr.rel (%p368) target = $region16
        $region15: #{rate_classifier_forward.1} parent=11 // pred_region
          _
        $region16: #{rate_classifier_forward.1} parent=11 // pred_fallthru
          _
        // Predicated region
        $region17: #{rate_classifier_forward.1} parent=11 // pred_check
          %p371 = pneg %p117
        $region18: #{rate_classifier_forward.1} parent=11 // pred_check_branch
          %373 = sbr.rel (%p371) target = $region20
        $region19: #{rate_classifier_forward.1} parent=11 // pred_region
          _
        $region20: #{rate_classifier_forward.1} parent=11 // pred_fallthru
          _
        // Predicated region
        $region21: #{rate_classifier_forward.1} parent=11 // pred_check
          %p374 = pneg %p138
        $region22: #{rate_classifier_forward.1} parent=11 // pred_check_branch
          %376 = sbr.rel (%p374) target = $region24
        $region23: #{rate_classifier_forward.1} parent=11 // pred_region
          _
        $region24: #{rate_classifier_forward.1} parent=11 // pred_fallthru
          _
        // Predicated region
        $region25: #{rate_classifier_forward.1} parent=11 // pred_check
          %p377 = pneg %p159
        $region26: #{rate_classifier_forward.1} parent=11 // pred_check_branch
          %379 = sbr.rel (%p377) target = $region28
        $region27: #{rate_classifier_forward.1} parent=11 // pred_region
          _
        $region28: #{rate_classifier_forward.1} parent=11 // pred_fallthru
          _
        // Predicated region
        $region29: #{rate_classifier_forward.1} parent=11 // pred_check
          %p380 = pneg %p180
        $region30: #{rate_classifier_forward.1} parent=11 // pred_check_branch
          %382 = sbr.rel (%p380) target = $region32
        $region31: #{rate_classifier_forward.1} parent=11 // pred_region
          _
        $region32: #{rate_classifier_forward.1} parent=11 // pred_fallthru
          _
        // Predicated region
        $region33: #{rate_classifier_forward.1} parent=11 // pred_check
          %p383 = pneg %p201
        $region34: #{rate_classifier_forward.1} parent=11 // pred_check_branch
          %385 = sbr.rel (%p383) target = $region36
        $region35: #{rate_classifier_forward.1} parent=11 // pred_region
          _
        $region36: #{rate_classifier_forward.1} parent=11 // pred_fallthru
          _
        // Predicated region
        $region37: #{rate_classifier_forward.1} parent=11 // pred_check
          %p386 = pneg %p222
        $region38: #{rate_classifier_forward.1} parent=11 // pred_check_branch
          %388 = sbr.rel (%p386) target = $region40
        $region39: #{rate_classifier_forward.1} parent=11 // pred_region
          _
        $region40: #{rate_classifier_forward.1} parent=11 // pred_fallthru
          _
        // Predicated region
        $region41: #{rate_classifier_forward.1} parent=11 // pred_check
          %p389 = pneg %p243
        $region42: #{rate_classifier_forward.1} parent=11 // pred_check_branch
          %391 = sbr.rel (%p389) target = $region44
        $region43: #{rate_classifier_forward.1} parent=11 // pred_region
          _
        $region44: #{rate_classifier_forward.1} parent=11 // pred_fallthru
          _
        // Predicated region
        $region45: #{rate_classifier_forward.1} parent=11 // pred_check
          %p392 = pneg %p264
        $region46: #{rate_classifier_forward.1} parent=11 // pred_check_branch
          %394 = sbr.rel (%p392) target = $region48
        $region47: #{rate_classifier_forward.1} parent=11 // pred_region
          _
        $region48: #{rate_classifier_forward.1} parent=11 // pred_fallthru
          _
        // Predicated region
        $region49: #{rate_classifier_forward.1} parent=11 // pred_check
          %p395 = pneg %p285
        $region50: #{rate_classifier_forward.1} parent=11 // pred_check_branch
          %397 = sbr.rel (%p395) target = $region52
        $region51: #{rate_classifier_forward.1} parent=11 // pred_region
          _
        $region52: #{rate_classifier_forward.1} parent=11 // pred_fallthru
          _
        // Predicated region
        $region53: #{rate_classifier_forward.1} parent=11 // pred_check
          %p398 = pneg %p306
        $region54: #{rate_classifier_forward.1} parent=11 // pred_check_branch
          %400 = sbr.rel (%p398) target = $region56
        $region55: #{rate_classifier_forward.1} parent=11 // pred_region
          _
        $region56: #{rate_classifier_forward.1} parent=11 // pred_fallthru
          _
        // Predicated region
        $region57: #{rate_classifier_forward.1} parent=11 // pred_check
          %p401 = pneg %p327
        $region58: #{rate_classifier_forward.1} parent=11 // pred_check_branch
          %403 = sbr.rel (%p401) target = $region60
        $region59: #{rate_classifier_forward.1} parent=11 // pred_region
          _
        $region60: #{rate_classifier_forward.1} parent=11 // pred_fallthru
          _
      $region12: #{rate_classifier_forward.1} parent=5 // pred_fallthru
        _
      %p404 = scmp.lt.s32.totalorder %s23, 2
      // Predicated region
      $region61: #{rate_classifier_forward.1} parent=5 // pred_check
        %p405 = pneg %p404
      $region62: #{rate_classifier_forward.1} parent=5 // pred_check_branch
        %407 = sbr.rel (%p405) target = $region64
      $region63: #{rate_classifier_forward.1} parent=5 // pred_region
        // Predicated region
        $region65: #{rate_classifier_forward.1} parent=63 // pred_check
          %p408 = pneg %p43
        $region66: #{rate_classifier_forward.1} parent=63 // pred_check_branch
          %410 = sbr.rel (%p408) target = $region68
        $region67: #{rate_classifier_forward.1} parent=63 // pred_region
          %p411 = scmp.lt.s32.totalorder %s23, 1
          %s412 = scalar_select %p411, %s23, 1
          %s413 = smul.addr %s412, 8
          %s414 = scalar_lea.vmem %s0, %s413
        $region68: #{rate_classifier_forward.1} parent=63 // pred_fallthru
          _
        // Predicated region
        $region69: #{rate_classifier_forward.1} parent=63 // pred_check
          %p415 = pneg %p69
        $region70: #{rate_classifier_forward.1} parent=63 // pred_check_branch
          %417 = sbr.rel (%p415) target = $region72
        $region71: #{rate_classifier_forward.1} parent=63 // pred_region
          %p418 = scmp.lt.s32.totalorder %s23, 1
          %s419 = scalar_select %p418, %s23, 1
          %s420 = scalar_lea.vmem %s1, %s419
        $region72: #{rate_classifier_forward.1} parent=63 // pred_fallthru
          _
      $region64: #{rate_classifier_forward.1} parent=5 // pred_fallthru
        _
      %p421 = scmp.le.s32.totalorder 1, %s23
      %p422 = scmp.lt.s32.totalorder %s23, 3
      %p423 = pnand %p421, %p422
      %p424 = pneg %p423
      // Predicated region
      $region73: #{rate_classifier_forward.1} parent=5 // pred_check
        _
      $region74: #{rate_classifier_forward.1} parent=5 // pred_check_branch
        %426 = sbr.rel (%p423) target = $region76
      $region75: #{rate_classifier_forward.1} parent=5 // pred_region
        %s427 = ssub.s32 %s23, 1
        %p428 = scmp.lt.s32.totalorder %s28, 1
        %s429 = scalar_select %p428, %s28, 1
        %s430 = smul.addr %s429, 8
        %s431 = scalar_lea.vmem %s0, %s430
        %p432 = pneg %p49
        %p433 = pneg %p46
        %p434 = scmp.lt.s32.totalorder %s28, 1
        %s435 = scalar_select %p434, %s28, 1
        %s436 = scalar_lea.vmem %s1, %s435
        %p437 = pneg %p75
        %p438 = pneg %p72
        %p439 = pneg %p96
        %p440 = pneg %p93
        %p441 = pneg %p117
        %p442 = pneg %p114
        %p443 = pneg %p138
        %p444 = pneg %p135
        %p445 = pneg %p159
        %p446 = pneg %p156
        %p447 = pneg %p180
        %p448 = pneg %p177
        %p449 = pneg %p201
        %p450 = pneg %p198
        %p451 = pneg %p222
        %p452 = pneg %p219
        %p453 = pneg %p243
        %p454 = pneg %p240
        %p455 = pneg %p264
        %p456 = pneg %p261
        %p457 = pneg %p285
        %p458 = pneg %p282
        %p459 = pneg %p306
        %p460 = pneg %p303
        %p461 = pneg %p327
        %p462 = pneg %p324
        %p463 = pneg %p353
        %p464 = pneg %p350
        %s465 = sand.u32 %s340, 1
        %s466 = scalar_lea.sflag [#allocation3], %s465
        %s467 = sand.u32 %s340, 1
        %s468 = scalar_lea.vmem [#allocation2], %s467
        %p469 = scmp.lt.s32.totalorder %s28, 1
        %s470 = scalar_select %p469, %s28, 1
        %s471 = smul.addr %s470, 8
        %s472 = scalar_lea.vmem %s0, %s471
        %p473 = scmp.lt.s32.totalorder %s28, 1
        %s474 = scalar_select %p473, %s28, 1
        %s475 = scalar_lea.vmem %s1, %s474
        %v477 = vld [vmem:[%s472] sm:$0xff]
        %v478 = vld [vmem:[%s2] sm:$0x1]
        %v479 = vld [vmem:[%s2 + $0x1] sm:$0x1]
        %vm480 = vcmask 261120
        %v481 = vsel %vm480, %v477, 0.0
        %482 = vadd.xlane.f32.xlu0 %v481
        %v483 = vpop.xlane.xlu0 %482
        %v484 = vrcp.pop 32.0
        %v485 = vmul.f32 %v483, %v484
        %v486 = vsub.f32 %v477, %v485
        %v487 = vmul.f32 %v486, %v486
        %v488 = vsel %vm480, %v487, 0.0
        %489 = vadd.xlane.f32.xlu0 %v488
        %v490 = vpop.xlane.xlu0 %489
        %v491 = vmul.f32 %v490, %v484
        %v492 = vadd.f32 %v491, 1e-12
        %v493 = vrsqrt.pop %v492
        %v494 = vmul.f32 %v486, %v493
        %v495 = vlaneseq
        %v496 = vshrl.u32 %v495, 7
        %v497 = vsub.s32 0, %v496
        %v498 = vrot.slane %v478, %v497
        %v499 = vmul.f32 %v494, %v498
        %v500 = vlaneseq
        %v501 = vshrl.u32 %v500, 7
        %v502 = vsub.s32 0, %v501
        %v503 = vrot.slane %v479, %v502
        %v504 = vadd.f32 %v499, %v503
        %v505 = vld [vmem:[%s475] sm:$0x1]
        %v506 = vsub.f32 %v505, 1.0
        %v507 = vmul.f32 %v506, 10000.0
        %v508 = vld [vmem:[%s9] sm:$0x3f]
        %v509 = vpack.c.bf16 %v504, %v504
        %v510 = vld [vmem:[%s3] sm:$0xf]
        %v511 = vld [vmem:[%s3 + $0x4] sm:$0xf]
        %v512 = vld [vmem:[%s3 + $0x8] sm:$0xf]
        %v513 = vld [vmem:[%s3 + $0xc] sm:$0xf]
        %v514 = vld [vmem:[%s4] sm:$0x1]
        %v516 = vlaneseq
        %v517 = vshrl.u32 %v516, 7
        %v518 = vsub.s32 0, %v517
        %v519 = vrot.slane %v514, %v518
        %v525 = vunpack.c.l.b16 %v510
        %v526 = vunpack.c.l.b16 %v511
        %v527 = vunpack.c.l.b16 %v512
        %v528 = vunpack.c.l.b16 %v513
        %v529 = vpack.c.b16 %v526, %v525
        %v530 = vpack.c.b16 %v528, %v527
        %v534 = vsel %vm480, %v509, 0
        %536 = vmatprep.subr.bf16.mxu0 0
        %537 = vmatpush1.bf16.msra.mxu0 0
        %538 = vmatprep.subr.bf16.mxu0 0
        %539 = vmatpush1.bf16.msra.mxu0 0
        %540 = vmatprep.subr.bf16.mxu0 0
        %541 = vmatpush1.bf16.msra.mxu0 0
        %542 = vmatprep.subr.bf16.mxu0 0
        %543 = vmatpush1.bf16.msra.mxu0 0
        %544 = vmatprep.subr.bf16.mxu0 0
        %545 = vmatpush1.bf16.msra.mxu0 0
        %546 = vmatprep.subr.bf16.mxu0 0
        %547 = vmatpush1.bf16.msra.mxu0 0
        %548 = vmatprep.subr.bf16.mxu0 0
        %549 = vmatpush1.bf16.msra.mxu0 %v530
        %550 = vmatprep.subr.bf16.mxu0 0
        %551 = vmatpush1.bf16.msra.mxu0 %v529
        %552 = vmatprep.subr.bf16.mxu0 0
        %553 = vmatpush2.bf16.msra.mxu0 0
        %554 = vmatprep.subr.bf16.mxu0 0
        %555 = vmatpush2.bf16.msra.mxu0 0
        %556 = vmatprep.subr.bf16.mxu0 0
        %557 = vmatpush2.bf16.msra.mxu0 0
        %558 = vmatprep.subr.bf16.mxu0 0
        %559 = vmatpush2.bf16.msra.mxu0 0
        %560 = vmatprep.subr.bf16.mxu0 0
        %561 = vmatpush2.bf16.msra.mxu0 0
        %562 = vmatprep.subr.bf16.mxu0 0
        %563 = vmatpush2.bf16.msra.mxu0 0
        %564 = vmatprep.subr.bf16.mxu0 0
        %565 = vmatpush2.bf16.msra.mxu0 0
        %566 = vmatprep.subr.bf16.mxu0 0
        %567 = vmatpush2.bf16.msra.mxu0 0
        %568 = vmatprep.mubr.bf16.mxu0 0
        %569 = vmatmul.mubr.bf16.gmra.mxu0 %v534
        %v570 = vpop.f32.mrf.mxu0
        %v571 = vadd.f32 %v519, %v570
        %v572 = vpop.f32.mrf.mxu0
        %v573 = vpop.f32.mrf.mxu0
        %v574 = vpop.f32.mrf.mxu0
        %575 = vdwg.mxu0
        %577 = vrot.lane.b32.xlu0 %v571, 120
        %v578 = vpop.permute.xlu0 %577
        %580 = vrot.lane.b32.xlu0 %v571, 112
        %v581 = vpop.permute.xlu0 %580
        %583 = vrot.lane.b32.xlu0 %v571, 104
        %v584 = vpop.permute.xlu0 %583
        %v586 = vpack.c.bf16 %v571, %v571
        %v587 = vpack.c.bf16 %v578, %v578
        %v588 = vpack.c.bf16 %v581, %v581
        %v589 = vpack.c.bf16 %v584, %v584
        %591 = vrot.lane.b32.xlu0 %v586, 96
        %v592 = vpop.permute.xlu0 %591
        %vm593 = vcmask 64512
        %v595 = vsel %vm593, %v586, 0
        %v598 = vsel %vm593, %v592, 0
        %600 = vmatprep.subr.bf16.mxu0 0
        %601 = vmatpush1.bf16.xpose.msra.mxu0 0
        %602 = vmatprep.subr.bf16.mxu0 0
        %603 = vmatpush1.bf16.xpose.msra.mxu0 0
        %604 = vmatprep.subr.bf16.mxu0 0
        %605 = vmatpush1.bf16.xpose.msra.mxu0 0
        %606 = vmatprep.subr.bf16.mxu0 0
        %607 = vmatpush1.bf16.xpose.msra.mxu0 0
        %608 = vmatprep.subr.bf16.mxu0 0
        %609 = vmatpush1.bf16.xpose.msra.mxu0 0
        %610 = vmatprep.subr.bf16.mxu0 0
        %611 = vmatpush1.bf16.xpose.msra.mxu0 0
        %612 = vmatprep.subr.bf16.mxu0 0
        %613 = vmatpush1.bf16.xpose.msra.mxu0 0
        %614 = vmatprep.subr.bf16.mxu0 0
        %615 = vmatpush1.bf16.xpose.msra.mxu0 %v598
        %616 = vmatprep.subr.bf16.mxu0 0
        %617 = vmatpush2.bf16.xpose.msra.mxu0 0
        %618 = vmatprep.subr.bf16.mxu0 0
        %619 = vmatpush2.bf16.xpose.msra.mxu0 0
        %620 = vmatprep.subr.bf16.mxu0 0
        %621 = vmatpush2.bf16.xpose.msra.mxu0 0
        %622 = vmatprep.subr.bf16.mxu0 0
        %623 = vmatpush2.bf16.xpose.msra.mxu0 0
        %624 = vmatprep.subr.bf16.mxu0 0
        %625 = vmatpush2.bf16.xpose.msra.mxu0 0
        %626 = vmatprep.subr.bf16.mxu0 0
        %627 = vmatpush2.bf16.xpose.msra.mxu0 0
        %628 = vmatprep.subr.bf16.mxu0 0
        %629 = vmatpush2.bf16.xpose.msra.mxu0 0
        %630 = vmatprep.subr.bf16.mxu0 0
        %631 = vmatpush2.bf16.xpose.msra.mxu0 0
        %632 = vmatprep.mubr.bf16.mxu0 0
        %633 = vmatmul.mubr.bf16.gmra.mxu0 %v595
        %v634 = vpop.f32.mrf.mxu0
        %v635 = vadd.f32 0.0, %v634
        %v636 = vpop.f32.mrf.mxu0
        %v637 = vpop.f32.mrf.mxu0
        %v638 = vpop.f32.mrf.mxu0
        %639 = vdwg.mxu0
        %641 = vrot.lane.b32.xlu0 %v587, 96
        %v642 = vpop.permute.xlu0 %641
        %v644 = vsel %vm593, %v587, 0
        %v647 = vsel %vm593, %v642, 0
        %649 = vmatprep.subr.bf16.mxu0 0
        %650 = vmatpush1.bf16.xpose.msra.mxu0 0
        %651 = vmatprep.subr.bf16.mxu0 0
        %652 = vmatpush1.bf16.xpose.msra.mxu0 0
        %653 = vmatprep.subr.bf16.mxu0 0
        %654 = vmatpush1.bf16.xpose.msra.mxu0 0
        %655 = vmatprep.subr.bf16.mxu0 0
        %656 = vmatpush1.bf16.xpose.msra.mxu0 0
        %657 = vmatprep.subr.bf16.mxu0 0
        %658 = vmatpush1.bf16.xpose.msra.mxu0 0
        %659 = vmatprep.subr.bf16.mxu0 0
        %660 = vmatpush1.bf16.xpose.msra.mxu0 0
        %661 = vmatprep.subr.bf16.mxu0 0
        %662 = vmatpush1.bf16.xpose.msra.mxu0 0
        %663 = vmatprep.subr.bf16.mxu0 0
        %664 = vmatpush1.bf16.xpose.msra.mxu0 %v647
        %665 = vmatprep.subr.bf16.mxu0 0
        %666 = vmatpush2.bf16.xpose.msra.mxu0 0
        %667 = vmatprep.subr.bf16.mxu0 0
        %668 = vmatpush2.bf16.xpose.msra.mxu0 0
        %669 = vmatprep.subr.bf16.mxu0 0
        %670 = vmatpush2.bf16.xpose.msra.mxu0 0
        %671 = vmatprep.subr.bf16.mxu0 0
        %672 = vmatpush2.bf16.xpose.msra.mxu0 0
        %673 = vmatprep.subr.bf16.mxu0 0
        %674 = vmatpush2.bf16.xpose.msra.mxu0 0
        %675 = vmatprep.subr.bf16.mxu0 0
        %676 = vmatpush2.bf16.xpose.msra.mxu0 0
        %677 = vmatprep.subr.bf16.mxu0 0
        %678 = vmatpush2.bf16.xpose.msra.mxu0 0
        %679 = vmatprep.subr.bf16.mxu0 0
        %680 = vmatpush2.bf16.xpose.msra.mxu0 0
        %681 = vmatprep.mubr.bf16.mxu0 0
        %682 = vmatmul.mubr.bf16.gmra.mxu0 %v644
        %v683 = vpop.f32.mrf.mxu0
        %v684 = vadd.f32 0.0, %v683
        %v685 = vpop.f32.mrf.mxu0
        %v686 = vpop.f32.mrf.mxu0
        %v687 = vpop.f32.mrf.mxu0
        %688 = vdwg.mxu0
        %690 = vrot.lane.b32.xlu0 %v588, 96
        %v691 = vpop.permute.xlu0 %690
        %v693 = vsel %vm593, %v588, 0
        %v696 = vsel %vm593, %v691, 0
        %698 = vmatprep.subr.bf16.mxu0 0
        %699 = vmatpush1.bf16.xpose.msra.mxu0 0
        %700 = vmatprep.subr.bf16.mxu0 0
        %701 = vmatpush1.bf16.xpose.msra.mxu0 0
        %702 = vmatprep.subr.bf16.mxu0 0
        %703 = vmatpush1.bf16.xpose.msra.mxu0 0
        %704 = vmatprep.subr.bf16.mxu0 0
        %705 = vmatpush1.bf16.xpose.msra.mxu0 0
        %706 = vmatprep.subr.bf16.mxu0 0
        %707 = vmatpush1.bf16.xpose.msra.mxu0 0
        %708 = vmatprep.subr.bf16.mxu0 0
        %709 = vmatpush1.bf16.xpose.msra.mxu0 0
        %710 = vmatprep.subr.bf16.mxu0 0
        %711 = vmatpush1.bf16.xpose.msra.mxu0 0
        %712 = vmatprep.subr.bf16.mxu0 0
        %713 = vmatpush1.bf16.xpose.msra.mxu0 %v696
        %714 = vmatprep.subr.bf16.mxu0 0
        %715 = vmatpush2.bf16.xpose.msra.mxu0 0
        %716 = vmatprep.subr.bf16.mxu0 0
        %717 = vmatpush2.bf16.xpose.msra.mxu0 0
        %718 = vmatprep.subr.bf16.mxu0 0
        %719 = vmatpush2.bf16.xpose.msra.mxu0 0
        %720 = vmatprep.subr.bf16.mxu0 0
        %721 = vmatpush2.bf16.xpose.msra.mxu0 0
        %722 = vmatprep.subr.bf16.mxu0 0
        %723 = vmatpush2.bf16.xpose.msra.mxu0 0
        %724 = vmatprep.subr.bf16.mxu0 0
        %725 = vmatpush2.bf16.xpose.msra.mxu0 0
        %726 = vmatprep.subr.bf16.mxu0 0
        %727 = vmatpush2.bf16.xpose.msra.mxu0 0
        %728 = vmatprep.subr.bf16.mxu0 0
        %729 = vmatpush2.bf16.xpose.msra.mxu0 0
        %730 = vmatprep.mubr.bf16.mxu0 0
        %731 = vmatmul.mubr.bf16.gmra.mxu0 %v693
        %v732 = vpop.f32.mrf.mxu0
        %v733 = vadd.f32 0.0, %v732
        %v734 = vpop.f32.mrf.mxu0
        %v735 = vpop.f32.mrf.mxu0
        %v736 = vpop.f32.mrf.mxu0
        %737 = vdwg.mxu0
        %739 = vrot.lane.b32.xlu0 %v589, 96
        %v740 = vpop.permute.xlu0 %739
        %v742 = vsel %vm593, %v589, 0
        %v745 = vsel %vm593, %v740, 0
        %747 = vmatprep.subr.bf16.mxu0 0
        %748 = vmatpush1.bf16.xpose.msra.mxu0 0
        %749 = vmatprep.subr.bf16.mxu0 0
        %750 = vmatpush1.bf16.xpose.msra.mxu0 0
        %751 = vmatprep.subr.bf16.mxu0 0
        %752 = vmatpush1.bf16.xpose.msra.mxu0 0
        %753 = vmatprep.subr.bf16.mxu0 0
        %754 = vmatpush1.bf16.xpose.msra.mxu0 0
        %755 = vmatprep.subr.bf16.mxu0 0
        %756 = vmatpush1.bf16.xpose.msra.mxu0 0
        %757 = vmatprep.subr.bf16.mxu0 0
        %758 = vmatpush1.bf16.xpose.msra.mxu0 0
        %759 = vmatprep.subr.bf16.mxu0 0
        %760 = vmatpush1.bf16.xpose.msra.mxu0 0
        %761 = vmatprep.subr.bf16.mxu0 0
        %762 = vmatpush1.bf16.xpose.msra.mxu0 %v745
        %763 = vmatprep.subr.bf16.mxu0 0
        %764 = vmatpush2.bf16.xpose.msra.mxu0 0
        %765 = vmatprep.subr.bf16.mxu0 0
        %766 = vmatpush2.bf16.xpose.msra.mxu0 0
        %767 = vmatprep.subr.bf16.mxu0 0
        %768 = vmatpush2.bf16.xpose.msra.mxu0 0
        %769 = vmatprep.subr.bf16.mxu0 0
        %770 = vmatpush2.bf16.xpose.msra.mxu0 0
        %771 = vmatprep.subr.bf16.mxu0 0
        %772 = vmatpush2.bf16.xpose.msra.mxu0 0
        %773 = vmatprep.subr.bf16.mxu0 0
        %774 = vmatpush2.bf16.xpose.msra.mxu0 0
        %775 = vmatprep.subr.bf16.mxu0 0
        %776 = vmatpush2.bf16.xpose.msra.mxu0 0
        %777 = vmatprep.subr.bf16.mxu0 0
        %778 = vmatpush2.bf16.xpose.msra.mxu0 0
        %779 = vmatprep.mubr.bf16.mxu0 0
        %780 = vmatmul.mubr.bf16.gmra.mxu0 %v742
        %v781 = vpop.f32.mrf.mxu0
        %v782 = vadd.f32 0.0, %v781
        %v783 = vpop.f32.mrf.mxu0
        %v784 = vpop.f32.mrf.mxu0
        %v785 = vpop.f32.mrf.mxu0
        %786 = vdwg.mxu0
        %v787 = vmul.f32 %v635, 0.35355338
        %v788 = vmul.f32 %v684, 0.35355338
        %v789 = vmul.f32 %v733, 0.35355338
        %v790 = vmul.f32 %v782, 0.35355338
        %v792 = vlaneseq
        %v793 = vshrl.u32 %v792, 7
        %v794 = vsub.s32 0, %v793
        %v795 = vrot.slane %v507, %v794
        %v797 = vadd.f32 %v787, %v795
        %v798 = vadd.f32 %v788, %v795
        %v799 = vadd.f32 %v789, %v795
        %v800 = vadd.f32 %v790, %v795
        %v801 = vsel %vm593, %v797, -inf
        %802 = vmax.xlane.f32.xlu0 %v801
        %v803 = vpop.xlane.xlu0 %802
        %v804 = vsel %vm593, %v798, -inf
        %805 = vmax.xlane.f32.xlu0 %v804
        %v806 = vpop.xlane.xlu0 %805
        %v807 = vsel %vm593, %v799, -inf
        %808 = vmax.xlane.f32.xlu0 %v807
        %v809 = vpop.xlane.xlu0 %808
        %v810 = vsel %vm593, %v800, -inf
        %811 = vmax.xlane.f32.xlu0 %v810
        %v812 = vpop.xlane.xlu0 %811
        %v813 = vsub.f32 %v797, %v803
        %v814 = vsub.f32 %v798, %v806
        %v815 = vsub.f32 %v799, %v809
        %v816 = vsub.f32 %v800, %v812
        %v817 = vmul.f32 %v813, 1.442695
        %v818 = vpow.pop %v817
        %v819 = vmul.f32 %v814, 1.442695
        %v820 = vpow.pop %v819
        %v821 = vmul.f32 %v815, 1.442695
        %v822 = vpow.pop %v821
        %v823 = vmul.f32 %v816, 1.442695
        %v824 = vpow.pop %v823
        %v825 = vsel %vm593, %v818, 0.0
        %826 = vadd.xlane.f32.xlu0 %v825
        %v827 = vpop.xlane.xlu0 %826
        %v828 = vsel %vm593, %v820, 0.0
        %829 = vadd.xlane.f32.xlu0 %v828
        %v830 = vpop.xlane.xlu0 %829
        %v831 = vsel %vm593, %v822, 0.0
        %832 = vadd.xlane.f32.xlu0 %v831
        %v833 = vpop.xlane.xlu0 %832
        %v834 = vsel %vm593, %v824, 0.0
        %835 = vadd.xlane.f32.xlu0 %v834
        %v836 = vpop.xlane.xlu0 %835
        %v837 = vrcp.pop %v827
        %v838 = vrcp.pop %v830
        %v839 = vrcp.pop %v833
        %v840 = vrcp.pop %v836
        %v841 = vmul.f32 %v818, %v837
        %v842 = vmul.f32 %v820, %v838
        %v843 = vmul.f32 %v822, %v839
        %v844 = vmul.f32 %v824, %v840
        %v845 = vpack.c.bf16 %v841, %v841
        %v846 = vpack.c.bf16 %v842, %v842
        %v847 = vpack.c.bf16 %v843, %v843
        %v848 = vpack.c.bf16 %v844, %v844
        %849 = vrot.lane.b32.xlu0 %v586, 64
        %v850 = vpop.permute.xlu0 %849
        %v852 = vsel %vm593, %v845, 0
        %vm854 = vcmask 1043456
        %v856 = vsel %vm854, %v850, 0
        %858 = vmatprep.subr.bf16.mxu0 0
        %859 = vmatpush1.bf16.msra.mxu0 0
        %860 = vmatprep.subr.bf16.mxu0 0
        %861 = vmatpush1.bf16.msra.mxu0 0
        %862 = vmatprep.subr.bf16.mxu0 0
        %863 = vmatpush1.bf16.msra.mxu0 0
        %864 = vmatprep.subr.bf16.mxu0 0
        %865 = vmatpush1.bf16.msra.mxu0 0
        %866 = vmatprep.subr.bf16.mxu0 0
        %867 = vmatpush1.bf16.msra.mxu0 0
        %868 = vmatprep.subr.bf16.mxu0 0
        %869 = vmatpush1.bf16.msra.mxu0 0
        %870 = vmatprep.subr.bf16.mxu0 0
        %871 = vmatpush1.bf16.msra.mxu0 0
        %872 = vmatprep.subr.bf16.mxu0 0
        %873 = vmatpush1.bf16.msra.mxu0 %v856
        %874 = vmatprep.subr.bf16.mxu0 0
        %875 = vmatpush2.bf16.msra.mxu0 0
        %876 = vmatprep.subr.bf16.mxu0 0
        %877 = vmatpush2.bf16.msra.mxu0 0
        %878 = vmatprep.subr.bf16.mxu0 0
        %879 = vmatpush2.bf16.msra.mxu0 0
        %880 = vmatprep.subr.bf16.mxu0 0
        %881 = vmatpush2.bf16.msra.mxu0 0
        %882 = vmatprep.subr.bf16.mxu0 0
        %883 = vmatpush2.bf16.msra.mxu0 0
        %884 = vmatprep.subr.bf16.mxu0 0
        %885 = vmatpush2.bf16.msra.mxu0 0
        %886 = vmatprep.subr.bf16.mxu0 0
        %887 = vmatpush2.bf16.msra.mxu0 0
        %888 = vmatprep.subr.bf16.mxu0 0
        %889 = vmatpush2.bf16.msra.mxu0 0
        %890 = vmatprep.mubr.bf16.mxu0 0
        %891 = vmatmul.mubr.bf16.gmra.mxu0 %v852
        %v892 = vpop.f32.mrf.mxu0
        %v893 = vadd.f32 0.0, %v892
        %v894 = vpop.f32.mrf.mxu0
        %v895 = vpop.f32.mrf.mxu0
        %v896 = vpop.f32.mrf.mxu0
        %897 = vdwg.mxu0
        %898 = vrot.lane.b32.xlu0 %v587, 64
        %v899 = vpop.permute.xlu0 %898
        %v901 = vsel %vm593, %v846, 0
        %v904 = vsel %vm854, %v899, 0
        %906 = vmatprep.subr.bf16.mxu0 0
        %907 = vmatpush1.bf16.msra.mxu0 0
        %908 = vmatprep.subr.bf16.mxu0 0
        %909 = vmatpush1.bf16.msra.mxu0 0
        %910 = vmatprep.subr.bf16.mxu0 0
        %911 = vmatpush1.bf16.msra.mxu0 0
        %912 = vmatprep.subr.bf16.mxu0 0
        %913 = vmatpush1.bf16.msra.mxu0 0
        %914 = vmatprep.subr.bf16.mxu0 0
        %915 = vmatpush1.bf16.msra.mxu0 0
        %916 = vmatprep.subr.bf16.mxu0 0
        %917 = vmatpush1.bf16.msra.mxu0 0
        %918 = vmatprep.subr.bf16.mxu0 0
        %919 = vmatpush1.bf16.msra.mxu0 0
        %920 = vmatprep.subr.bf16.mxu0 0
        %921 = vmatpush1.bf16.msra.mxu0 %v904
        %922 = vmatprep.subr.bf16.mxu0 0
        %923 = vmatpush2.bf16.msra.mxu0 0
        %924 = vmatprep.subr.bf16.mxu0 0
        %925 = vmatpush2.bf16.msra.mxu0 0
        %926 = vmatprep.subr.bf16.mxu0 0
        %927 = vmatpush2.bf16.msra.mxu0 0
        %928 = vmatprep.subr.bf16.mxu0 0
        %929 = vmatpush2.bf16.msra.mxu0 0
        %930 = vmatprep.subr.bf16.mxu0 0
        %931 = vmatpush2.bf16.msra.mxu0 0
        %932 = vmatprep.subr.bf16.mxu0 0
        %933 = vmatpush2.bf16.msra.mxu0 0
        %934 = vmatprep.subr.bf16.mxu0 0
        %935 = vmatpush2.bf16.msra.mxu0 0
        %936 = vmatprep.subr.bf16.mxu0 0
        %937 = vmatpush2.bf16.msra.mxu0 0
        %938 = vmatprep.mubr.bf16.mxu0 0
        %939 = vmatmul.mubr.bf16.gmra.mxu0 %v901
        %v940 = vpop.f32.mrf.mxu0
        %v941 = vadd.f32 0.0, %v940
        %v942 = vpop.f32.mrf.mxu0
        %v943 = vpop.f32.mrf.mxu0
        %v944 = vpop.f32.mrf.mxu0
        %945 = vdwg.mxu0
        %946 = vrot.lane.b32.xlu0 %v588, 64
        %v947 = vpop.permute.xlu0 %946
        %v949 = vsel %vm593, %v847, 0
        %v952 = vsel %vm854, %v947, 0
        %954 = vmatprep.subr.bf16.mxu0 0
        %955 = vmatpush1.bf16.msra.mxu0 0
        %956 = vmatprep.subr.bf16.mxu0 0
        %957 = vmatpush1.bf16.msra.mxu0 0
        %958 = vmatprep.subr.bf16.mxu0 0
        %959 = vmatpush1.bf16.msra.mxu0 0
        %960 = vmatprep.subr.bf16.mxu0 0
        %961 = vmatpush1.bf16.msra.mxu0 0
        %962 = vmatprep.subr.bf16.mxu0 0
        %963 = vmatpush1.bf16.msra.mxu0 0
        %964 = vmatprep.subr.bf16.mxu0 0
        %965 = vmatpush1.bf16.msra.mxu0 0
        %966 = vmatprep.subr.bf16.mxu0 0
        %967 = vmatpush1.bf16.msra.mxu0 0
        %968 = vmatprep.subr.bf16.mxu0 0
        %969 = vmatpush1.bf16.msra.mxu0 %v952
        %970 = vmatprep.subr.bf16.mxu0 0
        %971 = vmatpush2.bf16.msra.mxu0 0
        %972 = vmatprep.subr.bf16.mxu0 0
        %973 = vmatpush2.bf16.msra.mxu0 0
        %974 = vmatprep.subr.bf16.mxu0 0
        %975 = vmatpush2.bf16.msra.mxu0 0
        %976 = vmatprep.subr.bf16.mxu0 0
        %977 = vmatpush2.bf16.msra.mxu0 0
        %978 = vmatprep.subr.bf16.mxu0 0
        %979 = vmatpush2.bf16.msra.mxu0 0
        %980 = vmatprep.subr.bf16.mxu0 0
        %981 = vmatpush2.bf16.msra.mxu0 0
        %982 = vmatprep.subr.bf16.mxu0 0
        %983 = vmatpush2.bf16.msra.mxu0 0
        %984 = vmatprep.subr.bf16.mxu0 0
        %985 = vmatpush2.bf16.msra.mxu0 0
        %986 = vmatprep.mubr.bf16.mxu0 0
        %987 = vmatmul.mubr.bf16.gmra.mxu0 %v949
        %v988 = vpop.f32.mrf.mxu0
        %v989 = vadd.f32 0.0, %v988
        %v990 = vpop.f32.mrf.mxu0
        %v991 = vpop.f32.mrf.mxu0
        %v992 = vpop.f32.mrf.mxu0
        %993 = vdwg.mxu0
        %994 = vrot.lane.b32.xlu0 %v589, 64
        %v995 = vpop.permute.xlu0 %994
        %v997 = vsel %vm593, %v848, 0
        %v1000 = vsel %vm854, %v995, 0
        %1002 = vmatprep.subr.bf16.mxu0 0
        %1003 = vmatpush1.bf16.msra.mxu0 0
        %1004 = vmatprep.subr.bf16.mxu0 0
        %1005 = vmatpush1.bf16.msra.mxu0 0
        %1006 = vmatprep.subr.bf16.mxu0 0
        %1007 = vmatpush1.bf16.msra.mxu0 0
        %1008 = vmatprep.subr.bf16.mxu0 0
        %1009 = vmatpush1.bf16.msra.mxu0 0
        %1010 = vmatprep.subr.bf16.mxu0 0
        %1011 = vmatpush1.bf16.msra.mxu0 0
        %1012 = vmatprep.subr.bf16.mxu0 0
        %1013 = vmatpush1.bf16.msra.mxu0 0
        %1014 = vmatprep.subr.bf16.mxu0 0
        %1015 = vmatpush1.bf16.msra.mxu0 0
        %1016 = vmatprep.subr.bf16.mxu0 0
        %1017 = vmatpush1.bf16.msra.mxu0 %v1000
        %1018 = vmatprep.subr.bf16.mxu0 0
        %1019 = vmatpush2.bf16.msra.mxu0 0
        %1020 = vmatprep.subr.bf16.mxu0 0
        %1021 = vmatpush2.bf16.msra.mxu0 0
        %1022 = vmatprep.subr.bf16.mxu0 0
        %1023 = vmatpush2.bf16.msra.mxu0 0
        %1024 = vmatprep.subr.bf16.mxu0 0
        %1025 = vmatpush2.bf16.msra.mxu0 0
        %1026 = vmatprep.subr.bf16.mxu0 0
        %1027 = vmatpush2.bf16.msra.mxu0 0
        %1028 = vmatprep.subr.bf16.mxu0 0
        %1029 = vmatpush2.bf16.msra.mxu0 0
        %1030 = vmatprep.subr.bf16.mxu0 0
        %1031 = vmatpush2.bf16.msra.mxu0 0
        %1032 = vmatprep.subr.bf16.mxu0 0
        %1033 = vmatpush2.bf16.msra.mxu0 0
        %1034 = vmatprep.mubr.bf16.mxu0 0
        %1035 = vmatmul.mubr.bf16.gmra.mxu0 %v997
        %v1036 = vpop.f32.mrf.mxu0
        %v1037 = vadd.f32 0.0, %v1036
        %v1038 = vpop.f32.mrf.mxu0
        %v1039 = vpop.f32.mrf.mxu0
        %v1040 = vpop.f32.mrf.mxu0
        %1041 = vdwg.mxu0
        %1043 = vrot.lane.b32.xlu0 %v941, 8
        %v1044 = vpop.permute.xlu0 %1043
        %1047 = vrot.lane.b32.xlu0 %v989, 16
        %v1048 = vpop.permute.xlu0 %1047
        %1051 = vrot.lane.b32.xlu0 %v1037, 24
        %v1052 = vpop.permute.xlu0 %1051
        %v1054 = vsel %vm593, %v893, %v1044
        %vm1055 = vcmask 130048
        %v1056 = vsel %vm1055, %v1054, %v1048
        %vm1057 = vcmask 195584
        %v1058 = vsel %vm1057, %v1056, %v1052
        %v1059 = vpack.c.bf16 %v1058, %v1058
        %v1060 = vld [vmem:[%s5] sm:$0xf]
        %v1061 = vld [vmem:[%s5 + $0x4] sm:$0xf]
        %v1062 = vld [vmem:[%s5 + $0x8] sm:$0xf]
        %v1063 = vld [vmem:[%s5 + $0xc] sm:$0xf]
        %v1064 = vlaneseq
        %v1065 = vshrl.u32 %v1064, 7
        %v1066 = vsub.s32 0, %v1065
        %v1067 = vrot.slane %v508, %v1066
        %v1072 = vunpack.c.l.b16 %v1060
        %v1073 = vunpack.c.l.b16 %v1061
        %v1074 = vunpack.c.l.b16 %v1062
        %v1075 = vunpack.c.l.b16 %v1063
        %v1076 = vpack.c.b16 %v1073, %v1072
        %v1077 = vpack.c.b16 %v1075, %v1074
        %v1081 = vsel %vm480, %v1059, 0
        %1083 = vmatprep.subr.bf16.mxu0 0
        %1084 = vmatpush1.bf16.msra.mxu0 0
        %1085 = vmatprep.subr.bf16.mxu0 0
        %1086 = vmatpush1.bf16.msra.mxu0 0
        %1087 = vmatprep.subr.bf16.mxu0 0
        %1088 = vmatpush1.bf16.msra.mxu0 0
        %1089 = vmatprep.subr.bf16.mxu0 0
        %1090 = vmatpush1.bf16.msra.mxu0 0
        %1091 = vmatprep.subr.bf16.mxu0 0
        %1092 = vmatpush1.bf16.msra.mxu0 0
        %1093 = vmatprep.subr.bf16.mxu0 0
        %1094 = vmatpush1.bf16.msra.mxu0 0
        %1095 = vmatprep.subr.bf16.mxu0 0
        %1096 = vmatpush1.bf16.msra.mxu0 %v1077
        %1097 = vmatprep.subr.bf16.mxu0 0
        %1098 = vmatpush1.bf16.msra.mxu0 %v1076
        %1099 = vmatprep.subr.bf16.mxu0 0
        %1100 = vmatpush2.bf16.msra.mxu0 0
        %1101 = vmatprep.subr.bf16.mxu0 0
        %1102 = vmatpush2.bf16.msra.mxu0 0
        %1103 = vmatprep.subr.bf16.mxu0 0
        %1104 = vmatpush2.bf16.msra.mxu0 0
        %1105 = vmatprep.subr.bf16.mxu0 0
        %1106 = vmatpush2.bf16.msra.mxu0 0
        %1107 = vmatprep.subr.bf16.mxu0 0
        %1108 = vmatpush2.bf16.msra.mxu0 0
        %1109 = vmatprep.subr.bf16.mxu0 0
        %1110 = vmatpush2.bf16.msra.mxu0 0
        %1111 = vmatprep.subr.bf16.mxu0 0
        %1112 = vmatpush2.bf16.msra.mxu0 0
        %1113 = vmatprep.subr.bf16.mxu0 0
        %1114 = vmatpush2.bf16.msra.mxu0 0
        %1115 = vmatprep.mubr.bf16.mxu0 0
        %1116 = vmatmul.mubr.bf16.gmra.mxu0 %v1081
        %v1117 = vpop.f32.mrf.mxu0
        %v1118 = vadd.f32 %v1067, %v1117
        %v1119 = vpop.f32.mrf.mxu0
        %v1120 = vpop.f32.mrf.mxu0
        %v1121 = vpop.f32.mrf.mxu0
        %1122 = vdwg.mxu0
        %v1123 = vadd.f32 %v504, %v1118
        %v1124 = vsel %vm480, %v1123, 0.0
        %1125 = vadd.xlane.f32.xlu0 %v1124
        %v1126 = vpop.xlane.xlu0 %1125
        %v1127 = vmul.f32 %v1126, %v484
        %v1128 = vsub.f32 %v1123, %v1127
        %v1129 = vmul.f32 %v1128, %v1128
        %v1130 = vsel %vm480, %v1129, 0.0
        %1131 = vadd.xlane.f32.xlu0 %v1130
        %v1132 = vpop.xlane.xlu0 %1131
        %v1133 = vmul.f32 %v1132, %v484
        %v1134 = vadd.f32 %v1133, 1e-12
        %v1135 = vrsqrt.pop %v1134
        %v1136 = vmul.f32 %v1128, %v1135
        %v1137 = vlaneseq
        %v1138 = vshrl.u32 %v1137, 7
        %v1139 = vsub.s32 1, %v1138
        %v1140 = vrot.slane %v508, %v1139
        %v1141 = vmul.f32 %v1136, %v1140
        %v1142 = vlaneseq
        %v1143 = vshrl.u32 %v1142, 7
        %v1144 = vsub.s32 2, %v1143
        %v1145 = vrot.slane %v508, %v1144
        %v1146 = vadd.f32 %v1141, %v1145
        %v1147 = vpack.c.bf16 %v1146, %v1146
        %v1148 = vld [vmem:[%s6] sm:$0xf]
        %v1149 = vld [vmem:[%s6 + $0x4] sm:$0xf]
        %v1150 = vld [vmem:[%s6 + $0x8] sm:$0xf]
        %v1151 = vld [vmem:[%s6 + $0xc] sm:$0xf]
        %v1152 = vld [vmem:[%s7] sm:$0x1]
        %v1154 = vlaneseq
        %v1155 = vshrl.u32 %v1154, 7
        %v1156 = vsub.s32 0, %v1155
        %v1157 = vrot.slane %v1152, %v1156
        %v1163 = vunpack.c.l.b16 %v1148
        %v1164 = vunpack.c.l.b16 %v1149
        %v1165 = vunpack.c.l.b16 %v1150
        %v1166 = vunpack.c.l.b16 %v1151
        %v1167 = vpack.c.b16 %v1164, %v1163
        %v1168 = vpack.c.b16 %v1166, %v1165
        %v1172 = vsel %vm480, %v1147, 0
        %1174 = vmatprep.subr.bf16.mxu0 0
        %1175 = vmatpush1.bf16.msra.mxu0 0
        %1176 = vmatprep.subr.bf16.mxu0 0
        %1177 = vmatpush1.bf16.msra.mxu0 0
        %1178 = vmatprep.subr.bf16.mxu0 0
        %1179 = vmatpush1.bf16.msra.mxu0 0
        %1180 = vmatprep.subr.bf16.mxu0 0
        %1181 = vmatpush1.bf16.msra.mxu0 0
        %1182 = vmatprep.subr.bf16.mxu0 0
        %1183 = vmatpush1.bf16.msra.mxu0 0
        %1184 = vmatprep.subr.bf16.mxu0 0
        %1185 = vmatpush1.bf16.msra.mxu0 0
        %1186 = vmatprep.subr.bf16.mxu0 0
        %1187 = vmatpush1.bf16.msra.mxu0 %v1168
        %1188 = vmatprep.subr.bf16.mxu0 0
        %1189 = vmatpush1.bf16.msra.mxu0 %v1167
        %1190 = vmatprep.subr.bf16.mxu0 0
        %1191 = vmatpush2.bf16.msra.mxu0 0
        %1192 = vmatprep.subr.bf16.mxu0 0
        %1193 = vmatpush2.bf16.msra.mxu0 0
        %1194 = vmatprep.subr.bf16.mxu0 0
        %1195 = vmatpush2.bf16.msra.mxu0 0
        %1196 = vmatprep.subr.bf16.mxu0 0
        %1197 = vmatpush2.bf16.msra.mxu0 0
        %1198 = vmatprep.subr.bf16.mxu0 0
        %1199 = vmatpush2.bf16.msra.mxu0 0
        %1200 = vmatprep.subr.bf16.mxu0 0
        %1201 = vmatpush2.bf16.msra.mxu0 0
        %1202 = vmatprep.subr.bf16.mxu0 0
        %1203 = vmatpush2.bf16.msra.mxu0 0
        %1204 = vmatprep.subr.bf16.mxu0 0
        %1205 = vmatpush2.bf16.msra.mxu0 0
        %1206 = vmatprep.mubr.bf16.mxu0 0
        %1207 = vmatmul.mubr.bf16.gmra.mxu0 %v1172
        %v1208 = vpop.f32.mrf.mxu0
        %v1209 = vadd.f32 %v1157, %v1208
        %v1210 = vpop.f32.mrf.mxu0
        %v1211 = vpop.f32.mrf.mxu0
        %v1212 = vpop.f32.mrf.mxu0
        %1213 = vdwg.mxu0
        %v1214 = vmul.f32 %v1209, %v1209
        %v1215 = vmul.f32 %v1209, %v1214
        %v1216 = vmul.f32 %v1215, 0.044715
        %v1217 = vadd.f32 %v1209, %v1216
        %v1218 = vmul.f32 %v1217, 0.7978846
        %v1219 = vtanh.pop %v1218
        %v1220 = vadd.f32 %v1219, 1.0
        %v1221 = vmul.f32 %v1220, 0.5
        %v1222 = vmul.f32 %v1209, %v1221
        %v1223 = vpack.c.bf16 %v1222, %v1222
        %v1224 = vld [vmem:[%s8] sm:$0xf]
        %v1225 = vld [vmem:[%s8 + $0x4] sm:$0xf]
        %v1226 = vld [vmem:[%s8 + $0x8] sm:$0xf]
        %v1227 = vld [vmem:[%s8 + $0xc] sm:$0xf]
        %v1228 = vld [vmem:[%s8 + $0x10] sm:$0xf]
        %v1229 = vld [vmem:[%s8 + $0x14] sm:$0xf]
        %v1230 = vld [vmem:[%s8 + $0x18] sm:$0xf]
        %v1231 = vld [vmem:[%s8 + $0x1c] sm:$0xf]
        %v1232 = vlaneseq
        %v1233 = vshrl.u32 %v1232, 7
        %v1234 = vsub.s32 3, %v1233
        %v1235 = vrot.slane %v508, %v1234
        %v1244 = vunpack.c.l.b16 %v1224
        %v1245 = vunpack.c.l.b16 %v1225
        %v1246 = vunpack.c.l.b16 %v1226
        %v1247 = vunpack.c.l.b16 %v1227
        %v1248 = vunpack.c.l.b16 %v1228
        %v1249 = vunpack.c.l.b16 %v1229
        %v1250 = vunpack.c.l.b16 %v1230
        %v1251 = vunpack.c.l.b16 %v1231
        %v1252 = vpack.c.b16 %v1245, %v1244
        %v1253 = vpack.c.b16 %v1247, %v1246
        %v1254 = vpack.c.b16 %v1249, %v1248
        %v1255 = vpack.c.b16 %v1251, %v1250
        %vm1260 = vcmask 523264
        %v1262 = vsel %vm1260, %v1223, 0
        %1264 = vmatprep.subr.bf16.mxu0 0
        %1265 = vmatpush1.bf16.msra.mxu0 0
        %1266 = vmatprep.subr.bf16.mxu0 0
        %1267 = vmatpush1.bf16.msra.mxu0 0
        %1268 = vmatprep.subr.bf16.mxu0 0
        %1269 = vmatpush1.bf16.msra.mxu0 0
        %1270 = vmatprep.subr.bf16.mxu0 0
        %1271 = vmatpush1.bf16.msra.mxu0 0
        %1272 = vmatprep.subr.bf16.mxu0 0
        %1273 = vmatpush1.bf16.msra.mxu0 %v1255
        %1274 = vmatprep.subr.bf16.mxu0 0
        %1275 = vmatpush1.bf16.msra.mxu0 %v1254
        %1276 = vmatprep.subr.bf16.mxu0 0
        %1277 = vmatpush1.bf16.msra.mxu0 %v1253
        %1278 = vmatprep.subr.bf16.mxu0 0
        %1279 = vmatpush1.bf16.msra.mxu0 %v1252
        %1280 = vmatprep.subr.bf16.mxu0 0
        %1281 = vmatpush2.bf16.msra.mxu0 0
        %1282 = vmatprep.subr.bf16.mxu0 0
        %1283 = vmatpush2.bf16.msra.mxu0 0
        %1284 = vmatprep.subr.bf16.mxu0 0
        %1285 = vmatpush2.bf16.msra.mxu0 0
        %1286 = vmatprep.subr.bf16.mxu0 0
        %1287 = vmatpush2.bf16.msra.mxu0 0
        %1288 = vmatprep.subr.bf16.mxu0 0
        %1289 = vmatpush2.bf16.msra.mxu0 0
        %1290 = vmatprep.subr.bf16.mxu0 0
        %1291 = vmatpush2.bf16.msra.mxu0 0
        %1292 = vmatprep.subr.bf16.mxu0 0
        %1293 = vmatpush2.bf16.msra.mxu0 0
        %1294 = vmatprep.subr.bf16.mxu0 0
        %1295 = vmatpush2.bf16.msra.mxu0 0
        %1296 = vmatprep.mubr.bf16.mxu0 0
        %1297 = vmatmul.mubr.bf16.gmra.mxu0 %v1262
        %v1298 = vpop.f32.mrf.mxu0
        %v1299 = vadd.f32 %v1235, %v1298
        %v1300 = vpop.f32.mrf.mxu0
        %v1301 = vpop.f32.mrf.mxu0
        %v1302 = vpop.f32.mrf.mxu0
        %1303 = vdwg.mxu0
        %v1304 = vadd.f32 %v1146, %v1299
        %v1305 = vsel %vm480, %v1304, 0.0
        %1306 = vadd.xlane.f32.xlu0 %v1305
        %v1307 = vpop.xlane.xlu0 %1306
        %v1308 = vmul.f32 %v1307, %v484
        %v1309 = vsub.f32 %v1304, %v1308
        %v1310 = vmul.f32 %v1309, %v1309
        %v1311 = vsel %vm480, %v1310, 0.0
        %1312 = vadd.xlane.f32.xlu0 %v1311
        %v1313 = vpop.xlane.xlu0 %1312
        %v1314 = vmul.f32 %v1313, %v484
        %v1315 = vadd.f32 %v1314, 1e-12
        %v1316 = vrsqrt.pop %v1315
        %v1317 = vmul.f32 %v1309, %v1316
        %v1318 = vlaneseq
        %v1319 = vshrl.u32 %v1318, 7
        %v1320 = vsub.s32 4, %v1319
        %v1321 = vrot.slane %v508, %v1320
        %v1322 = vmul.f32 %v1317, %v1321
        %v1323 = vlaneseq
        %v1324 = vshrl.u32 %v1323, 7
        %v1325 = vsub.s32 5, %v1324
        %v1326 = vrot.slane %v508, %v1325
        %v1327 = vadd.f32 %v1322, %v1326
        %s1328 = scalar_lea.vmem %s9, 8
        %v1329 = vld [vmem:[%s1328] sm:$0x3f]
        %v1330 = vpack.c.bf16 %v1327, %v1327
        %s1331 = scalar_lea.vmem %s3, 16
        %v1332 = vld [vmem:[%s1331] sm:$0xf]
        %v1333 = vld [vmem:[%s1331 + $0x4] sm:$0xf]
        %v1334 = vld [vmem:[%s1331 + $0x8] sm:$0xf]
        %v1335 = vld [vmem:[%s1331 + $0xc] sm:$0xf]
        %s1336 = scalar_lea.vmem %s4, 1
        %v1337 = vld [vmem:[%s1336] sm:$0x1]
        %v1339 = vlaneseq
        %v1340 = vshrl.u32 %v1339, 7
        %v1341 = vsub.s32 0, %v1340
        %v1342 = vrot.slane %v1337, %v1341
        %v1348 = vunpack.c.l.b16 %v1332
        %v1349 = vunpack.c.l.b16 %v1333
        %v1350 = vunpack.c.l.b16 %v1334
        %v1351 = vunpack.c.l.b16 %v1335
        %v1352 = vpack.c.b16 %v1349, %v1348
        %v1353 = vpack.c.b16 %v1351, %v1350
        %v1357 = vsel %vm480, %v1330, 0
        %1359 = vmatprep.subr.bf16.mxu0 0
        %1360 = vmatpush1.bf16.msra.mxu0 0
        %1361 = vmatprep.subr.bf16.mxu0 0
        %1362 = vmatpush1.bf16.msra.mxu0 0
        %1363 = vmatprep.subr.bf16.mxu0 0
        %1364 = vmatpush1.bf16.msra.mxu0 0
        %1365 = vmatprep.subr.bf16.mxu0 0
        %1366 = vmatpush1.bf16.msra.mxu0 0
        %1367 = vmatprep.subr.bf16.mxu0 0
        %1368 = vmatpush1.bf16.msra.mxu0 0
        %1369 = vmatprep.subr.bf16.mxu0 0
        %1370 = vmatpush1.bf16.msra.mxu0 0
        %1371 = vmatprep.subr.bf16.mxu0 0
        %1372 = vmatpush1.bf16.msra.mxu0 %v1353
        %1373 = vmatprep.subr.bf16.mxu0 0
        %1374 = vmatpush1.bf16.msra.mxu0 %v1352
        %1375 = vmatprep.subr.bf16.mxu0 0
        %1376 = vmatpush2.bf16.msra.mxu0 0
        %1377 = vmatprep.subr.bf16.mxu0 0
        %1378 = vmatpush2.bf16.msra.mxu0 0
        %1379 = vmatprep.subr.bf16.mxu0 0
        %1380 = vmatpush2.bf16.msra.mxu0 0
        %1381 = vmatprep.subr.bf16.mxu0 0
        %1382 = vmatpush2.bf16.msra.mxu0 0
        %1383 = vmatprep.subr.bf16.mxu0 0
        %1384 = vmatpush2.bf16.msra.mxu0 0
        %1385 = vmatprep.subr.bf16.mxu0 0
        %1386 = vmatpush2.bf16.msra.mxu0 0
        %1387 = vmatprep.subr.bf16.mxu0 0
        %1388 = vmatpush2.bf16.msra.mxu0 0
        %1389 = vmatprep.subr.bf16.mxu0 0
        %1390 = vmatpush2.bf16.msra.mxu0 0
        %1391 = vmatprep.mubr.bf16.mxu0 0
        %1392 = vmatmul.mubr.bf16.gmra.mxu0 %v1357
        %v1393 = vpop.f32.mrf.mxu0
        %v1394 = vadd.f32 %v1342, %v1393
        %v1395 = vpop.f32.mrf.mxu0
        %v1396 = vpop.f32.mrf.mxu0
        %v1397 = vpop.f32.mrf.mxu0
        %1398 = vdwg.mxu0
        %1400 = vrot.lane.b32.xlu0 %v1394, 120
        %v1401 = vpop.permute.xlu0 %1400
        %1403 = vrot.lane.b32.xlu0 %v1394, 112
        %v1404 = vpop.permute.xlu0 %1403
        %1406 = vrot.lane.b32.xlu0 %v1394, 104
        %v1407 = vpop.permute.xlu0 %1406
        %v1409 = vpack.c.bf16 %v1394, %v1394
        %v1410 = vpack.c.bf16 %v1401, %v1401
        %v1411 = vpack.c.bf16 %v1404, %v1404
        %v1412 = vpack.c.bf16 %v1407, %v1407
        %1414 = vrot.lane.b32.xlu0 %v1409, 96
        %v1415 = vpop.permute.xlu0 %1414
        %v1417 = vsel %vm593, %v1409, 0
        %v1420 = vsel %vm593, %v1415, 0
        %1422 = vmatprep.subr.bf16.mxu0 0
        %1423 = vmatpush1.bf16.xpose.msra.mxu0 0
        %1424 = vmatprep.subr.bf16.mxu0 0
        %1425 = vmatpush1.bf16.xpose.msra.mxu0 0
        %1426 = vmatprep.subr.bf16.mxu0 0
        %1427 = vmatpush1.bf16.xpose.msra.mxu0 0
        %1428 = vmatprep.subr.bf16.mxu0 0
        %1429 = vmatpush1.bf16.xpose.msra.mxu0 0
        %1430 = vmatprep.subr.bf16.mxu0 0
        %1431 = vmatpush1.bf16.xpose.msra.mxu0 0
        %1432 = vmatprep.subr.bf16.mxu0 0
        %1433 = vmatpush1.bf16.xpose.msra.mxu0 0
        %1434 = vmatprep.subr.bf16.mxu0 0
        %1435 = vmatpush1.bf16.xpose.msra.mxu0 0
        %1436 = vmatprep.subr.bf16.mxu0 0
        %1437 = vmatpush1.bf16.xpose.msra.mxu0 %v1420
        %1438 = vmatprep.subr.bf16.mxu0 0
        %1439 = vmatpush2.bf16.xpose.msra.mxu0 0
        %1440 = vmatprep.subr.bf16.mxu0 0
        %1441 = vmatpush2.bf16.xpose.msra.mxu0 0
        %1442 = vmatprep.subr.bf16.mxu0 0
        %1443 = vmatpush2.bf16.xpose.msra.mxu0 0
        %1444 = vmatprep.subr.bf16.mxu0 0
        %1445 = vmatpush2.bf16.xpose.msra.mxu0 0
        %1446 = vmatprep.subr.bf16.mxu0 0
        %1447 = vmatpush2.bf16.xpose.msra.mxu0 0
        %1448 = vmatprep.subr.bf16.mxu0 0
        %1449 = vmatpush2.bf16.xpose.msra.mxu0 0
        %1450 = vmatprep.subr.bf16.mxu0 0
        %1451 = vmatpush2.bf16.xpose.msra.mxu0 0
        %1452 = vmatprep.subr.bf16.mxu0 0
        %1453 = vmatpush2.bf16.xpose.msra.mxu0 0
        %1454 = vmatprep.mubr.bf16.mxu0 0
        %1455 = vmatmul.mubr.bf16.gmra.mxu0 %v1417
        %v1456 = vpop.f32.mrf.mxu0
        %v1457 = vadd.f32 0.0, %v1456
        %v1458 = vpop.f32.mrf.mxu0
        %v1459 = vpop.f32.mrf.mxu0
        %v1460 = vpop.f32.mrf.mxu0
        %1461 = vdwg.mxu0
        %1463 = vrot.lane.b32.xlu0 %v1410, 96
        %v1464 = vpop.permute.xlu0 %1463
        %v1466 = vsel %vm593, %v1410, 0
        %v1469 = vsel %vm593, %v1464, 0
        %1471 = vmatprep.subr.bf16.mxu0 0
        %1472 = vmatpush1.bf16.xpose.msra.mxu0 0
        %1473 = vmatprep.subr.bf16.mxu0 0
        %1474 = vmatpush1.bf16.xpose.msra.mxu0 0
        %1475 = vmatprep.subr.bf16.mxu0 0
        %1476 = vmatpush1.bf16.xpose.msra.mxu0 0
        %1477 = vmatprep.subr.bf16.mxu0 0
        %1478 = vmatpush1.bf16.xpose.msra.mxu0 0
        %1479 = vmatprep.subr.bf16.mxu0 0
        %1480 = vmatpush1.bf16.xpose.msra.mxu0 0
        %1481 = vmatprep.subr.bf16.mxu0 0
        %1482 = vmatpush1.bf16.xpose.msra.mxu0 0
        %1483 = vmatprep.subr.bf16.mxu0 0
        %1484 = vmatpush1.bf16.xpose.msra.mxu0 0
        %1485 = vmatprep.subr.bf16.mxu0 0
        %1486 = vmatpush1.bf16.xpose.msra.mxu0 %v1469
        %1487 = vmatprep.subr.bf16.mxu0 0
        %1488 = vmatpush2.bf16.xpose.msra.mxu0 0
        %1489 = vmatprep.subr.bf16.mxu0 0
        %1490 = vmatpush2.bf16.xpose.msra.mxu0 0
        %1491 = vmatprep.subr.bf16.mxu0 0
        %1492 = vmatpush2.bf16.xpose.msra.mxu0 0
        %1493 = vmatprep.subr.bf16.mxu0 0
        %1494 = vmatpush2.bf16.xpose.msra.mxu0 0
        %1495 = vmatprep.subr.bf16.mxu0 0
        %1496 = vmatpush2.bf16.xpose.msra.mxu0 0
        %1497 = vmatprep.subr.bf16.mxu0 0
        %1498 = vmatpush2.bf16.xpose.msra.mxu0 0
        %1499 = vmatprep.subr.bf16.mxu0 0
        %1500 = vmatpush2.bf16.xpose.msra.mxu0 0
        %1501 = vmatprep.subr.bf16.mxu0 0
        %1502 = vmatpush2.bf16.xpose.msra.mxu0 0
        %1503 = vmatprep.mubr.bf16.mxu0 0
        %1504 = vmatmul.mubr.bf16.gmra.mxu0 %v1466
        %v1505 = vpop.f32.mrf.mxu0
        %v1506 = vadd.f32 0.0, %v1505
        %v1507 = vpop.f32.mrf.mxu0
        %v1508 = vpop.f32.mrf.mxu0
        %v1509 = vpop.f32.mrf.mxu0
        %1510 = vdwg.mxu0
        %1512 = vrot.lane.b32.xlu0 %v1411, 96
        %v1513 = vpop.permute.xlu0 %1512
        %v1515 = vsel %vm593, %v1411, 0
        %v1518 = vsel %vm593, %v1513, 0
        %1520 = vmatprep.subr.bf16.mxu0 0
        %1521 = vmatpush1.bf16.xpose.msra.mxu0 0
        %1522 = vmatprep.subr.bf16.mxu0 0
        %1523 = vmatpush1.bf16.xpose.msra.mxu0 0
        %1524 = vmatprep.subr.bf16.mxu0 0
        %1525 = vmatpush1.bf16.xpose.msra.mxu0 0
        %1526 = vmatprep.subr.bf16.mxu0 0
        %1527 = vmatpush1.bf16.xpose.msra.mxu0 0
        %1528 = vmatprep.subr.bf16.mxu0 0
        %1529 = vmatpush1.bf16.xpose.msra.mxu0 0
        %1530 = vmatprep.subr.bf16.mxu0 0
        %1531 = vmatpush1.bf16.xpose.msra.mxu0 0
        %1532 = vmatprep.subr.bf16.mxu0 0
        %1533 = vmatpush1.bf16.xpose.msra.mxu0 0
        %1534 = vmatprep.subr.bf16.mxu0 0
        %1535 = vmatpush1.bf16.xpose.msra.mxu0 %v1518
        %1536 = vmatprep.subr.bf16.mxu0 0
        %1537 = vmatpush2.bf16.xpose.msra.mxu0 0
        %1538 = vmatprep.subr.bf16.mxu0 0
        %1539 = vmatpush2.bf16.xpose.msra.mxu0 0
        %1540 = vmatprep.subr.bf16.mxu0 0
        %1541 = vmatpush2.bf16.xpose.msra.mxu0 0
        %1542 = vmatprep.subr.bf16.mxu0 0
        %1543 = vmatpush2.bf16.xpose.msra.mxu0 0
        %1544 = vmatprep.subr.bf16.mxu0 0
        %1545 = vmatpush2.bf16.xpose.msra.mxu0 0
        %1546 = vmatprep.subr.bf16.mxu0 0
        %1547 = vmatpush2.bf16.xpose.msra.mxu0 0
        %1548 = vmatprep.subr.bf16.mxu0 0
        %1549 = vmatpush2.bf16.xpose.msra.mxu0 0
        %1550 = vmatprep.subr.bf16.mxu0 0
        %1551 = vmatpush2.bf16.xpose.msra.mxu0 0
        %1552 = vmatprep.mubr.bf16.mxu0 0
        %1553 = vmatmul.mubr.bf16.gmra.mxu0 %v1515
        %v1554 = vpop.f32.mrf.mxu0
        %v1555 = vadd.f32 0.0, %v1554
        %v1556 = vpop.f32.mrf.mxu0
        %v1557 = vpop.f32.mrf.mxu0
        %v1558 = vpop.f32.mrf.mxu0
        %1559 = vdwg.mxu0
        %1561 = vrot.lane.b32.xlu0 %v1412, 96
        %v1562 = vpop.permute.xlu0 %1561
        %v1564 = vsel %vm593, %v1412, 0
        %v1567 = vsel %vm593, %v1562, 0
        %1569 = vmatprep.subr.bf16.mxu0 0
        %1570 = vmatpush1.bf16.xpose.msra.mxu0 0
        %1571 = vmatprep.subr.bf16.mxu0 0
        %1572 = vmatpush1.bf16.xpose.msra.mxu0 0
        %1573 = vmatprep.subr.bf16.mxu0 0
        %1574 = vmatpush1.bf16.xpose.msra.mxu0 0
        %1575 = vmatprep.subr.bf16.mxu0 0
        %1576 = vmatpush1.bf16.xpose.msra.mxu0 0
        %1577 = vmatprep.subr.bf16.mxu0 0
        %1578 = vmatpush1.bf16.xpose.msra.mxu0 0
        %1579 = vmatprep.subr.bf16.mxu0 0
        %1580 = vmatpush1.bf16.xpose.msra.mxu0 0
        %1581 = vmatprep.subr.bf16.mxu0 0
        %1582 = vmatpush1.bf16.xpose.msra.mxu0 0
        %1583 = vmatprep.subr.bf16.mxu0 0
        %1584 = vmatpush1.bf16.xpose.msra.mxu0 %v1567
        %1585 = vmatprep.subr.bf16.mxu0 0
        %1586 = vmatpush2.bf16.xpose.msra.mxu0 0
        %1587 = vmatprep.subr.bf16.mxu0 0
        %1588 = vmatpush2.bf16.xpose.msra.mxu0 0
        %1589 = vmatprep.subr.bf16.mxu0 0
        %1590 = vmatpush2.bf16.xpose.msra.mxu0 0
        %1591 = vmatprep.subr.bf16.mxu0 0
        %1592 = vmatpush2.bf16.xpose.msra.mxu0 0
        %1593 = vmatprep.subr.bf16.mxu0 0
        %1594 = vmatpush2.bf16.xpose.msra.mxu0 0
        %1595 = vmatprep.subr.bf16.mxu0 0
        %1596 = vmatpush2.bf16.xpose.msra.mxu0 0
        %1597 = vmatprep.subr.bf16.mxu0 0
        %1598 = vmatpush2.bf16.xpose.msra.mxu0 0
        %1599 = vmatprep.subr.bf16.mxu0 0
        %1600 = vmatpush2.bf16.xpose.msra.mxu0 0
        %1601 = vmatprep.mubr.bf16.mxu0 0
        %1602 = vmatmul.mubr.bf16.gmra.mxu0 %v1564
        %v1603 = vpop.f32.mrf.mxu0
        %v1604 = vadd.f32 0.0, %v1603
        %v1605 = vpop.f32.mrf.mxu0
        %v1606 = vpop.f32.mrf.mxu0
        %v1607 = vpop.f32.mrf.mxu0
        %1608 = vdwg.mxu0
        %v1609 = vmul.f32 %v1457, 0.35355338
        %v1610 = vmul.f32 %v1506, 0.35355338
        %v1611 = vmul.f32 %v1555, 0.35355338
        %v1612 = vmul.f32 %v1604, 0.35355338
        %v1613 = vadd.f32 %v1609, %v795
        %v1614 = vadd.f32 %v1610, %v795
        %v1615 = vadd.f32 %v1611, %v795
        %v1616 = vadd.f32 %v1612, %v795
        %v1617 = vsel %vm593, %v1613, -inf
        %1618 = vmax.xlane.f32.xlu0 %v1617
        %v1619 = vpop.xlane.xlu0 %1618
        %v1620 = vsel %vm593, %v1614, -inf
        %1621 = vmax.xlane.f32.xlu0 %v1620
        %v1622 = vpop.xlane.xlu0 %1621
        %v1623 = vsel %vm593, %v1615, -inf
        %1624 = vmax.xlane.f32.xlu0 %v1623
        %v1625 = vpop.xlane.xlu0 %1624
        %v1626 = vsel %vm593, %v1616, -inf
        %1627 = vmax.xlane.f32.xlu0 %v1626
        %v1628 = vpop.xlane.xlu0 %1627
        %v1629 = vsub.f32 %v1613, %v1619
        %v1630 = vsub.f32 %v1614, %v1622
        %v1631 = vsub.f32 %v1615, %v1625
        %v1632 = vsub.f32 %v1616, %v1628
        %v1633 = vmul.f32 %v1629, 1.442695
        %v1634 = vpow.pop %v1633
        %v1635 = vmul.f32 %v1630, 1.442695
        %v1636 = vpow.pop %v1635
        %v1637 = vmul.f32 %v1631, 1.442695
        %v1638 = vpow.pop %v1637
        %v1639 = vmul.f32 %v1632, 1.442695
        %v1640 = vpow.pop %v1639
        %v1641 = vsel %vm593, %v1634, 0.0
        %1642 = vadd.xlane.f32.xlu0 %v1641
        %v1643 = vpop.xlane.xlu0 %1642
        %v1644 = vsel %vm593, %v1636, 0.0
        %1645 = vadd.xlane.f32.xlu0 %v1644
        %v1646 = vpop.xlane.xlu0 %1645
        %v1647 = vsel %vm593, %v1638, 0.0
        %1648 = vadd.xlane.f32.xlu0 %v1647
        %v1649 = vpop.xlane.xlu0 %1648
        %v1650 = vsel %vm593, %v1640, 0.0
        %1651 = vadd.xlane.f32.xlu0 %v1650
        %v1652 = vpop.xlane.xlu0 %1651
        %v1653 = vrcp.pop %v1643
        %v1654 = vrcp.pop %v1646
        %v1655 = vrcp.pop %v1649
        %v1656 = vrcp.pop %v1652
        %v1657 = vmul.f32 %v1634, %v1653
        %v1658 = vmul.f32 %v1636, %v1654
        %v1659 = vmul.f32 %v1638, %v1655
        %v1660 = vmul.f32 %v1640, %v1656
        %v1661 = vpack.c.bf16 %v1657, %v1657
        %v1662 = vpack.c.bf16 %v1658, %v1658
        %v1663 = vpack.c.bf16 %v1659, %v1659
        %v1664 = vpack.c.bf16 %v1660, %v1660
        %1665 = vrot.lane.b32.xlu0 %v1409, 64
        %v1666 = vpop.permute.xlu0 %1665
        %v1668 = vsel %vm593, %v1661, 0
        %v1671 = vsel %vm854, %v1666, 0
        %1673 = vmatprep.subr.bf16.mxu0 0
        %1674 = vmatpush1.bf16.msra.mxu0 0
        %1675 = vmatprep.subr.bf16.mxu0 0
        %1676 = vmatpush1.bf16.msra.mxu0 0
        %1677 = vmatprep.subr.bf16.mxu0 0
        %1678 = vmatpush1.bf16.msra.mxu0 0
        %1679 = vmatprep.subr.bf16.mxu0 0
        %1680 = vmatpush1.bf16.msra.mxu0 0
        %1681 = vmatprep.subr.bf16.mxu0 0
        %1682 = vmatpush1.bf16.msra.mxu0 0
        %1683 = vmatprep.subr.bf16.mxu0 0
        %1684 = vmatpush1.bf16.msra.mxu0 0
        %1685 = vmatprep.subr.bf16.mxu0 0
        %1686 = vmatpush1.bf16.msra.mxu0 0
        %1687 = vmatprep.subr.bf16.mxu0 0
        %1688 = vmatpush1.bf16.msra.mxu0 %v1671
        %1689 = vmatprep.subr.bf16.mxu0 0
        %1690 = vmatpush2.bf16.msra.mxu0 0
        %1691 = vmatprep.subr.bf16.mxu0 0
        %1692 = vmatpush2.bf16.msra.mxu0 0
        %1693 = vmatprep.subr.bf16.mxu0 0
        %1694 = vmatpush2.bf16.msra.mxu0 0
        %1695 = vmatprep.subr.bf16.mxu0 0
        %1696 = vmatpush2.bf16.msra.mxu0 0
        %1697 = vmatprep.subr.bf16.mxu0 0
        %1698 = vmatpush2.bf16.msra.mxu0 0
        %1699 = vmatprep.subr.bf16.mxu0 0
        %1700 = vmatpush2.bf16.msra.mxu0 0
        %1701 = vmatprep.subr.bf16.mxu0 0
        %1702 = vmatpush2.bf16.msra.mxu0 0
        %1703 = vmatprep.subr.bf16.mxu0 0
        %1704 = vmatpush2.bf16.msra.mxu0 0
        %1705 = vmatprep.mubr.bf16.mxu0 0
        %1706 = vmatmul.mubr.bf16.gmra.mxu0 %v1668
        %v1707 = vpop.f32.mrf.mxu0
        %v1708 = vadd.f32 0.0, %v1707
        %v1709 = vpop.f32.mrf.mxu0
        %v1710 = vpop.f32.mrf.mxu0
        %v1711 = vpop.f32.mrf.mxu0
        %1712 = vdwg.mxu0
        %1713 = vrot.lane.b32.xlu0 %v1410, 64
        %v1714 = vpop.permute.xlu0 %1713
        %v1716 = vsel %vm593, %v1662, 0
        %v1719 = vsel %vm854, %v1714, 0
        %1721 = vmatprep.subr.bf16.mxu0 0
        %1722 = vmatpush1.bf16.msra.mxu0 0
        %1723 = vmatprep.subr.bf16.mxu0 0
        %1724 = vmatpush1.bf16.msra.mxu0 0
        %1725 = vmatprep.subr.bf16.mxu0 0
        %1726 = vmatpush1.bf16.msra.mxu0 0
        %1727 = vmatprep.subr.bf16.mxu0 0
        %1728 = vmatpush1.bf16.msra.mxu0 0
        %1729 = vmatprep.subr.bf16.mxu0 0
        %1730 = vmatpush1.bf16.msra.mxu0 0
        %1731 = vmatprep.subr.bf16.mxu0 0
        %1732 = vmatpush1.bf16.msra.mxu0 0
        %1733 = vmatprep.subr.bf16.mxu0 0
        %1734 = vmatpush1.bf16.msra.mxu0 0
        %1735 = vmatprep.subr.bf16.mxu0 0
        %1736 = vmatpush1.bf16.msra.mxu0 %v1719
        %1737 = vmatprep.subr.bf16.mxu0 0
        %1738 = vmatpush2.bf16.msra.mxu0 0
        %1739 = vmatprep.subr.bf16.mxu0 0
        %1740 = vmatpush2.bf16.msra.mxu0 0
        %1741 = vmatprep.subr.bf16.mxu0 0
        %1742 = vmatpush2.bf16.msra.mxu0 0
        %1743 = vmatprep.subr.bf16.mxu0 0
        %1744 = vmatpush2.bf16.msra.mxu0 0
        %1745 = vmatprep.subr.bf16.mxu0 0
        %1746 = vmatpush2.bf16.msra.mxu0 0
        %1747 = vmatprep.subr.bf16.mxu0 0
        %1748 = vmatpush2.bf16.msra.mxu0 0
        %1749 = vmatprep.subr.bf16.mxu0 0
        %1750 = vmatpush2.bf16.msra.mxu0 0
        %1751 = vmatprep.subr.bf16.mxu0 0
        %1752 = vmatpush2.bf16.msra.mxu0 0
        %1753 = vmatprep.mubr.bf16.mxu0 0
        %1754 = vmatmul.mubr.bf16.gmra.mxu0 %v1716
        %v1755 = vpop.f32.mrf.mxu0
        %v1756 = vadd.f32 0.0, %v1755
        %v1757 = vpop.f32.mrf.mxu0
        %v1758 = vpop.f32.mrf.mxu0
        %v1759 = vpop.f32.mrf.mxu0
        %1760 = vdwg.mxu0
        %1761 = vrot.lane.b32.xlu0 %v1411, 64
        %v1762 = vpop.permute.xlu0 %1761
        %v1764 = vsel %vm593, %v1663, 0
        %v1767 = vsel %vm854, %v1762, 0
        %1769 = vmatprep.subr.bf16.mxu0 0
        %1770 = vmatpush1.bf16.msra.mxu0 0
        %1771 = vmatprep.subr.bf16.mxu0 0
        %1772 = vmatpush1.bf16.msra.mxu0 0
        %1773 = vmatprep.subr.bf16.mxu0 0
        %1774 = vmatpush1.bf16.msra.mxu0 0
        %1775 = vmatprep.subr.bf16.mxu0 0
        %1776 = vmatpush1.bf16.msra.mxu0 0
        %1777 = vmatprep.subr.bf16.mxu0 0
        %1778 = vmatpush1.bf16.msra.mxu0 0
        %1779 = vmatprep.subr.bf16.mxu0 0
        %1780 = vmatpush1.bf16.msra.mxu0 0
        %1781 = vmatprep.subr.bf16.mxu0 0
        %1782 = vmatpush1.bf16.msra.mxu0 0
        %1783 = vmatprep.subr.bf16.mxu0 0
        %1784 = vmatpush1.bf16.msra.mxu0 %v1767
        %1785 = vmatprep.subr.bf16.mxu0 0
        %1786 = vmatpush2.bf16.msra.mxu0 0
        %1787 = vmatprep.subr.bf16.mxu0 0
        %1788 = vmatpush2.bf16.msra.mxu0 0
        %1789 = vmatprep.subr.bf16.mxu0 0
        %1790 = vmatpush2.bf16.msra.mxu0 0
        %1791 = vmatprep.subr.bf16.mxu0 0
        %1792 = vmatpush2.bf16.msra.mxu0 0
        %1793 = vmatprep.subr.bf16.mxu0 0
        %1794 = vmatpush2.bf16.msra.mxu0 0
        %1795 = vmatprep.subr.bf16.mxu0 0
        %1796 = vmatpush2.bf16.msra.mxu0 0
        %1797 = vmatprep.subr.bf16.mxu0 0
        %1798 = vmatpush2.bf16.msra.mxu0 0
        %1799 = vmatprep.subr.bf16.mxu0 0
        %1800 = vmatpush2.bf16.msra.mxu0 0
        %1801 = vmatprep.mubr.bf16.mxu0 0
        %1802 = vmatmul.mubr.bf16.gmra.mxu0 %v1764
        %v1803 = vpop.f32.mrf.mxu0
        %v1804 = vadd.f32 0.0, %v1803
        %v1805 = vpop.f32.mrf.mxu0
        %v1806 = vpop.f32.mrf.mxu0
        %v1807 = vpop.f32.mrf.mxu0
        %1808 = vdwg.mxu0
        %1809 = vrot.lane.b32.xlu0 %v1412, 64
        %v1810 = vpop.permute.xlu0 %1809
        %v1812 = vsel %vm593, %v1664, 0
        %v1815 = vsel %vm854, %v1810, 0
        %1817 = vmatprep.subr.bf16.mxu0 0
        %1818 = vmatpush1.bf16.msra.mxu0 0
        %1819 = vmatprep.subr.bf16.mxu0 0
        %1820 = vmatpush1.bf16.msra.mxu0 0
        %1821 = vmatprep.subr.bf16.mxu0 0
        %1822 = vmatpush1.bf16.msra.mxu0 0
        %1823 = vmatprep.subr.bf16.mxu0 0
        %1824 = vmatpush1.bf16.msra.mxu0 0
        %1825 = vmatprep.subr.bf16.mxu0 0
        %1826 = vmatpush1.bf16.msra.mxu0 0
        %1827 = vmatprep.subr.bf16.mxu0 0
        %1828 = vmatpush1.bf16.msra.mxu0 0
        %1829 = vmatprep.subr.bf16.mxu0 0
        %1830 = vmatpush1.bf16.msra.mxu0 0
        %1831 = vmatprep.subr.bf16.mxu0 0
        %1832 = vmatpush1.bf16.msra.mxu0 %v1815
        %1833 = vmatprep.subr.bf16.mxu0 0
        %1834 = vmatpush2.bf16.msra.mxu0 0
        %1835 = vmatprep.subr.bf16.mxu0 0
        %1836 = vmatpush2.bf16.msra.mxu0 0
        %1837 = vmatprep.subr.bf16.mxu0 0
        %1838 = vmatpush2.bf16.msra.mxu0 0
        %1839 = vmatprep.subr.bf16.mxu0 0
        %1840 = vmatpush2.bf16.msra.mxu0 0
        %1841 = vmatprep.subr.bf16.mxu0 0
        %1842 = vmatpush2.bf16.msra.mxu0 0
        %1843 = vmatprep.subr.bf16.mxu0 0
        %1844 = vmatpush2.bf16.msra.mxu0 0
        %1845 = vmatprep.subr.bf16.mxu0 0
        %1846 = vmatpush2.bf16.msra.mxu0 0
        %1847 = vmatprep.subr.bf16.mxu0 0
        %1848 = vmatpush2.bf16.msra.mxu0 0
        %1849 = vmatprep.mubr.bf16.mxu0 0
        %1850 = vmatmul.mubr.bf16.gmra.mxu0 %v1812
        %v1851 = vpop.f32.mrf.mxu0
        %v1852 = vadd.f32 0.0, %v1851
        %v1853 = vpop.f32.mrf.mxu0
        %v1854 = vpop.f32.mrf.mxu0
        %v1855 = vpop.f32.mrf.mxu0
        %1856 = vdwg.mxu0
        %1858 = vrot.lane.b32.xlu0 %v1756, 8
        %v1859 = vpop.permute.xlu0 %1858
        %1862 = vrot.lane.b32.xlu0 %v1804, 16
        %v1863 = vpop.permute.xlu0 %1862
        %1866 = vrot.lane.b32.xlu0 %v1852, 24
        %v1867 = vpop.permute.xlu0 %1866
        %v1869 = vsel %vm593, %v1708, %v1859
        %v1870 = vsel %vm1055, %v1869, %v1863
        %v1871 = vsel %vm1057, %v1870, %v1867
        %v1872 = vpack.c.bf16 %v1871, %v1871
        %s1873 = scalar_lea.vmem %s5, 16
        %v1874 = vld [vmem:[%s1873] sm:$0xf]
        %v1875 = vld [vmem:[%s1873 + $0x4] sm:$0xf]
        %v1876 = vld [vmem:[%s1873 + $0x8] sm:$0xf]
        %v1877 = vld [vmem:[%s1873 + $0xc] sm:$0xf]
        %v1878 = vlaneseq
        %v1879 = vshrl.u32 %v1878, 7
        %v1880 = vsub.s32 0, %v1879
        %v1881 = vrot.slane %v1329, %v1880
        %v1886 = vunpack.c.l.b16 %v1874
        %v1887 = vunpack.c.l.b16 %v1875
        %v1888 = vunpack.c.l.b16 %v1876
        %v1889 = vunpack.c.l.b16 %v1877
        %v1890 = vpack.c.b16 %v1887, %v1886
        %v1891 = vpack.c.b16 %v1889, %v1888
        %v1895 = vsel %vm480, %v1872, 0
        %1897 = vmatprep.subr.bf16.mxu0 0
        %1898 = vmatpush1.bf16.msra.mxu0 0
        %1899 = vmatprep.subr.bf16.mxu0 0
        %1900 = vmatpush1.bf16.msra.mxu0 0
        %1901 = vmatprep.subr.bf16.mxu0 0
        %1902 = vmatpush1.bf16.msra.mxu0 0
        %1903 = vmatprep.subr.bf16.mxu0 0
        %1904 = vmatpush1.bf16.msra.mxu0 0
        %1905 = vmatprep.subr.bf16.mxu0 0
        %1906 = vmatpush1.bf16.msra.mxu0 0
        %1907 = vmatprep.subr.bf16.mxu0 0
        %1908 = vmatpush1.bf16.msra.mxu0 0
        %1909 = vmatprep.subr.bf16.mxu0 0
        %1910 = vmatpush1.bf16.msra.mxu0 %v1891
        %1911 = vmatprep.subr.bf16.mxu0 0
        %1912 = vmatpush1.bf16.msra.mxu0 %v1890
        %1913 = vmatprep.subr.bf16.mxu0 0
        %1914 = vmatpush2.bf16.msra.mxu0 0
        %1915 = vmatprep.subr.bf16.mxu0 0
        %1916 = vmatpush2.bf16.msra.mxu0 0
        %1917 = vmatprep.subr.bf16.mxu0 0
        %1918 = vmatpush2.bf16.msra.mxu0 0
        %1919 = vmatprep.subr.bf16.mxu0 0
        %1920 = vmatpush2.bf16.msra.mxu0 0
        %1921 = vmatprep.subr.bf16.mxu0 0
        %1922 = vmatpush2.bf16.msra.mxu0 0
        %1923 = vmatprep.subr.bf16.mxu0 0
        %1924 = vmatpush2.bf16.msra.mxu0 0
        %1925 = vmatprep.subr.bf16.mxu0 0
        %1926 = vmatpush2.bf16.msra.mxu0 0
        %1927 = vmatprep.subr.bf16.mxu0 0
        %1928 = vmatpush2.bf16.msra.mxu0 0
        %1929 = vmatprep.mubr.bf16.mxu0 0
        %1930 = vmatmul.mubr.bf16.gmra.mxu0 %v1895
        %v1931 = vpop.f32.mrf.mxu0
        %v1932 = vadd.f32 %v1881, %v1931
        %v1933 = vpop.f32.mrf.mxu0
        %v1934 = vpop.f32.mrf.mxu0
        %v1935 = vpop.f32.mrf.mxu0
        %1936 = vdwg.mxu0
        %v1937 = vadd.f32 %v1327, %v1932
        %v1938 = vsel %vm480, %v1937, 0.0
        %1939 = vadd.xlane.f32.xlu0 %v1938
        %v1940 = vpop.xlane.xlu0 %1939
        %v1941 = vmul.f32 %v1940, %v484
        %v1942 = vsub.f32 %v1937, %v1941
        %v1943 = vmul.f32 %v1942, %v1942
        %v1944 = vsel %vm480, %v1943, 0.0
        %1945 = vadd.xlane.f32.xlu0 %v1944
        %v1946 = vpop.xlane.xlu0 %1945
        %v1947 = vmul.f32 %v1946, %v484
        %v1948 = vadd.f32 %v1947, 1e-12
        %v1949 = vrsqrt.pop %v1948
        %v1950 = vmul.f32 %v1942, %v1949
        %v1951 = vlaneseq
        %v1952 = vshrl.u32 %v1951, 7
        %v1953 = vsub.s32 1, %v1952
        %v1954 = vrot.slane %v1329, %v1953
        %v1955 = vmul.f32 %v1950, %v1954
        %v1956 = vlaneseq
        %v1957 = vshrl.u32 %v1956, 7
        %v1958 = vsub.s32 2, %v1957
        %v1959 = vrot.slane %v1329, %v1958
        %v1960 = vadd.f32 %v1955, %v1959
        %v1961 = vpack.c.bf16 %v1960, %v1960
        %s1962 = scalar_lea.vmem %s6, 16
        %v1963 = vld [vmem:[%s1962] sm:$0xf]
        %v1964 = vld [vmem:[%s1962 + $0x4] sm:$0xf]
        %v1965 = vld [vmem:[%s1962 + $0x8] sm:$0xf]
        %v1966 = vld [vmem:[%s1962 + $0xc] sm:$0xf]
        %s1967 = scalar_lea.vmem %s7, 1
        %v1968 = vld [vmem:[%s1967] sm:$0x1]
        %v1970 = vlaneseq
        %v1971 = vshrl.u32 %v1970, 7
        %v1972 = vsub.s32 0, %v1971
        %v1973 = vrot.slane %v1968, %v1972
        %v1979 = vunpack.c.l.b16 %v1963
        %v1980 = vunpack.c.l.b16 %v1964
        %v1981 = vunpack.c.l.b16 %v1965
        %v1982 = vunpack.c.l.b16 %v1966
        %v1983 = vpack.c.b16 %v1980, %v1979
        %v1984 = vpack.c.b16 %v1982, %v1981
        %v1988 = vsel %vm480, %v1961, 0
        %1990 = vmatprep.subr.bf16.mxu0 0
        %1991 = vmatpush1.bf16.msra.mxu0 0
        %1992 = vmatprep.subr.bf16.mxu0 0
        %1993 = vmatpush1.bf16.msra.mxu0 0
        %1994 = vmatprep.subr.bf16.mxu0 0
        %1995 = vmatpush1.bf16.msra.mxu0 0
        %1996 = vmatprep.subr.bf16.mxu0 0
        %1997 = vmatpush1.bf16.msra.mxu0 0
        %1998 = vmatprep.subr.bf16.mxu0 0
        %1999 = vmatpush1.bf16.msra.mxu0 0
        %2000 = vmatprep.subr.bf16.mxu0 0
        %2001 = vmatpush1.bf16.msra.mxu0 0
        %2002 = vmatprep.subr.bf16.mxu0 0
        %2003 = vmatpush1.bf16.msra.mxu0 %v1984
        %2004 = vmatprep.subr.bf16.mxu0 0
        %2005 = vmatpush1.bf16.msra.mxu0 %v1983
        %2006 = vmatprep.subr.bf16.mxu0 0
        %2007 = vmatpush2.bf16.msra.mxu0 0
        %2008 = vmatprep.subr.bf16.mxu0 0
        %2009 = vmatpush2.bf16.msra.mxu0 0
        %2010 = vmatprep.subr.bf16.mxu0 0
        %2011 = vmatpush2.bf16.msra.mxu0 0
        %2012 = vmatprep.subr.bf16.mxu0 0
        %2013 = vmatpush2.bf16.msra.mxu0 0
        %2014 = vmatprep.subr.bf16.mxu0 0
        %2015 = vmatpush2.bf16.msra.mxu0 0
        %2016 = vmatprep.subr.bf16.mxu0 0
        %2017 = vmatpush2.bf16.msra.mxu0 0
        %2018 = vmatprep.subr.bf16.mxu0 0
        %2019 = vmatpush2.bf16.msra.mxu0 0
        %2020 = vmatprep.subr.bf16.mxu0 0
        %2021 = vmatpush2.bf16.msra.mxu0 0
        %2022 = vmatprep.mubr.bf16.mxu0 0
        %2023 = vmatmul.mubr.bf16.gmra.mxu0 %v1988
        %v2024 = vpop.f32.mrf.mxu0
        %v2025 = vadd.f32 %v1973, %v2024
        %v2026 = vpop.f32.mrf.mxu0
        %v2027 = vpop.f32.mrf.mxu0
        %v2028 = vpop.f32.mrf.mxu0
        %2029 = vdwg.mxu0
        %v2030 = vmul.f32 %v2025, %v2025
        %v2031 = vmul.f32 %v2025, %v2030
        %v2032 = vmul.f32 %v2031, 0.044715
        %v2033 = vadd.f32 %v2025, %v2032
        %v2034 = vmul.f32 %v2033, 0.7978846
        %v2035 = vtanh.pop %v2034
        %v2036 = vadd.f32 %v2035, 1.0
        %v2037 = vmul.f32 %v2036, 0.5
        %v2038 = vmul.f32 %v2025, %v2037
        %v2039 = vpack.c.bf16 %v2038, %v2038
        %s2040 = scalar_lea.vmem %s8, 32
        %v2041 = vld [vmem:[%s2040] sm:$0xf]
        %v2042 = vld [vmem:[%s2040 + $0x4] sm:$0xf]
        %v2043 = vld [vmem:[%s2040 + $0x8] sm:$0xf]
        %v2044 = vld [vmem:[%s2040 + $0xc] sm:$0xf]
        %v2045 = vld [vmem:[%s2040 + $0x10] sm:$0xf]
        %v2046 = vld [vmem:[%s2040 + $0x14] sm:$0xf]
        %v2047 = vld [vmem:[%s2040 + $0x18] sm:$0xf]
        %v2048 = vld [vmem:[%s2040 + $0x1c] sm:$0xf]
        %v2049 = vlaneseq
        %v2050 = vshrl.u32 %v2049, 7
        %v2051 = vsub.s32 3, %v2050
        %v2052 = vrot.slane %v1329, %v2051
        %v2061 = vunpack.c.l.b16 %v2041
        %v2062 = vunpack.c.l.b16 %v2042
        %v2063 = vunpack.c.l.b16 %v2043
        %v2064 = vunpack.c.l.b16 %v2044
        %v2065 = vunpack.c.l.b16 %v2045
        %v2066 = vunpack.c.l.b16 %v2046
        %v2067 = vunpack.c.l.b16 %v2047
        %v2068 = vunpack.c.l.b16 %v2048
        %v2069 = vpack.c.b16 %v2062, %v2061
        %v2070 = vpack.c.b16 %v2064, %v2063
        %v2071 = vpack.c.b16 %v2066, %v2065
        %v2072 = vpack.c.b16 %v2068, %v2067
        %v2078 = vsel %vm1260, %v2039, 0
        %2080 = vmatprep.subr.bf16.mxu0 0
        %2081 = vmatpush1.bf16.msra.mxu0 0
        %2082 = vmatprep.subr.bf16.mxu0 0
        %2083 = vmatpush1.bf16.msra.mxu0 0
        %2084 = vmatprep.subr.bf16.mxu0 0
        %2085 = vmatpush1.bf16.msra.mxu0 0
        %2086 = vmatprep.subr.bf16.mxu0 0
        %2087 = vmatpush1.bf16.msra.mxu0 0
        %2088 = vmatprep.subr.bf16.mxu0 0
        %2089 = vmatpush1.bf16.msra.mxu0 %v2072
        %2090 = vmatprep.subr.bf16.mxu0 0
        %2091 = vmatpush1.bf16.msra.mxu0 %v2071
        %2092 = vmatprep.subr.bf16.mxu0 0
        %2093 = vmatpush1.bf16.msra.mxu0 %v2070
        %2094 = vmatprep.subr.bf16.mxu0 0
        %2095 = vmatpush1.bf16.msra.mxu0 %v2069
        %2096 = vmatprep.subr.bf16.mxu0 0
        %2097 = vmatpush2.bf16.msra.mxu0 0
        %2098 = vmatprep.subr.bf16.mxu0 0
        %2099 = vmatpush2.bf16.msra.mxu0 0
        %2100 = vmatprep.subr.bf16.mxu0 0
        %2101 = vmatpush2.bf16.msra.mxu0 0
        %2102 = vmatprep.subr.bf16.mxu0 0
        %2103 = vmatpush2.bf16.msra.mxu0 0
        %2104 = vmatprep.subr.bf16.mxu0 0
        %2105 = vmatpush2.bf16.msra.mxu0 0
        %2106 = vmatprep.subr.bf16.mxu0 0
        %2107 = vmatpush2.bf16.msra.mxu0 0
        %2108 = vmatprep.subr.bf16.mxu0 0
        %2109 = vmatpush2.bf16.msra.mxu0 0
        %2110 = vmatprep.subr.bf16.mxu0 0
        %2111 = vmatpush2.bf16.msra.mxu0 0
        %2112 = vmatprep.mubr.bf16.mxu0 0
        %2113 = vmatmul.mubr.bf16.gmra.mxu0 %v2078
        %v2114 = vpop.f32.mrf.mxu0
        %v2115 = vadd.f32 %v2052, %v2114
        %v2116 = vpop.f32.mrf.mxu0
        %v2117 = vpop.f32.mrf.mxu0
        %v2118 = vpop.f32.mrf.mxu0
        %2119 = vdwg.mxu0
        %v2120 = vadd.f32 %v1960, %v2115
        %v2121 = vsel %vm480, %v2120, 0.0
        %2122 = vadd.xlane.f32.xlu0 %v2121
        %v2123 = vpop.xlane.xlu0 %2122
        %v2124 = vmul.f32 %v2123, %v484
        %v2125 = vsub.f32 %v2120, %v2124
        %v2126 = vmul.f32 %v2125, %v2125
        %v2127 = vsel %vm480, %v2126, 0.0
        %2128 = vadd.xlane.f32.xlu0 %v2127
        %v2129 = vpop.xlane.xlu0 %2128
        %v2130 = vmul.f32 %v2129, %v484
        %v2131 = vadd.f32 %v2130, 1e-12
        %v2132 = vrsqrt.pop %v2131
        %v2133 = vmul.f32 %v2125, %v2132
        %v2134 = vlaneseq
        %v2135 = vshrl.u32 %v2134, 7
        %v2136 = vsub.s32 4, %v2135
        %v2137 = vrot.slane %v1329, %v2136
        %v2138 = vmul.f32 %v2133, %v2137
        %v2139 = vlaneseq
        %v2140 = vshrl.u32 %v2139, 7
        %v2141 = vsub.s32 5, %v2140
        %v2142 = vrot.slane %v1329, %v2141
        %v2143 = vadd.f32 %v2138, %v2142
        %v2144 = vpack.c.bf16 %v2143, %v2143
        %v2145 = vld [vmem:[%s10] sm:$0xf]
        %v2146 = vld [vmem:[%s10 + $0x4] sm:$0xf]
        %v2147 = vld [vmem:[%s10 + $0x8] sm:$0xf]
        %v2148 = vld [vmem:[%s10 + $0xc] sm:$0xf]
        %v2149 = vld [vmem:[%s11] sm:$0x1]
        %v2154 = vunpack.c.l.b16 %v2145
        %v2155 = vunpack.c.l.b16 %v2146
        %v2156 = vunpack.c.l.b16 %v2147
        %v2157 = vunpack.c.l.b16 %v2148
        %v2158 = vpack.c.b16 %v2155, %v2154
        %v2159 = vpack.c.b16 %v2157, %v2156
        %v2163 = vsel %vm480, %v2144, 0
        %2165 = vmatprep.subr.bf16.mxu0 0
        %2166 = vmatpush1.bf16.msra.mxu0 0
        %2167 = vmatprep.subr.bf16.mxu0 0
        %2168 = vmatpush1.bf16.msra.mxu0 0
        %2169 = vmatprep.subr.bf16.mxu0 0
        %2170 = vmatpush1.bf16.msra.mxu0 0
        %2171 = vmatprep.subr.bf16.mxu0 0
        %2172 = vmatpush1.bf16.msra.mxu0 0
        %2173 = vmatprep.subr.bf16.mxu0 0
        %2174 = vmatpush1.bf16.msra.mxu0 0
        %2175 = vmatprep.subr.bf16.mxu0 0
        %2176 = vmatpush1.bf16.msra.mxu0 0
        %2177 = vmatprep.subr.bf16.mxu0 0
        %2178 = vmatpush1.bf16.msra.mxu0 %v2159
        %2179 = vmatprep.subr.bf16.mxu0 0
        %2180 = vmatpush1.bf16.msra.mxu0 %v2158
        %2181 = vmatprep.subr.bf16.mxu0 0
        %2182 = vmatpush2.bf16.msra.mxu0 0
        %2183 = vmatprep.subr.bf16.mxu0 0
        %2184 = vmatpush2.bf16.msra.mxu0 0
        %2185 = vmatprep.subr.bf16.mxu0 0
        %2186 = vmatpush2.bf16.msra.mxu0 0
        %2187 = vmatprep.subr.bf16.mxu0 0
        %2188 = vmatpush2.bf16.msra.mxu0 0
        %2189 = vmatprep.subr.bf16.mxu0 0
        %2190 = vmatpush2.bf16.msra.mxu0 0
        %2191 = vmatprep.subr.bf16.mxu0 0
        %2192 = vmatpush2.bf16.msra.mxu0 0
        %2193 = vmatprep.subr.bf16.mxu0 0
        %2194 = vmatpush2.bf16.msra.mxu0 0
        %2195 = vmatprep.subr.bf16.mxu0 0
        %2196 = vmatpush2.bf16.msra.mxu0 0
        %2197 = vmatprep.mubr.bf16.mxu0 0
        %2198 = vmatmul.mubr.bf16.gmra.mxu0 %v2163
        %v2199 = vpop.f32.mrf.mxu0
        %v2200 = vadd.f32 %v2149, %v2199
        %v2201 = vpop.f32.mrf.mxu0
        %v2202 = vpop.f32.mrf.mxu0
        %v2203 = vpop.f32.mrf.mxu0
        %2204 = vdwg.mxu0
        %v2205 = vtanh.pop %v2200
        %v2206 = vpack.c.bf16 %v2205, %v2205
        %v2207 = vld [vmem:[%s12] sm:$0xf]
        %v2208 = vld [vmem:[%s12 + $0x4] sm:$0xf]
        %v2209 = vld [vmem:[%s12 + $0x8] sm:$0xf]
        %v2210 = vld [vmem:[%s12 + $0xc] sm:$0xf]
        %v2211 = vld [vmem:[%s13] sm:$0x1]
        %v2216 = vunpack.c.l.b16 %v2207
        %v2217 = vunpack.c.l.b16 %v2208
        %v2218 = vunpack.c.l.b16 %v2209
        %v2219 = vunpack.c.l.b16 %v2210
        %v2220 = vpack.c.b16 %v2217, %v2216
        %v2221 = vpack.c.b16 %v2219, %v2218
        %v2225 = vsel %vm480, %v2206, 0
        %2227 = vmatprep.subr.bf16.mxu0 0
        %2228 = vmatpush1.bf16.msra.mxu0 0
        %2229 = vmatprep.subr.bf16.mxu0 0
        %2230 = vmatpush1.bf16.msra.mxu0 0
        %2231 = vmatprep.subr.bf16.mxu0 0
        %2232 = vmatpush1.bf16.msra.mxu0 0
        %2233 = vmatprep.subr.bf16.mxu0 0
        %2234 = vmatpush1.bf16.msra.mxu0 0
        %2235 = vmatprep.subr.bf16.mxu0 0
        %2236 = vmatpush1.bf16.msra.mxu0 0
        %2237 = vmatprep.subr.bf16.mxu0 0
        %2238 = vmatpush1.bf16.msra.mxu0 0
        %2239 = vmatprep.subr.bf16.mxu0 0
        %2240 = vmatpush1.bf16.msra.mxu0 %v2221
        %2241 = vmatprep.subr.bf16.mxu0 0
        %2242 = vmatpush1.bf16.msra.mxu0 %v2220
        %2243 = vmatprep.subr.bf16.mxu0 0
        %2244 = vmatpush2.bf16.msra.mxu0 0
        %2245 = vmatprep.subr.bf16.mxu0 0
        %2246 = vmatpush2.bf16.msra.mxu0 0
        %2247 = vmatprep.subr.bf16.mxu0 0
        %2248 = vmatpush2.bf16.msra.mxu0 0
        %2249 = vmatprep.subr.bf16.mxu0 0
        %2250 = vmatpush2.bf16.msra.mxu0 0
        %2251 = vmatprep.subr.bf16.mxu0 0
        %2252 = vmatpush2.bf16.msra.mxu0 0
        %2253 = vmatprep.subr.bf16.mxu0 0
        %2254 = vmatpush2.bf16.msra.mxu0 0
        %2255 = vmatprep.subr.bf16.mxu0 0
        %2256 = vmatpush2.bf16.msra.mxu0 0
        %2257 = vmatprep.subr.bf16.mxu0 0
        %2258 = vmatpush2.bf16.msra.mxu0 0
        %2259 = vmatprep.mubr.bf16.mxu0 0
        %2260 = vmatmul.mubr.bf16.gmra.mxu0 %v2225
        %v2261 = vpop.f32.mrf.mxu0
        %v2262 = vadd.f32 %v2211, %v2261
        %v2263 = vpop.f32.mrf.mxu0
        %v2264 = vpop.f32.mrf.mxu0
        %v2265 = vpop.f32.mrf.mxu0
        %2266 = vdwg.mxu0
        %2267 = vst [vmem:[%s468] sm:$0x1] %v2262
        %s2268 = sand.u32 %s340, 1
        %s2269 = scalar_lea.sflag [#allocation3], %s2268
        %s2270 = sand.u32 %s340, 1
        %s2271 = scalar_lea.vmem [#allocation2], %s2270
        // Predicated region
        $region77: #{rate_classifier_forward.1} parent=75 // pred_check
          %p2272 = pneg %p350
        $region78: #{rate_classifier_forward.1} parent=75 // pred_check_branch
          %2274 = sbr.rel (%p2272) target = $region80
        $region79: #{rate_classifier_forward.1} parent=75 // pred_region
          %s2276 = ssub.s32 16, 16
          %2277 = vsyncadd %s2269, %s2276
          %s2278 = smul.addr %s28, 16
          %s2279 = scalar_lea.hbm %s14, %s2278
          %s2281 = sshll.u32 %s2271, 4
          %s2282 = int_to_ptr.vmem [resolvable:$true] %s2281
          %2284 = dma.vmem_to_hbm [thread:$0]  %s2282, 16, %s2279, %s2269
        $region80: #{rate_classifier_forward.1} parent=75 // pred_fallthru
          _
      $region76: #{rate_classifier_forward.1} parent=5 // pred_fallthru
        _
      %p2285 = scmp.le.s32.totalorder 2, %s23
      // Predicated region
      $region81: #{rate_classifier_forward.1} parent=5 // pred_check
        %p2286 = pneg %p2285
      $region82: #{rate_classifier_forward.1} parent=5 // pred_check_branch
        %2288 = sbr.rel (%p2286) target = $region84
      $region83: #{rate_classifier_forward.1} parent=5 // pred_region
        %s2289 = ssub.s32 %s23, 2
        // Predicated region
        $region85: #{rate_classifier_forward.1} parent=83 // pred_check
          %p2290 = pneg %p356
        $region86: #{rate_classifier_forward.1} parent=83 // pred_check_branch
          %2292 = sbr.rel (%p2290) target = $region88
        $region87: #{rate_classifier_forward.1} parent=83 // pred_region
          %s2293 = sand.u32 %s341, 1
          %s2294 = scalar_lea.sflag [#allocation3], %s2293
          %s2295 = sand.u32 %s341, 1
          %s2296 = scalar_lea.vmem [#allocation2], %s2295
          %2297 = dma.done %s2294, 16
        $region88: #{rate_classifier_forward.1} parent=83 // pred_fallthru
          _
      $region84: #{rate_classifier_forward.1} parent=5 // pred_fallthru
        _
    $region6: #{rate_classifier_forward.1} parent=1 // loop_footer
      %s27 = sadd.s32 1, %s23
    $region7: #{rate_classifier_forward.1} parent=1 // loop_footer_branch
      %22 = sbr.rel target = $region3
    $region8: #{rate_classifier_forward.1} parent=1 // loop_exit
      _
    %2298 = vsyncpa [#allocation3], 1
    %s2299 = scalar_lea.sflag [#allocation3], 1
    %2300 = vsyncpa %s2299, 1

</llo_original>
